<compile_context>
chip_gen: v7x
topology: tpu7x:2x2x1
jax: 0.10.0
libtpu: 0.0.40
codegen_flags: <defaults>
</compile_context>

<pallas_src>
import functools

import jax
import jax.numpy as jnp
from jax.experimental import pallas as pl
from jax.experimental.pallas import tpu as pltpu


def _edsr_kernel(x_ref, w1_ref, b1_ref, w2_ref, b2_ref, w3_ref, o_ref,
                 *, N, Cin, Cout, H, W):
    # x_ref : (Cin, H+2, N*(W+2))  VMEM  padded input, batch folded into lanes
    # w1_ref: (Cout*Cin*9,)        SMEM  conv1 3x3 weights (OIHW, flattened)
    # b1_ref: (Cout,)              SMEM  conv1 bias
    # w2_ref: (Cout*Cout*9,)       SMEM  conv2 3x3 weights
    # b2_ref: (Cout,)              SMEM  conv2 bias
    # w3_ref: (Cout*Cin,)          SMEM  1x1 residual weights (no bias)
    # o_ref : (H, Cout*N*W)        VMEM  lane-dense output slab
    Wp = W + 2                 # padded per-batch segment width on the lane axis
    LV = N * Wp - 2            # width of shifted windows / accumulators
    f32 = jnp.float32

    # Lane-validity mask for the accumulator layout: lane l is batch n = l//Wp,
    # column w = l % Wp; only w < W carries real data.
    lane = jax.lax.broadcasted_iota(jnp.int32, (H, LV), 1)
    valid = (lane % Wp) < W

    # Accumulators with biases folded into the init (2 vregs each -> no spill
    # risk). conv2's accumulator also collects the 1x1 residual during conv1.
    acc1 = [jnp.full((H, LV), b1_ref[co], f32) for co in range(Cout)]
    acc2 = [jnp.full((H, LV), b2_ref[co], f32) for co in range(Cout)]

    # ---- conv1 (3x3, padding=1) + residual 1x1 tap --------------------------
    for ci in range(Cin):
        xs = x_ref[ci]                                    # (H+2, N*Wp)
        sh = [xs[:, kx:kx + LV] for kx in range(3)]       # hoisted lane shifts
        centre = sh[1][1:1 + H, :]                        # == x[:, ci, :, :]
        for co in range(Cout):
            acc2[co] += centre * w3_ref[co * Cin + ci]
        for ky in range(3):
            for kx in range(3):
                win = sh[kx][ky:ky + H, :]                # sublane slice only
                base = ci * 9 + ky * 3 + kx
                for co in range(Cout):                    # co innermost: reuse win
                    acc1[co] += win * w1_ref[co * Cin * 9 + base]

    # ---- ReLU, zero slop lanes, re-pad for conv2 (all in registers) ---------
    zrow = jnp.zeros((1, N * Wp), f32)
    zcol = jnp.zeros((H, 1), f32)
    h1p = []
    for co in range(Cout):
        v = jnp.where(valid, jnp.maximum(acc1[co], 0.0), 0.0)    # (H, LV)
        v = jnp.concatenate([zcol, v, zcol], axis=1)             # (H, N*Wp)
        v = jnp.concatenate([zrow, v, zrow], axis=0)             # (H+2, N*Wp)
        h1p.append(v)

    # ---- conv2 (3x3, padding=1); bias + residual already in acc2 ------------
    for ci in range(Cout):
        hs = h1p[ci]
        sh = [hs[:, kx:kx + LV] for kx in range(3)]
        for ky in range(3):
            for kx in range(3):
                win = sh[kx][ky:ky + H, :]
                base = ci * 9 + ky * 3 + kx
                for co in range(Cout):
                    acc2[co] += win * w2_ref[co * Cout * 9 + base]

    # ---- lane-dense output slab: one unmasked full-width store --------------
    pieces = []
    for co in range(Cout):
        for n in range(N):
            pieces.append(acc2[co][:, n * Wp:n * Wp + W])
    o_ref[...] = jnp.concatenate(pieces, axis=1)          # (H, Cout*N*W)


def edsr_conv(x, w1, b1, w2, b2, w3):
    """x: (N, Cin, H, W); w1: (Cout, Cin, 3, 3); w2: (Cout, Cout, 3, 3);
    w3: (Cout, Cin, 1, 1); b1, b2: (Cout,). Returns (N, Cout, H, W) f32."""
    N, Cin, H, W = x.shape
    Cout = w1.shape[0]
    Wp = W + 2

    # Layout plumbing (one tiny fused XLA op): pad H/W by 1 and fold the batch
    # into the lane axis -> (Cin, H+2, N*(W+2)).
    xpad = jnp.pad(x.astype(jnp.float32), ((0, 0), (0, 0), (1, 1), (1, 1)))
    xl = xpad.transpose(1, 2, 0, 3).reshape(Cin, H + 2, N * Wp)

    w1f = w1.reshape(-1).astype(jnp.float32)
    w2f = w2.reshape(-1).astype(jnp.float32)
    w3f = w3.reshape(-1).astype(jnp.float32)

    smem = pl.BlockSpec(memory_space=pltpu.MemorySpace.SMEM)
    kernel = functools.partial(_edsr_kernel, N=N, Cin=Cin, Cout=Cout, H=H, W=W)

    out = pl.pallas_call(
        kernel,
        out_shape=jax.ShapeDtypeStruct((H, Cout * N * W), jnp.float32),
        grid_spec=pltpu.PrefetchScalarGridSpec(
            num_scalar_prefetch=0,
            grid=(1,),   # whole batch in one step (batch lives on the lane axis)
            in_specs=[
                pl.BlockSpec((Cin, H + 2, N * Wp), lambda i: (0, 0, 0)),
                smem, smem, smem, smem, smem,
            ],
            out_specs=pl.BlockSpec((H, Cout * N * W), lambda i: (0, 0)),
        ),
        compiler_params=pltpu.CompilerParams(
            dimension_semantics=("arbitrary",)),
    )(xl, w1f, b1.astype(jnp.float32), w2f, b2.astype(jnp.float32), w3f)

    # (H, Cout, N, W) lane ordering -> NCHW.
    return out.reshape(H, Cout, N, W).transpose(2, 1, 0, 3)


def edsr_conv_reference(x, w1, b1, w2, b2, w3):
    """Pure-JAX reference mirroring the PyTorch forward (NCHW / OIHW)."""
    dn = ("NCHW", "OIHW", "NCHW")
    y = jax.lax.conv_general_dilated(
        x, w1, (1, 1), ((1, 1), (1, 1)), dimension_numbers=dn)
    y = y + b1[None, :, None, None]
    y = jnp.maximum(y, 0.0)
    y = jax.lax.conv_general_dilated(
        y, w2, (1, 1), ((1, 1), (1, 1)), dimension_numbers=dn)
    y = y + b2[None, :, None, None]
    r = jax.lax.conv_general_dilated(
        x, w3, (1, 1), ((0, 0), (0, 0)), dimension_numbers=dn)
    return y + r


if __name__ == "__main__":
    key = jax.random.PRNGKey(0)
    k_x, k_w1, k_b1, k_w2, k_b2, k_w3 = jax.random.split(key, 6)

    N, Cin, Cout, H, W = 2, 4, 4, 16, 16

    x = jax.random.normal(k_x, (N, Cin, H, W), jnp.float32)
    # Deterministic synthetic parameters (shapes from EDSRConv.__init__).
    w1 = 0.1 * jax.random.normal(k_w1, (Cout, Cin, 3, 3), jnp.float32)
    b1 = 0.1 * jax.random.normal(k_b1, (Cout,), jnp.float32)
    w2 = 0.1 * jax.random.normal(k_w2, (Cout, Cout, 3, 3), jnp.float32)
    b2 = 0.1 * jax.random.normal(k_b2, (Cout,), jnp.float32)
    w3 = 0.1 * jax.random.normal(k_w3, (Cout, Cin, 1, 1), jnp.float32)

    out = edsr_conv(x, w1, b1, w2, b2, w3)
    out = jax.block_until_ready(out)

    ref = jax.block_until_ready(edsr_conv_reference(x, w1, b1, w2, b2, w3))

    assert out.shape == (N, Cout, H, W), out.shape
    assert jnp.allclose(out, ref, atol=1e-4, rtol=1e-4), (
        float(jnp.max(jnp.abs(out - ref))))

    print("KERNEL_OK")
</pallas_src>

<mosaic_0001>
module attributes {stable_mosaic.version = 11 : i64} {
  func.func @_edsr_kernel(%arg0: i32, %arg1: memref<4x18x36xf32, #tpu.memory_space<vmem>>, %arg2: memref<144xf32, #tpu.memory_space<smem>>, %arg3: memref<4xf32, #tpu.memory_space<smem>>, %arg4: memref<144xf32, #tpu.memory_space<smem>>, %arg5: memref<4xf32, #tpu.memory_space<smem>>, %arg6: memref<16xf32, #tpu.memory_space<smem>>, %arg7: memref<16x128xf32, #tpu.memory_space<vmem>>) attributes {dimension_semantics = [#tpu.dimension_semantics<arbitrary>], iteration_bounds = array<i64: 1>, scalar_prefetch = 0 : i64, scratch_operands = 0 : i64, tpu.core_type = #tpu.core_type<tc>, window_params = [{pipeline_mode = #tpu.pipeline_mode<synchronous>, transform_indices = @transform_0, window_bounds = array<i64: 4, 18, 36>}, {transform_indices = @transform_1, window_bounds = array<i64: 144>}, {transform_indices = @transform_2, window_bounds = array<i64: 4>}, {transform_indices = @transform_3, window_bounds = array<i64: 144>}, {transform_indices = @transform_4, window_bounds = array<i64: 4>}, {transform_indices = @transform_5, window_bounds = array<i64: 16>}, {pipeline_mode = #tpu.pipeline_mode<synchronous>, transform_indices = @transform_6, window_bounds = array<i64: 16, 128>}]} {
    %0 = tpu.iota {dimensions = array<i32: 1>} : vector<16x34xi32>
    %c18_i32 = arith.constant 18 : i32
    %c0_i32 = arith.constant 0 : i32
    %1 = arith.cmpi eq, %c18_i32, %c0_i32 : i32
    %c1_i32 = arith.constant 1 : i32
    %2 = arith.select %1, %c1_i32, %c18_i32 : i32
    %3 = vector.broadcast %2 : i32 to vector<16x34xi32>
    %4 = arith.remsi %0, %3 : vector<16x34xi32>
    %c0_i32_0 = arith.constant 0 : i32
    %5 = vector.broadcast %c0_i32_0 : i32 to vector<16x34xi32>
    %6 = arith.cmpi ne, %4, %5 : vector<16x34xi32>
    %c0_i32_1 = arith.constant 0 : i32
    %7 = vector.broadcast %c0_i32_1 : i32 to vector<16x34xi32>
    %8 = arith.cmpi slt, %4, %7 : vector<16x34xi32>
    %c0_i32_2 = arith.constant 0 : i32
    %9 = arith.cmpi slt, %2, %c0_i32_2 : i32
    %10 = vector.broadcast %9 : i1 to vector<16x34xi1>
    %11 = vector.broadcast %10 : vector<16x34xi1> to vector<16x34xi1>
    %12 = arith.xori %8, %11 : vector<16x34xi1>
    %13 = arith.andi %12, %6 : vector<16x34xi1>
    %14 = vector.broadcast %2 : i32 to vector<16x34xi32>
    %15 = arith.addi %4, %14 : vector<16x34xi32>
    %16 = arith.select %13, %15, %4 : vector<16x34xi1>, vector<16x34xi32>
    %c16_i32 = arith.constant 16 : i32
    %17 = vector.broadcast %c16_i32 : i32 to vector<16x34xi32>
    %18 = arith.cmpi slt, %16, %17 : vector<16x34xi32>
    %c0 = arith.constant 0 : index
    %19 = memref.load %arg3[%c0] : memref<4xf32, #tpu.memory_space<smem>>
    %20 = vector.broadcast %19 : f32 to vector<16x34xf32>
    %c1 = arith.constant 1 : index
    %21 = memref.load %arg3[%c1] : memref<4xf32, #tpu.memory_space<smem>>
    %22 = vector.broadcast %21 : f32 to vector<16x34xf32>
    %c2 = arith.constant 2 : index
    %23 = memref.load %arg3[%c2] : memref<4xf32, #tpu.memory_space<smem>>
    %24 = vector.broadcast %23 : f32 to vector<16x34xf32>
    %c3 = arith.constant 3 : index
    %25 = memref.load %arg3[%c3] : memref<4xf32, #tpu.memory_space<smem>>
    %26 = vector.broadcast %25 : f32 to vector<16x34xf32>
    %c0_3 = arith.constant 0 : index
    %27 = memref.load %arg5[%c0_3] : memref<4xf32, #tpu.memory_space<smem>>
    %28 = vector.broadcast %27 : f32 to vector<16x34xf32>
    %c1_4 = arith.constant 1 : index
    %29 = memref.load %arg5[%c1_4] : memref<4xf32, #tpu.memory_space<smem>>
    %30 = vector.broadcast %29 : f32 to vector<16x34xf32>
    %c2_5 = arith.constant 2 : index
    %31 = memref.load %arg5[%c2_5] : memref<4xf32, #tpu.memory_space<smem>>
    %32 = vector.broadcast %31 : f32 to vector<16x34xf32>
    %c3_6 = arith.constant 3 : index
    %33 = memref.load %arg5[%c3_6] : memref<4xf32, #tpu.memory_space<smem>>
    %34 = vector.broadcast %33 : f32 to vector<16x34xf32>
    %c0_7 = arith.constant 0 : index
    %c0_8 = arith.constant 0 : index
    %c0_9 = arith.constant 0 : index
    %35 = vector.load %arg1[%c0_7, %c0_8, %c0_9] : memref<4x18x36xf32, #tpu.memory_space<vmem>>, vector<1x18x36xf32>
    %36 = vector.shape_cast %35 : vector<1x18x36xf32> to vector<18x36xf32>
    %37 = vector.extract_strided_slice %36 {offsets = [0, 0], sizes = [18, 34], strides = [1, 1]} : vector<18x36xf32> to vector<18x34xf32>
    %38 = vector.extract_strided_slice %36 {offsets = [0, 1], sizes = [18, 34], strides = [1, 1]} : vector<18x36xf32> to vector<18x34xf32>
    %39 = vector.extract_strided_slice %36 {offsets = [0, 2], sizes = [18, 34], strides = [1, 1]} : vector<18x36xf32> to vector<18x34xf32>
    %40 = vector.extract_strided_slice %38 {offsets = [1, 0], sizes = [16, 34], strides = [1, 1]} : vector<18x34xf32> to vector<16x34xf32>
    %c0_10 = arith.constant 0 : index
    %41 = memref.load %arg6[%c0_10] : memref<16xf32, #tpu.memory_space<smem>>
    %42 = vector.broadcast %41 : f32 to vector<16x34xf32>
    %43 = arith.mulf %40, %42 : vector<16x34xf32>
    %44 = arith.addf %28, %43 : vector<16x34xf32>
    %c4 = arith.constant 4 : index
    %45 = memref.load %arg6[%c4] : memref<16xf32, #tpu.memory_space<smem>>
    %46 = vector.broadcast %45 : f32 to vector<16x34xf32>
    %47 = arith.mulf %40, %46 : vector<16x34xf32>
    %48 = arith.addf %30, %47 : vector<16x34xf32>
    %c8 = arith.constant 8 : index
    %49 = memref.load %arg6[%c8] : memref<16xf32, #tpu.memory_space<smem>>
    %50 = vector.broadcast %49 : f32 to vector<16x34xf32>
    %51 = arith.mulf %40, %50 : vector<16x34xf32>
    %52 = arith.addf %32, %51 : vector<16x34xf32>
    %c12 = arith.constant 12 : index
    %53 = memref.load %arg6[%c12] : memref<16xf32, #tpu.memory_space<smem>>
    %54 = vector.broadcast %53 : f32 to vector<16x34xf32>
    %55 = arith.mulf %40, %54 : vector<16x34xf32>
    %56 = arith.addf %34, %55 : vector<16x34xf32>
    %57 = vector.extract_strided_slice %37 {offsets = [0, 0], sizes = [16, 34], strides = [1, 1]} : vector<18x34xf32> to vector<16x34xf32>
    %c0_11 = arith.constant 0 : index
    %58 = memref.load %arg2[%c0_11] : memref<144xf32, #tpu.memory_space<smem>>
    %59 = vector.broadcast %58 : f32 to vector<16x34xf32>
    %60 = arith.mulf %57, %59 : vector<16x34xf32>
    %61 = arith.addf %20, %60 : vector<16x34xf32>
    %c36 = arith.constant 36 : index
    %62 = memref.load %arg2[%c36] : memref<144xf32, #tpu.memory_space<smem>>
    %63 = vector.broadcast %62 : f32 to vector<16x34xf32>
    %64 = arith.mulf %57, %63 : vector<16x34xf32>
    %65 = arith.addf %22, %64 : vector<16x34xf32>
    %c72 = arith.constant 72 : index
    %66 = memref.load %arg2[%c72] : memref<144xf32, #tpu.memory_space<smem>>
    %67 = vector.broadcast %66 : f32 to vector<16x34xf32>
    %68 = arith.mulf %57, %67 : vector<16x34xf32>
    %69 = arith.addf %24, %68 : vector<16x34xf32>
    %c108 = arith.constant 108 : index
    %70 = memref.load %arg2[%c108] : memref<144xf32, #tpu.memory_space<smem>>
    %71 = vector.broadcast %70 : f32 to vector<16x34xf32>
    %72 = arith.mulf %57, %71 : vector<16x34xf32>
    %73 = arith.addf %26, %72 : vector<16x34xf32>
    %74 = vector.extract_strided_slice %38 {offsets = [0, 0], sizes = [16, 34], strides = [1, 1]} : vector<18x34xf32> to vector<16x34xf32>
    %c1_12 = arith.constant 1 : index
    %75 = memref.load %arg2[%c1_12] : memref<144xf32, #tpu.memory_space<smem>>
    %76 = vector.broadcast %75 : f32 to vector<16x34xf32>
    %77 = arith.mulf %74, %76 : vector<16x34xf32>
    %78 = arith.addf %61, %77 : vector<16x34xf32>
    %c37 = arith.constant 37 : index
    %79 = memref.load %arg2[%c37] : memref<144xf32, #tpu.memory_space<smem>>
    %80 = vector.broadcast %79 : f32 to vector<16x34xf32>
    %81 = arith.mulf %74, %80 : vector<16x34xf32>
    %82 = arith.addf %65, %81 : vector<16x34xf32>
    %c73 = arith.constant 73 : index
    %83 = memref.load %arg2[%c73] : memref<144xf32, #tpu.memory_space<smem>>
    %84 = vector.broadcast %83 : f32 to vector<16x34xf32>
    %85 = arith.mulf %74, %84 : vector<16x34xf32>
    %86 = arith.addf %69, %85 : vector<16x34xf32>
    %c109 = arith.constant 109 : index
    %87 = memref.load %arg2[%c109] : memref<144xf32, #tpu.memory_space<smem>>
    %88 = vector.broadcast %87 : f32 to vector<16x34xf32>
    %89 = arith.mulf %74, %88 : vector<16x34xf32>
    %90 = arith.addf %73, %89 : vector<16x34xf32>
    %91 = vector.extract_strided_slice %39 {offsets = [0, 0], sizes = [16, 34], strides = [1, 1]} : vector<18x34xf32> to vector<16x34xf32>
    %c2_13 = arith.constant 2 : index
    %92 = memref.load %arg2[%c2_13] : memref<144xf32, #tpu.memory_space<smem>>
    %93 = vector.broadcast %92 : f32 to vector<16x34xf32>
    %94 = arith.mulf %91, %93 : vector<16x34xf32>
    %95 = arith.addf %78, %94 : vector<16x34xf32>
    %c38 = arith.constant 38 : index
    %96 = memref.load %arg2[%c38] : memref<144xf32, #tpu.memory_space<smem>>
    %97 = vector.broadcast %96 : f32 to vector<16x34xf32>
    %98 = arith.mulf %91, %97 : vector<16x34xf32>
    %99 = arith.addf %82, %98 : vector<16x34xf32>
    %c74 = arith.constant 74 : index
    %100 = memref.load %arg2[%c74] : memref<144xf32, #tpu.memory_space<smem>>
    %101 = vector.broadcast %100 : f32 to vector<16x34xf32>
    %102 = arith.mulf %91, %101 : vector<16x34xf32>
    %103 = arith.addf %86, %102 : vector<16x34xf32>
    %c110 = arith.constant 110 : index
    %104 = memref.load %arg2[%c110] : memref<144xf32, #tpu.memory_space<smem>>
    %105 = vector.broadcast %104 : f32 to vector<16x34xf32>
    %106 = arith.mulf %91, %105 : vector<16x34xf32>
    %107 = arith.addf %90, %106 : vector<16x34xf32>
    %108 = vector.extract_strided_slice %37 {offsets = [1, 0], sizes = [16, 34], strides = [1, 1]} : vector<18x34xf32> to vector<16x34xf32>
    %c3_14 = arith.constant 3 : index
    %109 = memref.load %arg2[%c3_14] : memref<144xf32, #tpu.memory_space<smem>>
    %110 = vector.broadcast %109 : f32 to vector<16x34xf32>
    %111 = arith.mulf %108, %110 : vector<16x34xf32>
    %112 = arith.addf %95, %111 : vector<16x34xf32>
    %c39 = arith.constant 39 : index
    %113 = memref.load %arg2[%c39] : memref<144xf32, #tpu.memory_space<smem>>
    %114 = vector.broadcast %113 : f32 to vector<16x34xf32>
    %115 = arith.mulf %108, %114 : vector<16x34xf32>
    %116 = arith.addf %99, %115 : vector<16x34xf32>
    %c75 = arith.constant 75 : index
    %117 = memref.load %arg2[%c75] : memref<144xf32, #tpu.memory_space<smem>>
    %118 = vector.broadcast %117 : f32 to vector<16x34xf32>
    %119 = arith.mulf %108, %118 : vector<16x34xf32>
    %120 = arith.addf %103, %119 : vector<16x34xf32>
    %c111 = arith.constant 111 : index
    %121 = memref.load %arg2[%c111] : memref<144xf32, #tpu.memory_space<smem>>
    %122 = vector.broadcast %121 : f32 to vector<16x34xf32>
    %123 = arith.mulf %108, %122 : vector<16x34xf32>
    %124 = arith.addf %107, %123 : vector<16x34xf32>
    %125 = vector.extract_strided_slice %38 {offsets = [1, 0], sizes = [16, 34], strides = [1, 1]} : vector<18x34xf32> to vector<16x34xf32>
    %c4_15 = arith.constant 4 : index
    %126 = memref.load %arg2[%c4_15] : memref<144xf32, #tpu.memory_space<smem>>
    %127 = vector.broadcast %126 : f32 to vector<16x34xf32>
    %128 = arith.mulf %125, %127 : vector<16x34xf32>
    %129 = arith.addf %112, %128 : vector<16x34xf32>
    %c40 = arith.constant 40 : index
    %130 = memref.load %arg2[%c40] : memref<144xf32, #tpu.memory_space<smem>>
    %131 = vector.broadcast %130 : f32 to vector<16x34xf32>
    %132 = arith.mulf %125, %131 : vector<16x34xf32>
    %133 = arith.addf %116, %132 : vector<16x34xf32>
    %c76 = arith.constant 76 : index
    %134 = memref.load %arg2[%c76] : memref<144xf32, #tpu.memory_space<smem>>
    %135 = vector.broadcast %134 : f32 to vector<16x34xf32>
    %136 = arith.mulf %125, %135 : vector<16x34xf32>
    %137 = arith.addf %120, %136 : vector<16x34xf32>
    %c112 = arith.constant 112 : index
    %138 = memref.load %arg2[%c112] : memref<144xf32, #tpu.memory_space<smem>>
    %139 = vector.broadcast %138 : f32 to vector<16x34xf32>
    %140 = arith.mulf %125, %139 : vector<16x34xf32>
    %141 = arith.addf %124, %140 : vector<16x34xf32>
    %142 = vector.extract_strided_slice %39 {offsets = [1, 0], sizes = [16, 34], strides = [1, 1]} : vector<18x34xf32> to vector<16x34xf32>
    %c5 = arith.constant 5 : index
    %143 = memref.load %arg2[%c5] : memref<144xf32, #tpu.memory_space<smem>>
    %144 = vector.broadcast %143 : f32 to vector<16x34xf32>
    %145 = arith.mulf %142, %144 : vector<16x34xf32>
    %146 = arith.addf %129, %145 : vector<16x34xf32>
    %c41 = arith.constant 41 : index
    %147 = memref.load %arg2[%c41] : memref<144xf32, #tpu.memory_space<smem>>
    %148 = vector.broadcast %147 : f32 to vector<16x34xf32>
    %149 = arith.mulf %142, %148 : vector<16x34xf32>
    %150 = arith.addf %133, %149 : vector<16x34xf32>
    %c77 = arith.constant 77 : index
    %151 = memref.load %arg2[%c77] : memref<144xf32, #tpu.memory_space<smem>>
    %152 = vector.broadcast %151 : f32 to vector<16x34xf32>
    %153 = arith.mulf %142, %152 : vector<16x34xf32>
    %154 = arith.addf %137, %153 : vector<16x34xf32>
    %c113 = arith.constant 113 : index
    %155 = memref.load %arg2[%c113] : memref<144xf32, #tpu.memory_space<smem>>
    %156 = vector.broadcast %155 : f32 to vector<16x34xf32>
    %157 = arith.mulf %142, %156 : vector<16x34xf32>
    %158 = arith.addf %141, %157 : vector<16x34xf32>
    %159 = vector.extract_strided_slice %37 {offsets = [2, 0], sizes = [16, 34], strides = [1, 1]} : vector<18x34xf32> to vector<16x34xf32>
    %c6 = arith.constant 6 : index
    %160 = memref.load %arg2[%c6] : memref<144xf32, #tpu.memory_space<smem>>
    %161 = vector.broadcast %160 : f32 to vector<16x34xf32>
    %162 = arith.mulf %159, %161 : vector<16x34xf32>
    %163 = arith.addf %146, %162 : vector<16x34xf32>
    %c42 = arith.constant 42 : index
    %164 = memref.load %arg2[%c42] : memref<144xf32, #tpu.memory_space<smem>>
    %165 = vector.broadcast %164 : f32 to vector<16x34xf32>
    %166 = arith.mulf %159, %165 : vector<16x34xf32>
    %167 = arith.addf %150, %166 : vector<16x34xf32>
    %c78 = arith.constant 78 : index
    %168 = memref.load %arg2[%c78] : memref<144xf32, #tpu.memory_space<smem>>
    %169 = vector.broadcast %168 : f32 to vector<16x34xf32>
    %170 = arith.mulf %159, %169 : vector<16x34xf32>
    %171 = arith.addf %154, %170 : vector<16x34xf32>
    %c114 = arith.constant 114 : index
    %172 = memref.load %arg2[%c114] : memref<144xf32, #tpu.memory_space<smem>>
    %173 = vector.broadcast %172 : f32 to vector<16x34xf32>
    %174 = arith.mulf %159, %173 : vector<16x34xf32>
    %175 = arith.addf %158, %174 : vector<16x34xf32>
    %176 = vector.extract_strided_slice %38 {offsets = [2, 0], sizes = [16, 34], strides = [1, 1]} : vector<18x34xf32> to vector<16x34xf32>
    %c7 = arith.constant 7 : index
    %177 = memref.load %arg2[%c7] : memref<144xf32, #tpu.memory_space<smem>>
    %178 = vector.broadcast %177 : f32 to vector<16x34xf32>
    %179 = arith.mulf %176, %178 : vector<16x34xf32>
    %180 = arith.addf %163, %179 : vector<16x34xf32>
    %c43 = arith.constant 43 : index
    %181 = memref.load %arg2[%c43] : memref<144xf32, #tpu.memory_space<smem>>
    %182 = vector.broadcast %181 : f32 to vector<16x34xf32>
    %183 = arith.mulf %176, %182 : vector<16x34xf32>
    %184 = arith.addf %167, %183 : vector<16x34xf32>
    %c79 = arith.constant 79 : index
    %185 = memref.load %arg2[%c79] : memref<144xf32, #tpu.memory_space<smem>>
    %186 = vector.broadcast %185 : f32 to vector<16x34xf32>
    %187 = arith.mulf %176, %186 : vector<16x34xf32>
    %188 = arith.addf %171, %187 : vector<16x34xf32>
    %c115 = arith.constant 115 : index
    %189 = memref.load %arg2[%c115] : memref<144xf32, #tpu.memory_space<smem>>
    %190 = vector.broadcast %189 : f32 to vector<16x34xf32>
    %191 = arith.mulf %176, %190 : vector<16x34xf32>
    %192 = arith.addf %175, %191 : vector<16x34xf32>
    %193 = vector.extract_strided_slice %39 {offsets = [2, 0], sizes = [16, 34], strides = [1, 1]} : vector<18x34xf32> to vector<16x34xf32>
    %c8_16 = arith.constant 8 : index
    %194 = memref.load %arg2[%c8_16] : memref<144xf32, #tpu.memory_space<smem>>
    %195 = vector.broadcast %194 : f32 to vector<16x34xf32>
    %196 = arith.mulf %193, %195 : vector<16x34xf32>
    %197 = arith.addf %180, %196 : vector<16x34xf32>
    %c44 = arith.constant 44 : index
    %198 = memref.load %arg2[%c44] : memref<144xf32, #tpu.memory_space<smem>>
    %199 = vector.broadcast %198 : f32 to vector<16x34xf32>
    %200 = arith.mulf %193, %199 : vector<16x34xf32>
    %201 = arith.addf %184, %200 : vector<16x34xf32>
    %c80 = arith.constant 80 : index
    %202 = memref.load %arg2[%c80] : memref<144xf32, #tpu.memory_space<smem>>
    %203 = vector.broadcast %202 : f32 to vector<16x34xf32>
    %204 = arith.mulf %193, %203 : vector<16x34xf32>
    %205 = arith.addf %188, %204 : vector<16x34xf32>
    %c116 = arith.constant 116 : index
    %206 = memref.load %arg2[%c116] : memref<144xf32, #tpu.memory_space<smem>>
    %207 = vector.broadcast %206 : f32 to vector<16x34xf32>
    %208 = arith.mulf %193, %207 : vector<16x34xf32>
    %209 = arith.addf %192, %208 : vector<16x34xf32>
    %c1_17 = arith.constant 1 : index
    %c0_18 = arith.constant 0 : index
    %c0_19 = arith.constant 0 : index
    %210 = vector.load %arg1[%c1_17, %c0_18, %c0_19] : memref<4x18x36xf32, #tpu.memory_space<vmem>>, vector<1x18x36xf32>
    %211 = vector.shape_cast %210 : vector<1x18x36xf32> to vector<18x36xf32>
    %212 = vector.extract_strided_slice %211 {offsets = [0, 0], sizes = [18, 34], strides = [1, 1]} : vector<18x36xf32> to vector<18x34xf32>
    %213 = vector.extract_strided_slice %211 {offsets = [0, 1], sizes = [18, 34], strides = [1, 1]} : vector<18x36xf32> to vector<18x34xf32>
    %214 = vector.extract_strided_slice %211 {offsets = [0, 2], sizes = [18, 34], strides = [1, 1]} : vector<18x36xf32> to vector<18x34xf32>
    %215 = vector.extract_strided_slice %213 {offsets = [1, 0], sizes = [16, 34], strides = [1, 1]} : vector<18x34xf32> to vector<16x34xf32>
    %c1_20 = arith.constant 1 : index
    %216 = memref.load %arg6[%c1_20] : memref<16xf32, #tpu.memory_space<smem>>
    %217 = vector.broadcast %216 : f32 to vector<16x34xf32>
    %218 = arith.mulf %215, %217 : vector<16x34xf32>
    %219 = arith.addf %44, %218 : vector<16x34xf32>
    %c5_21 = arith.constant 5 : index
    %220 = memref.load %arg6[%c5_21] : memref<16xf32, #tpu.memory_space<smem>>
    %221 = vector.broadcast %220 : f32 to vector<16x34xf32>
    %222 = arith.mulf %215, %221 : vector<16x34xf32>
    %223 = arith.addf %48, %222 : vector<16x34xf32>
    %c9 = arith.constant 9 : index
    %224 = memref.load %arg6[%c9] : memref<16xf32, #tpu.memory_space<smem>>
    %225 = vector.broadcast %224 : f32 to vector<16x34xf32>
    %226 = arith.mulf %215, %225 : vector<16x34xf32>
    %227 = arith.addf %52, %226 : vector<16x34xf32>
    %c13 = arith.constant 13 : index
    %228 = memref.load %arg6[%c13] : memref<16xf32, #tpu.memory_space<smem>>
    %229 = vector.broadcast %228 : f32 to vector<16x34xf32>
    %230 = arith.mulf %215, %229 : vector<16x34xf32>
    %231 = arith.addf %56, %230 : vector<16x34xf32>
    %232 = vector.extract_strided_slice %212 {offsets = [0, 0], sizes = [16, 34], strides = [1, 1]} : vector<18x34xf32> to vector<16x34xf32>
    %c9_22 = arith.constant 9 : index
    %233 = memref.load %arg2[%c9_22] : memref<144xf32, #tpu.memory_space<smem>>
    %234 = vector.broadcast %233 : f32 to vector<16x34xf32>
    %235 = arith.mulf %232, %234 : vector<16x34xf32>
    %236 = arith.addf %197, %235 : vector<16x34xf32>
    %c45 = arith.constant 45 : index
    %237 = memref.load %arg2[%c45] : memref<144xf32, #tpu.memory_space<smem>>
    %238 = vector.broadcast %237 : f32 to vector<16x34xf32>
    %239 = arith.mulf %232, %238 : vector<16x34xf32>
    %240 = arith.addf %201, %239 : vector<16x34xf32>
    %c81 = arith.constant 81 : index
    %241 = memref.load %arg2[%c81] : memref<144xf32, #tpu.memory_space<smem>>
    %242 = vector.broadcast %241 : f32 to vector<16x34xf32>
    %243 = arith.mulf %232, %242 : vector<16x34xf32>
    %244 = arith.addf %205, %243 : vector<16x34xf32>
    %c117 = arith.constant 117 : index
    %245 = memref.load %arg2[%c117] : memref<144xf32, #tpu.memory_space<smem>>
    %246 = vector.broadcast %245 : f32 to vector<16x34xf32>
    %247 = arith.mulf %232, %246 : vector<16x34xf32>
    %248 = arith.addf %209, %247 : vector<16x34xf32>
    %249 = vector.extract_strided_slice %213 {offsets = [0, 0], sizes = [16, 34], strides = [1, 1]} : vector<18x34xf32> to vector<16x34xf32>
    %c10 = arith.constant 10 : index
    %250 = memref.load %arg2[%c10] : memref<144xf32, #tpu.memory_space<smem>>
    %251 = vector.broadcast %250 : f32 to vector<16x34xf32>
    %252 = arith.mulf %249, %251 : vector<16x34xf32>
    %253 = arith.addf %236, %252 : vector<16x34xf32>
    %c46 = arith.constant 46 : index
    %254 = memref.load %arg2[%c46] : memref<144xf32, #tpu.memory_space<smem>>
    %255 = vector.broadcast %254 : f32 to vector<16x34xf32>
    %256 = arith.mulf %249, %255 : vector<16x34xf32>
    %257 = arith.addf %240, %256 : vector<16x34xf32>
    %c82 = arith.constant 82 : index
    %258 = memref.load %arg2[%c82] : memref<144xf32, #tpu.memory_space<smem>>
    %259 = vector.broadcast %258 : f32 to vector<16x34xf32>
    %260 = arith.mulf %249, %259 : vector<16x34xf32>
    %261 = arith.addf %244, %260 : vector<16x34xf32>
    %c118 = arith.constant 118 : index
    %262 = memref.load %arg2[%c118] : memref<144xf32, #tpu.memory_space<smem>>
    %263 = vector.broadcast %262 : f32 to vector<16x34xf32>
    %264 = arith.mulf %249, %263 : vector<16x34xf32>
    %265 = arith.addf %248, %264 : vector<16x34xf32>
    %266 = vector.extract_strided_slice %214 {offsets = [0, 0], sizes = [16, 34], strides = [1, 1]} : vector<18x34xf32> to vector<16x34xf32>
    %c11 = arith.constant 11 : index
    %267 = memref.load %arg2[%c11] : memref<144xf32, #tpu.memory_space<smem>>
    %268 = vector.broadcast %267 : f32 to vector<16x34xf32>
    %269 = arith.mulf %266, %268 : vector<16x34xf32>
    %270 = arith.addf %253, %269 : vector<16x34xf32>
    %c47 = arith.constant 47 : index
    %271 = memref.load %arg2[%c47] : memref<144xf32, #tpu.memory_space<smem>>
    %272 = vector.broadcast %271 : f32 to vector<16x34xf32>
    %273 = arith.mulf %266, %272 : vector<16x34xf32>
    %274 = arith.addf %257, %273 : vector<16x34xf32>
    %c83 = arith.constant 83 : index
    %275 = memref.load %arg2[%c83] : memref<144xf32, #tpu.memory_space<smem>>
    %276 = vector.broadcast %275 : f32 to vector<16x34xf32>
    %277 = arith.mulf %266, %276 : vector<16x34xf32>
    %278 = arith.addf %261, %277 : vector<16x34xf32>
    %c119 = arith.constant 119 : index
    %279 = memref.load %arg2[%c119] : memref<144xf32, #tpu.memory_space<smem>>
    %280 = vector.broadcast %279 : f32 to vector<16x34xf32>
    %281 = arith.mulf %266, %280 : vector<16x34xf32>
    %282 = arith.addf %265, %281 : vector<16x34xf32>
    %283 = vector.extract_strided_slice %212 {offsets = [1, 0], sizes = [16, 34], strides = [1, 1]} : vector<18x34xf32> to vector<16x34xf32>
    %c12_23 = arith.constant 12 : index
    %284 = memref.load %arg2[%c12_23] : memref<144xf32, #tpu.memory_space<smem>>
    %285 = vector.broadcast %284 : f32 to vector<16x34xf32>
    %286 = arith.mulf %283, %285 : vector<16x34xf32>
    %287 = arith.addf %270, %286 : vector<16x34xf32>
    %c48 = arith.constant 48 : index
    %288 = memref.load %arg2[%c48] : memref<144xf32, #tpu.memory_space<smem>>
    %289 = vector.broadcast %288 : f32 to vector<16x34xf32>
    %290 = arith.mulf %283, %289 : vector<16x34xf32>
    %291 = arith.addf %274, %290 : vector<16x34xf32>
    %c84 = arith.constant 84 : index
    %292 = memref.load %arg2[%c84] : memref<144xf32, #tpu.memory_space<smem>>
    %293 = vector.broadcast %292 : f32 to vector<16x34xf32>
    %294 = arith.mulf %283, %293 : vector<16x34xf32>
    %295 = arith.addf %278, %294 : vector<16x34xf32>
    %c120 = arith.constant 120 : index
    %296 = memref.load %arg2[%c120] : memref<144xf32, #tpu.memory_space<smem>>
    %297 = vector.broadcast %296 : f32 to vector<16x34xf32>
    %298 = arith.mulf %283, %297 : vector<16x34xf32>
    %299 = arith.addf %282, %298 : vector<16x34xf32>
    %300 = vector.extract_strided_slice %213 {offsets = [1, 0], sizes = [16, 34], strides = [1, 1]} : vector<18x34xf32> to vector<16x34xf32>
    %c13_24 = arith.constant 13 : index
    %301 = memref.load %arg2[%c13_24] : memref<144xf32, #tpu.memory_space<smem>>
    %302 = vector.broadcast %301 : f32 to vector<16x34xf32>
    %303 = arith.mulf %300, %302 : vector<16x34xf32>
    %304 = arith.addf %287, %303 : vector<16x34xf32>
    %c49 = arith.constant 49 : index
    %305 = memref.load %arg2[%c49] : memref<144xf32, #tpu.memory_space<smem>>
    %306 = vector.broadcast %305 : f32 to vector<16x34xf32>
    %307 = arith.mulf %300, %306 : vector<16x34xf32>
    %308 = arith.addf %291, %307 : vector<16x34xf32>
    %c85 = arith.constant 85 : index
    %309 = memref.load %arg2[%c85] : memref<144xf32, #tpu.memory_space<smem>>
    %310 = vector.broadcast %309 : f32 to vector<16x34xf32>
    %311 = arith.mulf %300, %310 : vector<16x34xf32>
    %312 = arith.addf %295, %311 : vector<16x34xf32>
    %c121 = arith.constant 121 : index
    %313 = memref.load %arg2[%c121] : memref<144xf32, #tpu.memory_space<smem>>
    %314 = vector.broadcast %313 : f32 to vector<16x34xf32>
    %315 = arith.mulf %300, %314 : vector<16x34xf32>
    %316 = arith.addf %299, %315 : vector<16x34xf32>
    %317 = vector.extract_strided_slice %214 {offsets = [1, 0], sizes = [16, 34], strides = [1, 1]} : vector<18x34xf32> to vector<16x34xf32>
    %c14 = arith.constant 14 : index
    %318 = memref.load %arg2[%c14] : memref<144xf32, #tpu.memory_space<smem>>
    %319 = vector.broadcast %318 : f32 to vector<16x34xf32>
    %320 = arith.mulf %317, %319 : vector<16x34xf32>
    %321 = arith.addf %304, %320 : vector<16x34xf32>
    %c50 = arith.constant 50 : index
    %322 = memref.load %arg2[%c50] : memref<144xf32, #tpu.memory_space<smem>>
    %323 = vector.broadcast %322 : f32 to vector<16x34xf32>
    %324 = arith.mulf %317, %323 : vector<16x34xf32>
    %325 = arith.addf %308, %324 : vector<16x34xf32>
    %c86 = arith.constant 86 : index
    %326 = memref.load %arg2[%c86] : memref<144xf32, #tpu.memory_space<smem>>
    %327 = vector.broadcast %326 : f32 to vector<16x34xf32>
    %328 = arith.mulf %317, %327 : vector<16x34xf32>
    %329 = arith.addf %312, %328 : vector<16x34xf32>
    %c122 = arith.constant 122 : index
    %330 = memref.load %arg2[%c122] : memref<144xf32, #tpu.memory_space<smem>>
    %331 = vector.broadcast %330 : f32 to vector<16x34xf32>
    %332 = arith.mulf %317, %331 : vector<16x34xf32>
    %333 = arith.addf %316, %332 : vector<16x34xf32>
    %334 = vector.extract_strided_slice %212 {offsets = [2, 0], sizes = [16, 34], strides = [1, 1]} : vector<18x34xf32> to vector<16x34xf32>
    %c15 = arith.constant 15 : index
    %335 = memref.load %arg2[%c15] : memref<144xf32, #tpu.memory_space<smem>>
    %336 = vector.broadcast %335 : f32 to vector<16x34xf32>
    %337 = arith.mulf %334, %336 : vector<16x34xf32>
    %338 = arith.addf %321, %337 : vector<16x34xf32>
    %c51 = arith.constant 51 : index
    %339 = memref.load %arg2[%c51] : memref<144xf32, #tpu.memory_space<smem>>
    %340 = vector.broadcast %339 : f32 to vector<16x34xf32>
    %341 = arith.mulf %334, %340 : vector<16x34xf32>
    %342 = arith.addf %325, %341 : vector<16x34xf32>
    %c87 = arith.constant 87 : index
    %343 = memref.load %arg2[%c87] : memref<144xf32, #tpu.memory_space<smem>>
    %344 = vector.broadcast %343 : f32 to vector<16x34xf32>
    %345 = arith.mulf %334, %344 : vector<16x34xf32>
    %346 = arith.addf %329, %345 : vector<16x34xf32>
    %c123 = arith.constant 123 : index
    %347 = memref.load %arg2[%c123] : memref<144xf32, #tpu.memory_space<smem>>
    %348 = vector.broadcast %347 : f32 to vector<16x34xf32>
    %349 = arith.mulf %334, %348 : vector<16x34xf32>
    %350 = arith.addf %333, %349 : vector<16x34xf32>
    %351 = vector.extract_strided_slice %213 {offsets = [2, 0], sizes = [16, 34], strides = [1, 1]} : vector<18x34xf32> to vector<16x34xf32>
    %c16 = arith.constant 16 : index
    %352 = memref.load %arg2[%c16] : memref<144xf32, #tpu.memory_space<smem>>
    %353 = vector.broadcast %352 : f32 to vector<16x34xf32>
    %354 = arith.mulf %351, %353 : vector<16x34xf32>
    %355 = arith.addf %338, %354 : vector<16x34xf32>
    %c52 = arith.constant 52 : index
    %356 = memref.load %arg2[%c52] : memref<144xf32, #tpu.memory_space<smem>>
    %357 = vector.broadcast %356 : f32 to vector<16x34xf32>
    %358 = arith.mulf %351, %357 : vector<16x34xf32>
    %359 = arith.addf %342, %358 : vector<16x34xf32>
    %c88 = arith.constant 88 : index
    %360 = memref.load %arg2[%c88] : memref<144xf32, #tpu.memory_space<smem>>
    %361 = vector.broadcast %360 : f32 to vector<16x34xf32>
    %362 = arith.mulf %351, %361 : vector<16x34xf32>
    %363 = arith.addf %346, %362 : vector<16x34xf32>
    %c124 = arith.constant 124 : index
    %364 = memref.load %arg2[%c124] : memref<144xf32, #tpu.memory_space<smem>>
    %365 = vector.broadcast %364 : f32 to vector<16x34xf32>
    %366 = arith.mulf %351, %365 : vector<16x34xf32>
    %367 = arith.addf %350, %366 : vector<16x34xf32>
    %368 = vector.extract_strided_slice %214 {offsets = [2, 0], sizes = [16, 34], strides = [1, 1]} : vector<18x34xf32> to vector<16x34xf32>
    %c17 = arith.constant 17 : index
    %369 = memref.load %arg2[%c17] : memref<144xf32, #tpu.memory_space<smem>>
    %370 = vector.broadcast %369 : f32 to vector<16x34xf32>
    %371 = arith.mulf %368, %370 : vector<16x34xf32>
    %372 = arith.addf %355, %371 : vector<16x34xf32>
    %c53 = arith.constant 53 : index
    %373 = memref.load %arg2[%c53] : memref<144xf32, #tpu.memory_space<smem>>
    %374 = vector.broadcast %373 : f32 to vector<16x34xf32>
    %375 = arith.mulf %368, %374 : vector<16x34xf32>
    %376 = arith.addf %359, %375 : vector<16x34xf32>
    %c89 = arith.constant 89 : index
    %377 = memref.load %arg2[%c89] : memref<144xf32, #tpu.memory_space<smem>>
    %378 = vector.broadcast %377 : f32 to vector<16x34xf32>
    %379 = arith.mulf %368, %378 : vector<16x34xf32>
    %380 = arith.addf %363, %379 : vector<16x34xf32>
    %c125 = arith.constant 125 : index
    %381 = memref.load %arg2[%c125] : memref<144xf32, #tpu.memory_space<smem>>
    %382 = vector.broadcast %381 : f32 to vector<16x34xf32>
    %383 = arith.mulf %368, %382 : vector<16x34xf32>
    %384 = arith.addf %367, %383 : vector<16x34xf32>
    %c2_25 = arith.constant 2 : index
    %c0_26 = arith.constant 0 : index
    %c0_27 = arith.constant 0 : index
    %385 = vector.load %arg1[%c2_25, %c0_26, %c0_27] : memref<4x18x36xf32, #tpu.memory_space<vmem>>, vector<1x18x36xf32>
    %386 = vector.shape_cast %385 : vector<1x18x36xf32> to vector<18x36xf32>
    %387 = vector.extract_strided_slice %386 {offsets = [0, 0], sizes = [18, 34], strides = [1, 1]} : vector<18x36xf32> to vector<18x34xf32>
    %388 = vector.extract_strided_slice %386 {offsets = [0, 1], sizes = [18, 34], strides = [1, 1]} : vector<18x36xf32> to vector<18x34xf32>
    %389 = vector.extract_strided_slice %386 {offsets = [0, 2], sizes = [18, 34], strides = [1, 1]} : vector<18x36xf32> to vector<18x34xf32>
    %390 = vector.extract_strided_slice %388 {offsets = [1, 0], sizes = [16, 34], strides = [1, 1]} : vector<18x34xf32> to vector<16x34xf32>
    %c2_28 = arith.constant 2 : index
    %391 = memref.load %arg6[%c2_28] : memref<16xf32, #tpu.memory_space<smem>>
    %392 = vector.broadcast %391 : f32 to vector<16x34xf32>
    %393 = arith.mulf %390, %392 : vector<16x34xf32>
    %394 = arith.addf %219, %393 : vector<16x34xf32>
    %c6_29 = arith.constant 6 : index
    %395 = memref.load %arg6[%c6_29] : memref<16xf32, #tpu.memory_space<smem>>
    %396 = vector.broadcast %395 : f32 to vector<16x34xf32>
    %397 = arith.mulf %390, %396 : vector<16x34xf32>
    %398 = arith.addf %223, %397 : vector<16x34xf32>
    %c10_30 = arith.constant 10 : index
    %399 = memref.load %arg6[%c10_30] : memref<16xf32, #tpu.memory_space<smem>>
    %400 = vector.broadcast %399 : f32 to vector<16x34xf32>
    %401 = arith.mulf %390, %400 : vector<16x34xf32>
    %402 = arith.addf %227, %401 : vector<16x34xf32>
    %c14_31 = arith.constant 14 : index
    %403 = memref.load %arg6[%c14_31] : memref<16xf32, #tpu.memory_space<smem>>
    %404 = vector.broadcast %403 : f32 to vector<16x34xf32>
    %405 = arith.mulf %390, %404 : vector<16x34xf32>
    %406 = arith.addf %231, %405 : vector<16x34xf32>
    %407 = vector.extract_strided_slice %387 {offsets = [0, 0], sizes = [16, 34], strides = [1, 1]} : vector<18x34xf32> to vector<16x34xf32>
    %c18 = arith.constant 18 : index
    %408 = memref.load %arg2[%c18] : memref<144xf32, #tpu.memory_space<smem>>
    %409 = vector.broadcast %408 : f32 to vector<16x34xf32>
    %410 = arith.mulf %407, %409 : vector<16x34xf32>
    %411 = arith.addf %372, %410 : vector<16x34xf32>
    %c54 = arith.constant 54 : index
    %412 = memref.load %arg2[%c54] : memref<144xf32, #tpu.memory_space<smem>>
    %413 = vector.broadcast %412 : f32 to vector<16x34xf32>
    %414 = arith.mulf %407, %413 : vector<16x34xf32>
    %415 = arith.addf %376, %414 : vector<16x34xf32>
    %c90 = arith.constant 90 : index
    %416 = memref.load %arg2[%c90] : memref<144xf32, #tpu.memory_space<smem>>
    %417 = vector.broadcast %416 : f32 to vector<16x34xf32>
    %418 = arith.mulf %407, %417 : vector<16x34xf32>
    %419 = arith.addf %380, %418 : vector<16x34xf32>
    %c126 = arith.constant 126 : index
    %420 = memref.load %arg2[%c126] : memref<144xf32, #tpu.memory_space<smem>>
    %421 = vector.broadcast %420 : f32 to vector<16x34xf32>
    %422 = arith.mulf %407, %421 : vector<16x34xf32>
    %423 = arith.addf %384, %422 : vector<16x34xf32>
    %424 = vector.extract_strided_slice %388 {offsets = [0, 0], sizes = [16, 34], strides = [1, 1]} : vector<18x34xf32> to vector<16x34xf32>
    %c19 = arith.constant 19 : index
    %425 = memref.load %arg2[%c19] : memref<144xf32, #tpu.memory_space<smem>>
    %426 = vector.broadcast %425 : f32 to vector<16x34xf32>
    %427 = arith.mulf %424, %426 : vector<16x34xf32>
    %428 = arith.addf %411, %427 : vector<16x34xf32>
    %c55 = arith.constant 55 : index
    %429 = memref.load %arg2[%c55] : memref<144xf32, #tpu.memory_space<smem>>
    %430 = vector.broadcast %429 : f32 to vector<16x34xf32>
    %431 = arith.mulf %424, %430 : vector<16x34xf32>
    %432 = arith.addf %415, %431 : vector<16x34xf32>
    %c91 = arith.constant 91 : index
    %433 = memref.load %arg2[%c91] : memref<144xf32, #tpu.memory_space<smem>>
    %434 = vector.broadcast %433 : f32 to vector<16x34xf32>
    %435 = arith.mulf %424, %434 : vector<16x34xf32>
    %436 = arith.addf %419, %435 : vector<16x34xf32>
    %c127 = arith.constant 127 : index
    %437 = memref.load %arg2[%c127] : memref<144xf32, #tpu.memory_space<smem>>
    %438 = vector.broadcast %437 : f32 to vector<16x34xf32>
    %439 = arith.mulf %424, %438 : vector<16x34xf32>
    %440 = arith.addf %423, %439 : vector<16x34xf32>
    %441 = vector.extract_strided_slice %389 {offsets = [0, 0], sizes = [16, 34], strides = [1, 1]} : vector<18x34xf32> to vector<16x34xf32>
    %c20 = arith.constant 20 : index
    %442 = memref.load %arg2[%c20] : memref<144xf32, #tpu.memory_space<smem>>
    %443 = vector.broadcast %442 : f32 to vector<16x34xf32>
    %444 = arith.mulf %441, %443 : vector<16x34xf32>
    %445 = arith.addf %428, %444 : vector<16x34xf32>
    %c56 = arith.constant 56 : index
    %446 = memref.load %arg2[%c56] : memref<144xf32, #tpu.memory_space<smem>>
    %447 = vector.broadcast %446 : f32 to vector<16x34xf32>
    %448 = arith.mulf %441, %447 : vector<16x34xf32>
    %449 = arith.addf %432, %448 : vector<16x34xf32>
    %c92 = arith.constant 92 : index
    %450 = memref.load %arg2[%c92] : memref<144xf32, #tpu.memory_space<smem>>
    %451 = vector.broadcast %450 : f32 to vector<16x34xf32>
    %452 = arith.mulf %441, %451 : vector<16x34xf32>
    %453 = arith.addf %436, %452 : vector<16x34xf32>
    %c128 = arith.constant 128 : index
    %454 = memref.load %arg2[%c128] : memref<144xf32, #tpu.memory_space<smem>>
    %455 = vector.broadcast %454 : f32 to vector<16x34xf32>
    %456 = arith.mulf %441, %455 : vector<16x34xf32>
    %457 = arith.addf %440, %456 : vector<16x34xf32>
    %458 = vector.extract_strided_slice %387 {offsets = [1, 0], sizes = [16, 34], strides = [1, 1]} : vector<18x34xf32> to vector<16x34xf32>
    %c21 = arith.constant 21 : index
    %459 = memref.load %arg2[%c21] : memref<144xf32, #tpu.memory_space<smem>>
    %460 = vector.broadcast %459 : f32 to vector<16x34xf32>
    %461 = arith.mulf %458, %460 : vector<16x34xf32>
    %462 = arith.addf %445, %461 : vector<16x34xf32>
    %c57 = arith.constant 57 : index
    %463 = memref.load %arg2[%c57] : memref<144xf32, #tpu.memory_space<smem>>
    %464 = vector.broadcast %463 : f32 to vector<16x34xf32>
    %465 = arith.mulf %458, %464 : vector<16x34xf32>
    %466 = arith.addf %449, %465 : vector<16x34xf32>
    %c93 = arith.constant 93 : index
    %467 = memref.load %arg2[%c93] : memref<144xf32, #tpu.memory_space<smem>>
    %468 = vector.broadcast %467 : f32 to vector<16x34xf32>
    %469 = arith.mulf %458, %468 : vector<16x34xf32>
    %470 = arith.addf %453, %469 : vector<16x34xf32>
    %c129 = arith.constant 129 : index
    %471 = memref.load %arg2[%c129] : memref<144xf32, #tpu.memory_space<smem>>
    %472 = vector.broadcast %471 : f32 to vector<16x34xf32>
    %473 = arith.mulf %458, %472 : vector<16x34xf32>
    %474 = arith.addf %457, %473 : vector<16x34xf32>
    %475 = vector.extract_strided_slice %388 {offsets = [1, 0], sizes = [16, 34], strides = [1, 1]} : vector<18x34xf32> to vector<16x34xf32>
    %c22 = arith.constant 22 : index
    %476 = memref.load %arg2[%c22] : memref<144xf32, #tpu.memory_space<smem>>
    %477 = vector.broadcast %476 : f32 to vector<16x34xf32>
    %478 = arith.mulf %475, %477 : vector<16x34xf32>
    %479 = arith.addf %462, %478 : vector<16x34xf32>
    %c58 = arith.constant 58 : index
    %480 = memref.load %arg2[%c58] : memref<144xf32, #tpu.memory_space<smem>>
    %481 = vector.broadcast %480 : f32 to vector<16x34xf32>
    %482 = arith.mulf %475, %481 : vector<16x34xf32>
    %483 = arith.addf %466, %482 : vector<16x34xf32>
    %c94 = arith.constant 94 : index
    %484 = memref.load %arg2[%c94] : memref<144xf32, #tpu.memory_space<smem>>
    %485 = vector.broadcast %484 : f32 to vector<16x34xf32>
    %486 = arith.mulf %475, %485 : vector<16x34xf32>
    %487 = arith.addf %470, %486 : vector<16x34xf32>
    %c130 = arith.constant 130 : index
    %488 = memref.load %arg2[%c130] : memref<144xf32, #tpu.memory_space<smem>>
    %489 = vector.broadcast %488 : f32 to vector<16x34xf32>
    %490 = arith.mulf %475, %489 : vector<16x34xf32>
    %491 = arith.addf %474, %490 : vector<16x34xf32>
    %492 = vector.extract_strided_slice %389 {offsets = [1, 0], sizes = [16, 34], strides = [1, 1]} : vector<18x34xf32> to vector<16x34xf32>
    %c23 = arith.constant 23 : index
    %493 = memref.load %arg2[%c23] : memref<144xf32, #tpu.memory_space<smem>>
    %494 = vector.broadcast %493 : f32 to vector<16x34xf32>
    %495 = arith.mulf %492, %494 : vector<16x34xf32>
    %496 = arith.addf %479, %495 : vector<16x34xf32>
    %c59 = arith.constant 59 : index
    %497 = memref.load %arg2[%c59] : memref<144xf32, #tpu.memory_space<smem>>
    %498 = vector.broadcast %497 : f32 to vector<16x34xf32>
    %499 = arith.mulf %492, %498 : vector<16x34xf32>
    %500 = arith.addf %483, %499 : vector<16x34xf32>
    %c95 = arith.constant 95 : index
    %501 = memref.load %arg2[%c95] : memref<144xf32, #tpu.memory_space<smem>>
    %502 = vector.broadcast %501 : f32 to vector<16x34xf32>
    %503 = arith.mulf %492, %502 : vector<16x34xf32>
    %504 = arith.addf %487, %503 : vector<16x34xf32>
    %c131 = arith.constant 131 : index
    %505 = memref.load %arg2[%c131] : memref<144xf32, #tpu.memory_space<smem>>
    %506 = vector.broadcast %505 : f32 to vector<16x34xf32>
    %507 = arith.mulf %492, %506 : vector<16x34xf32>
    %508 = arith.addf %491, %507 : vector<16x34xf32>
    %509 = vector.extract_strided_slice %387 {offsets = [2, 0], sizes = [16, 34], strides = [1, 1]} : vector<18x34xf32> to vector<16x34xf32>
    %c24 = arith.constant 24 : index
    %510 = memref.load %arg2[%c24] : memref<144xf32, #tpu.memory_space<smem>>
    %511 = vector.broadcast %510 : f32 to vector<16x34xf32>
    %512 = arith.mulf %509, %511 : vector<16x34xf32>
    %513 = arith.addf %496, %512 : vector<16x34xf32>
    %c60 = arith.constant 60 : index
    %514 = memref.load %arg2[%c60] : memref<144xf32, #tpu.memory_space<smem>>
    %515 = vector.broadcast %514 : f32 to vector<16x34xf32>
    %516 = arith.mulf %509, %515 : vector<16x34xf32>
    %517 = arith.addf %500, %516 : vector<16x34xf32>
    %c96 = arith.constant 96 : index
    %518 = memref.load %arg2[%c96] : memref<144xf32, #tpu.memory_space<smem>>
    %519 = vector.broadcast %518 : f32 to vector<16x34xf32>
    %520 = arith.mulf %509, %519 : vector<16x34xf32>
    %521 = arith.addf %504, %520 : vector<16x34xf32>
    %c132 = arith.constant 132 : index
    %522 = memref.load %arg2[%c132] : memref<144xf32, #tpu.memory_space<smem>>
    %523 = vector.broadcast %522 : f32 to vector<16x34xf32>
    %524 = arith.mulf %509, %523 : vector<16x34xf32>
    %525 = arith.addf %508, %524 : vector<16x34xf32>
    %526 = vector.extract_strided_slice %388 {offsets = [2, 0], sizes = [16, 34], strides = [1, 1]} : vector<18x34xf32> to vector<16x34xf32>
    %c25 = arith.constant 25 : index
    %527 = memref.load %arg2[%c25] : memref<144xf32, #tpu.memory_space<smem>>
    %528 = vector.broadcast %527 : f32 to vector<16x34xf32>
    %529 = arith.mulf %526, %528 : vector<16x34xf32>
    %530 = arith.addf %513, %529 : vector<16x34xf32>
    %c61 = arith.constant 61 : index
    %531 = memref.load %arg2[%c61] : memref<144xf32, #tpu.memory_space<smem>>
    %532 = vector.broadcast %531 : f32 to vector<16x34xf32>
    %533 = arith.mulf %526, %532 : vector<16x34xf32>
    %534 = arith.addf %517, %533 : vector<16x34xf32>
    %c97 = arith.constant 97 : index
    %535 = memref.load %arg2[%c97] : memref<144xf32, #tpu.memory_space<smem>>
    %536 = vector.broadcast %535 : f32 to vector<16x34xf32>
    %537 = arith.mulf %526, %536 : vector<16x34xf32>
    %538 = arith.addf %521, %537 : vector<16x34xf32>
    %c133 = arith.constant 133 : index
    %539 = memref.load %arg2[%c133] : memref<144xf32, #tpu.memory_space<smem>>
    %540 = vector.broadcast %539 : f32 to vector<16x34xf32>
    %541 = arith.mulf %526, %540 : vector<16x34xf32>
    %542 = arith.addf %525, %541 : vector<16x34xf32>
    %543 = vector.extract_strided_slice %389 {offsets = [2, 0], sizes = [16, 34], strides = [1, 1]} : vector<18x34xf32> to vector<16x34xf32>
    %c26 = arith.constant 26 : index
    %544 = memref.load %arg2[%c26] : memref<144xf32, #tpu.memory_space<smem>>
    %545 = vector.broadcast %544 : f32 to vector<16x34xf32>
    %546 = arith.mulf %543, %545 : vector<16x34xf32>
    %547 = arith.addf %530, %546 : vector<16x34xf32>
    %c62 = arith.constant 62 : index
    %548 = memref.load %arg2[%c62] : memref<144xf32, #tpu.memory_space<smem>>
    %549 = vector.broadcast %548 : f32 to vector<16x34xf32>
    %550 = arith.mulf %543, %549 : vector<16x34xf32>
    %551 = arith.addf %534, %550 : vector<16x34xf32>
    %c98 = arith.constant 98 : index
    %552 = memref.load %arg2[%c98] : memref<144xf32, #tpu.memory_space<smem>>
    %553 = vector.broadcast %552 : f32 to vector<16x34xf32>
    %554 = arith.mulf %543, %553 : vector<16x34xf32>
    %555 = arith.addf %538, %554 : vector<16x34xf32>
    %c134 = arith.constant 134 : index
    %556 = memref.load %arg2[%c134] : memref<144xf32, #tpu.memory_space<smem>>
    %557 = vector.broadcast %556 : f32 to vector<16x34xf32>
    %558 = arith.mulf %543, %557 : vector<16x34xf32>
    %559 = arith.addf %542, %558 : vector<16x34xf32>
    %c3_32 = arith.constant 3 : index
    %c0_33 = arith.constant 0 : index
    %c0_34 = arith.constant 0 : index
    %560 = vector.load %arg1[%c3_32, %c0_33, %c0_34] : memref<4x18x36xf32, #tpu.memory_space<vmem>>, vector<1x18x36xf32>
    %561 = vector.shape_cast %560 : vector<1x18x36xf32> to vector<18x36xf32>
    %562 = vector.extract_strided_slice %561 {offsets = [0, 0], sizes = [18, 34], strides = [1, 1]} : vector<18x36xf32> to vector<18x34xf32>
    %563 = vector.extract_strided_slice %561 {offsets = [0, 1], sizes = [18, 34], strides = [1, 1]} : vector<18x36xf32> to vector<18x34xf32>
    %564 = vector.extract_strided_slice %561 {offsets = [0, 2], sizes = [18, 34], strides = [1, 1]} : vector<18x36xf32> to vector<18x34xf32>
    %565 = vector.extract_strided_slice %563 {offsets = [1, 0], sizes = [16, 34], strides = [1, 1]} : vector<18x34xf32> to vector<16x34xf32>
    %c3_35 = arith.constant 3 : index
    %566 = memref.load %arg6[%c3_35] : memref<16xf32, #tpu.memory_space<smem>>
    %567 = vector.broadcast %566 : f32 to vector<16x34xf32>
    %568 = arith.mulf %565, %567 : vector<16x34xf32>
    %569 = arith.addf %394, %568 : vector<16x34xf32>
    %c7_36 = arith.constant 7 : index
    %570 = memref.load %arg6[%c7_36] : memref<16xf32, #tpu.memory_space<smem>>
    %571 = vector.broadcast %570 : f32 to vector<16x34xf32>
    %572 = arith.mulf %565, %571 : vector<16x34xf32>
    %573 = arith.addf %398, %572 : vector<16x34xf32>
    %c11_37 = arith.constant 11 : index
    %574 = memref.load %arg6[%c11_37] : memref<16xf32, #tpu.memory_space<smem>>
    %575 = vector.broadcast %574 : f32 to vector<16x34xf32>
    %576 = arith.mulf %565, %575 : vector<16x34xf32>
    %577 = arith.addf %402, %576 : vector<16x34xf32>
    %c15_38 = arith.constant 15 : index
    %578 = memref.load %arg6[%c15_38] : memref<16xf32, #tpu.memory_space<smem>>
    %579 = vector.broadcast %578 : f32 to vector<16x34xf32>
    %580 = arith.mulf %565, %579 : vector<16x34xf32>
    %581 = arith.addf %406, %580 : vector<16x34xf32>
    %582 = vector.extract_strided_slice %562 {offsets = [0, 0], sizes = [16, 34], strides = [1, 1]} : vector<18x34xf32> to vector<16x34xf32>
    %c27 = arith.constant 27 : index
    %583 = memref.load %arg2[%c27] : memref<144xf32, #tpu.memory_space<smem>>
    %584 = vector.broadcast %583 : f32 to vector<16x34xf32>
    %585 = arith.mulf %582, %584 : vector<16x34xf32>
    %586 = arith.addf %547, %585 : vector<16x34xf32>
    %c63 = arith.constant 63 : index
    %587 = memref.load %arg2[%c63] : memref<144xf32, #tpu.memory_space<smem>>
    %588 = vector.broadcast %587 : f32 to vector<16x34xf32>
    %589 = arith.mulf %582, %588 : vector<16x34xf32>
    %590 = arith.addf %551, %589 : vector<16x34xf32>
    %c99 = arith.constant 99 : index
    %591 = memref.load %arg2[%c99] : memref<144xf32, #tpu.memory_space<smem>>
    %592 = vector.broadcast %591 : f32 to vector<16x34xf32>
    %593 = arith.mulf %582, %592 : vector<16x34xf32>
    %594 = arith.addf %555, %593 : vector<16x34xf32>
    %c135 = arith.constant 135 : index
    %595 = memref.load %arg2[%c135] : memref<144xf32, #tpu.memory_space<smem>>
    %596 = vector.broadcast %595 : f32 to vector<16x34xf32>
    %597 = arith.mulf %582, %596 : vector<16x34xf32>
    %598 = arith.addf %559, %597 : vector<16x34xf32>
    %599 = vector.extract_strided_slice %563 {offsets = [0, 0], sizes = [16, 34], strides = [1, 1]} : vector<18x34xf32> to vector<16x34xf32>
    %c28 = arith.constant 28 : index
    %600 = memref.load %arg2[%c28] : memref<144xf32, #tpu.memory_space<smem>>
    %601 = vector.broadcast %600 : f32 to vector<16x34xf32>
    %602 = arith.mulf %599, %601 : vector<16x34xf32>
    %603 = arith.addf %586, %602 : vector<16x34xf32>
    %c64 = arith.constant 64 : index
    %604 = memref.load %arg2[%c64] : memref<144xf32, #tpu.memory_space<smem>>
    %605 = vector.broadcast %604 : f32 to vector<16x34xf32>
    %606 = arith.mulf %599, %605 : vector<16x34xf32>
    %607 = arith.addf %590, %606 : vector<16x34xf32>
    %c100 = arith.constant 100 : index
    %608 = memref.load %arg2[%c100] : memref<144xf32, #tpu.memory_space<smem>>
    %609 = vector.broadcast %608 : f32 to vector<16x34xf32>
    %610 = arith.mulf %599, %609 : vector<16x34xf32>
    %611 = arith.addf %594, %610 : vector<16x34xf32>
    %c136 = arith.constant 136 : index
    %612 = memref.load %arg2[%c136] : memref<144xf32, #tpu.memory_space<smem>>
    %613 = vector.broadcast %612 : f32 to vector<16x34xf32>
    %614 = arith.mulf %599, %613 : vector<16x34xf32>
    %615 = arith.addf %598, %614 : vector<16x34xf32>
    %616 = vector.extract_strided_slice %564 {offsets = [0, 0], sizes = [16, 34], strides = [1, 1]} : vector<18x34xf32> to vector<16x34xf32>
    %c29 = arith.constant 29 : index
    %617 = memref.load %arg2[%c29] : memref<144xf32, #tpu.memory_space<smem>>
    %618 = vector.broadcast %617 : f32 to vector<16x34xf32>
    %619 = arith.mulf %616, %618 : vector<16x34xf32>
    %620 = arith.addf %603, %619 : vector<16x34xf32>
    %c65 = arith.constant 65 : index
    %621 = memref.load %arg2[%c65] : memref<144xf32, #tpu.memory_space<smem>>
    %622 = vector.broadcast %621 : f32 to vector<16x34xf32>
    %623 = arith.mulf %616, %622 : vector<16x34xf32>
    %624 = arith.addf %607, %623 : vector<16x34xf32>
    %c101 = arith.constant 101 : index
    %625 = memref.load %arg2[%c101] : memref<144xf32, #tpu.memory_space<smem>>
    %626 = vector.broadcast %625 : f32 to vector<16x34xf32>
    %627 = arith.mulf %616, %626 : vector<16x34xf32>
    %628 = arith.addf %611, %627 : vector<16x34xf32>
    %c137 = arith.constant 137 : index
    %629 = memref.load %arg2[%c137] : memref<144xf32, #tpu.memory_space<smem>>
    %630 = vector.broadcast %629 : f32 to vector<16x34xf32>
    %631 = arith.mulf %616, %630 : vector<16x34xf32>
    %632 = arith.addf %615, %631 : vector<16x34xf32>
    %633 = vector.extract_strided_slice %562 {offsets = [1, 0], sizes = [16, 34], strides = [1, 1]} : vector<18x34xf32> to vector<16x34xf32>
    %c30 = arith.constant 30 : index
    %634 = memref.load %arg2[%c30] : memref<144xf32, #tpu.memory_space<smem>>
    %635 = vector.broadcast %634 : f32 to vector<16x34xf32>
    %636 = arith.mulf %633, %635 : vector<16x34xf32>
    %637 = arith.addf %620, %636 : vector<16x34xf32>
    %c66 = arith.constant 66 : index
    %638 = memref.load %arg2[%c66] : memref<144xf32, #tpu.memory_space<smem>>
    %639 = vector.broadcast %638 : f32 to vector<16x34xf32>
    %640 = arith.mulf %633, %639 : vector<16x34xf32>
    %641 = arith.addf %624, %640 : vector<16x34xf32>
    %c102 = arith.constant 102 : index
    %642 = memref.load %arg2[%c102] : memref<144xf32, #tpu.memory_space<smem>>
    %643 = vector.broadcast %642 : f32 to vector<16x34xf32>
    %644 = arith.mulf %633, %643 : vector<16x34xf32>
    %645 = arith.addf %628, %644 : vector<16x34xf32>
    %c138 = arith.constant 138 : index
    %646 = memref.load %arg2[%c138] : memref<144xf32, #tpu.memory_space<smem>>
    %647 = vector.broadcast %646 : f32 to vector<16x34xf32>
    %648 = arith.mulf %633, %647 : vector<16x34xf32>
    %649 = arith.addf %632, %648 : vector<16x34xf32>
    %650 = vector.extract_strided_slice %563 {offsets = [1, 0], sizes = [16, 34], strides = [1, 1]} : vector<18x34xf32> to vector<16x34xf32>
    %c31 = arith.constant 31 : index
    %651 = memref.load %arg2[%c31] : memref<144xf32, #tpu.memory_space<smem>>
    %652 = vector.broadcast %651 : f32 to vector<16x34xf32>
    %653 = arith.mulf %650, %652 : vector<16x34xf32>
    %654 = arith.addf %637, %653 : vector<16x34xf32>
    %c67 = arith.constant 67 : index
    %655 = memref.load %arg2[%c67] : memref<144xf32, #tpu.memory_space<smem>>
    %656 = vector.broadcast %655 : f32 to vector<16x34xf32>
    %657 = arith.mulf %650, %656 : vector<16x34xf32>
    %658 = arith.addf %641, %657 : vector<16x34xf32>
    %c103 = arith.constant 103 : index
    %659 = memref.load %arg2[%c103] : memref<144xf32, #tpu.memory_space<smem>>
    %660 = vector.broadcast %659 : f32 to vector<16x34xf32>
    %661 = arith.mulf %650, %660 : vector<16x34xf32>
    %662 = arith.addf %645, %661 : vector<16x34xf32>
    %c139 = arith.constant 139 : index
    %663 = memref.load %arg2[%c139] : memref<144xf32, #tpu.memory_space<smem>>
    %664 = vector.broadcast %663 : f32 to vector<16x34xf32>
    %665 = arith.mulf %650, %664 : vector<16x34xf32>
    %666 = arith.addf %649, %665 : vector<16x34xf32>
    %667 = vector.extract_strided_slice %564 {offsets = [1, 0], sizes = [16, 34], strides = [1, 1]} : vector<18x34xf32> to vector<16x34xf32>
    %c32 = arith.constant 32 : index
    %668 = memref.load %arg2[%c32] : memref<144xf32, #tpu.memory_space<smem>>
    %669 = vector.broadcast %668 : f32 to vector<16x34xf32>
    %670 = arith.mulf %667, %669 : vector<16x34xf32>
    %671 = arith.addf %654, %670 : vector<16x34xf32>
    %c68 = arith.constant 68 : index
    %672 = memref.load %arg2[%c68] : memref<144xf32, #tpu.memory_space<smem>>
    %673 = vector.broadcast %672 : f32 to vector<16x34xf32>
    %674 = arith.mulf %667, %673 : vector<16x34xf32>
    %675 = arith.addf %658, %674 : vector<16x34xf32>
    %c104 = arith.constant 104 : index
    %676 = memref.load %arg2[%c104] : memref<144xf32, #tpu.memory_space<smem>>
    %677 = vector.broadcast %676 : f32 to vector<16x34xf32>
    %678 = arith.mulf %667, %677 : vector<16x34xf32>
    %679 = arith.addf %662, %678 : vector<16x34xf32>
    %c140 = arith.constant 140 : index
    %680 = memref.load %arg2[%c140] : memref<144xf32, #tpu.memory_space<smem>>
    %681 = vector.broadcast %680 : f32 to vector<16x34xf32>
    %682 = arith.mulf %667, %681 : vector<16x34xf32>
    %683 = arith.addf %666, %682 : vector<16x34xf32>
    %684 = vector.extract_strided_slice %562 {offsets = [2, 0], sizes = [16, 34], strides = [1, 1]} : vector<18x34xf32> to vector<16x34xf32>
    %c33 = arith.constant 33 : index
    %685 = memref.load %arg2[%c33] : memref<144xf32, #tpu.memory_space<smem>>
    %686 = vector.broadcast %685 : f32 to vector<16x34xf32>
    %687 = arith.mulf %684, %686 : vector<16x34xf32>
    %688 = arith.addf %671, %687 : vector<16x34xf32>
    %c69 = arith.constant 69 : index
    %689 = memref.load %arg2[%c69] : memref<144xf32, #tpu.memory_space<smem>>
    %690 = vector.broadcast %689 : f32 to vector<16x34xf32>
    %691 = arith.mulf %684, %690 : vector<16x34xf32>
    %692 = arith.addf %675, %691 : vector<16x34xf32>
    %c105 = arith.constant 105 : index
    %693 = memref.load %arg2[%c105] : memref<144xf32, #tpu.memory_space<smem>>
    %694 = vector.broadcast %693 : f32 to vector<16x34xf32>
    %695 = arith.mulf %684, %694 : vector<16x34xf32>
    %696 = arith.addf %679, %695 : vector<16x34xf32>
    %c141 = arith.constant 141 : index
    %697 = memref.load %arg2[%c141] : memref<144xf32, #tpu.memory_space<smem>>
    %698 = vector.broadcast %697 : f32 to vector<16x34xf32>
    %699 = arith.mulf %684, %698 : vector<16x34xf32>
    %700 = arith.addf %683, %699 : vector<16x34xf32>
    %701 = vector.extract_strided_slice %563 {offsets = [2, 0], sizes = [16, 34], strides = [1, 1]} : vector<18x34xf32> to vector<16x34xf32>
    %c34 = arith.constant 34 : index
    %702 = memref.load %arg2[%c34] : memref<144xf32, #tpu.memory_space<smem>>
    %703 = vector.broadcast %702 : f32 to vector<16x34xf32>
    %704 = arith.mulf %701, %703 : vector<16x34xf32>
    %705 = arith.addf %688, %704 : vector<16x34xf32>
    %c70 = arith.constant 70 : index
    %706 = memref.load %arg2[%c70] : memref<144xf32, #tpu.memory_space<smem>>
    %707 = vector.broadcast %706 : f32 to vector<16x34xf32>
    %708 = arith.mulf %701, %707 : vector<16x34xf32>
    %709 = arith.addf %692, %708 : vector<16x34xf32>
    %c106 = arith.constant 106 : index
    %710 = memref.load %arg2[%c106] : memref<144xf32, #tpu.memory_space<smem>>
    %711 = vector.broadcast %710 : f32 to vector<16x34xf32>
    %712 = arith.mulf %701, %711 : vector<16x34xf32>
    %713 = arith.addf %696, %712 : vector<16x34xf32>
    %c142 = arith.constant 142 : index
    %714 = memref.load %arg2[%c142] : memref<144xf32, #tpu.memory_space<smem>>
    %715 = vector.broadcast %714 : f32 to vector<16x34xf32>
    %716 = arith.mulf %701, %715 : vector<16x34xf32>
    %717 = arith.addf %700, %716 : vector<16x34xf32>
    %718 = vector.extract_strided_slice %564 {offsets = [2, 0], sizes = [16, 34], strides = [1, 1]} : vector<18x34xf32> to vector<16x34xf32>
    %c35 = arith.constant 35 : index
    %719 = memref.load %arg2[%c35] : memref<144xf32, #tpu.memory_space<smem>>
    %720 = vector.broadcast %719 : f32 to vector<16x34xf32>
    %721 = arith.mulf %718, %720 : vector<16x34xf32>
    %722 = arith.addf %705, %721 : vector<16x34xf32>
    %c71 = arith.constant 71 : index
    %723 = memref.load %arg2[%c71] : memref<144xf32, #tpu.memory_space<smem>>
    %724 = vector.broadcast %723 : f32 to vector<16x34xf32>
    %725 = arith.mulf %718, %724 : vector<16x34xf32>
    %726 = arith.addf %709, %725 : vector<16x34xf32>
    %c107 = arith.constant 107 : index
    %727 = memref.load %arg2[%c107] : memref<144xf32, #tpu.memory_space<smem>>
    %728 = vector.broadcast %727 : f32 to vector<16x34xf32>
    %729 = arith.mulf %718, %728 : vector<16x34xf32>
    %730 = arith.addf %713, %729 : vector<16x34xf32>
    %c143 = arith.constant 143 : index
    %731 = memref.load %arg2[%c143] : memref<144xf32, #tpu.memory_space<smem>>
    %732 = vector.broadcast %731 : f32 to vector<16x34xf32>
    %733 = arith.mulf %718, %732 : vector<16x34xf32>
    %734 = arith.addf %717, %733 : vector<16x34xf32>
    %cst = arith.constant 0.000000e+00 : f32
    %735 = vector.broadcast %cst : f32 to vector<1x36xf32>
    %cst_39 = arith.constant 0.000000e+00 : f32
    %736 = vector.broadcast %cst_39 : f32 to vector<16x1xf32>
    %cst_40 = arith.constant 0.000000e+00 : f32
    %737 = vector.broadcast %cst_40 : f32 to vector<16x34xf32>
    %738 = arith.maximumf %722, %737 : vector<16x34xf32>
    %cst_41 = arith.constant 0.000000e+00 : f32
    %739 = vector.broadcast %cst_41 : f32 to vector<16x34xf32>
    %740 = arith.select %18, %738, %739 : vector<16x34xi1>, vector<16x34xf32>
    %741 = tpu.concatenate %736, %740, %736 in 1 : vector<16x1xf32>, vector<16x34xf32>, vector<16x1xf32> -> vector<16x36xf32>
    %742 = tpu.concatenate %735, %741, %735 in 0 : vector<1x36xf32>, vector<16x36xf32>, vector<1x36xf32> -> vector<18x36xf32>
    %cst_42 = arith.constant 0.000000e+00 : f32
    %743 = vector.broadcast %cst_42 : f32 to vector<16x34xf32>
    %744 = arith.maximumf %726, %743 : vector<16x34xf32>
    %cst_43 = arith.constant 0.000000e+00 : f32
    %745 = vector.broadcast %cst_43 : f32 to vector<16x34xf32>
    %746 = arith.select %18, %744, %745 : vector<16x34xi1>, vector<16x34xf32>
    %747 = tpu.concatenate %736, %746, %736 in 1 : vector<16x1xf32>, vector<16x34xf32>, vector<16x1xf32> -> vector<16x36xf32>
    %748 = tpu.concatenate %735, %747, %735 in 0 : vector<1x36xf32>, vector<16x36xf32>, vector<1x36xf32> -> vector<18x36xf32>
    %cst_44 = arith.constant 0.000000e+00 : f32
    %749 = vector.broadcast %cst_44 : f32 to vector<16x34xf32>
    %750 = arith.maximumf %730, %749 : vector<16x34xf32>
    %cst_45 = arith.constant 0.000000e+00 : f32
    %751 = vector.broadcast %cst_45 : f32 to vector<16x34xf32>
    %752 = arith.select %18, %750, %751 : vector<16x34xi1>, vector<16x34xf32>
    %753 = tpu.concatenate %736, %752, %736 in 1 : vector<16x1xf32>, vector<16x34xf32>, vector<16x1xf32> -> vector<16x36xf32>
    %754 = tpu.concatenate %735, %753, %735 in 0 : vector<1x36xf32>, vector<16x36xf32>, vector<1x36xf32> -> vector<18x36xf32>
    %cst_46 = arith.constant 0.000000e+00 : f32
    %755 = vector.broadcast %cst_46 : f32 to vector<16x34xf32>
    %756 = arith.maximumf %734, %755 : vector<16x34xf32>
    %cst_47 = arith.constant 0.000000e+00 : f32
    %757 = vector.broadcast %cst_47 : f32 to vector<16x34xf32>
    %758 = arith.select %18, %756, %757 : vector<16x34xi1>, vector<16x34xf32>
    %759 = tpu.concatenate %736, %758, %736 in 1 : vector<16x1xf32>, vector<16x34xf32>, vector<16x1xf32> -> vector<16x36xf32>
    %760 = tpu.concatenate %735, %759, %735 in 0 : vector<1x36xf32>, vector<16x36xf32>, vector<1x36xf32> -> vector<18x36xf32>
    %761 = vector.extract_strided_slice %742 {offsets = [0, 0], sizes = [18, 34], strides = [1, 1]} : vector<18x36xf32> to vector<18x34xf32>
    %762 = vector.extract_strided_slice %742 {offsets = [0, 1], sizes = [18, 34], strides = [1, 1]} : vector<18x36xf32> to vector<18x34xf32>
    %763 = vector.extract_strided_slice %742 {offsets = [0, 2], sizes = [18, 34], strides = [1, 1]} : vector<18x36xf32> to vector<18x34xf32>
    %764 = vector.extract_strided_slice %761 {offsets = [0, 0], sizes = [16, 34], strides = [1, 1]} : vector<18x34xf32> to vector<16x34xf32>
    %c0_48 = arith.constant 0 : index
    %765 = memref.load %arg4[%c0_48] : memref<144xf32, #tpu.memory_space<smem>>
    %766 = vector.broadcast %765 : f32 to vector<16x34xf32>
    %767 = arith.mulf %764, %766 : vector<16x34xf32>
    %768 = arith.addf %569, %767 : vector<16x34xf32>
    %c36_49 = arith.constant 36 : index
    %769 = memref.load %arg4[%c36_49] : memref<144xf32, #tpu.memory_space<smem>>
    %770 = vector.broadcast %769 : f32 to vector<16x34xf32>
    %771 = arith.mulf %764, %770 : vector<16x34xf32>
    %772 = arith.addf %573, %771 : vector<16x34xf32>
    %c72_50 = arith.constant 72 : index
    %773 = memref.load %arg4[%c72_50] : memref<144xf32, #tpu.memory_space<smem>>
    %774 = vector.broadcast %773 : f32 to vector<16x34xf32>
    %775 = arith.mulf %764, %774 : vector<16x34xf32>
    %776 = arith.addf %577, %775 : vector<16x34xf32>
    %c108_51 = arith.constant 108 : index
    %777 = memref.load %arg4[%c108_51] : memref<144xf32, #tpu.memory_space<smem>>
    %778 = vector.broadcast %777 : f32 to vector<16x34xf32>
    %779 = arith.mulf %764, %778 : vector<16x34xf32>
    %780 = arith.addf %581, %779 : vector<16x34xf32>
    %781 = vector.extract_strided_slice %762 {offsets = [0, 0], sizes = [16, 34], strides = [1, 1]} : vector<18x34xf32> to vector<16x34xf32>
    %c1_52 = arith.constant 1 : index
    %782 = memref.load %arg4[%c1_52] : memref<144xf32, #tpu.memory_space<smem>>
    %783 = vector.broadcast %782 : f32 to vector<16x34xf32>
    %784 = arith.mulf %781, %783 : vector<16x34xf32>
    %785 = arith.addf %768, %784 : vector<16x34xf32>
    %c37_53 = arith.constant 37 : index
    %786 = memref.load %arg4[%c37_53] : memref<144xf32, #tpu.memory_space<smem>>
    %787 = vector.broadcast %786 : f32 to vector<16x34xf32>
    %788 = arith.mulf %781, %787 : vector<16x34xf32>
    %789 = arith.addf %772, %788 : vector<16x34xf32>
    %c73_54 = arith.constant 73 : index
    %790 = memref.load %arg4[%c73_54] : memref<144xf32, #tpu.memory_space<smem>>
    %791 = vector.broadcast %790 : f32 to vector<16x34xf32>
    %792 = arith.mulf %781, %791 : vector<16x34xf32>
    %793 = arith.addf %776, %792 : vector<16x34xf32>
    %c109_55 = arith.constant 109 : index
    %794 = memref.load %arg4[%c109_55] : memref<144xf32, #tpu.memory_space<smem>>
    %795 = vector.broadcast %794 : f32 to vector<16x34xf32>
    %796 = arith.mulf %781, %795 : vector<16x34xf32>
    %797 = arith.addf %780, %796 : vector<16x34xf32>
    %798 = vector.extract_strided_slice %763 {offsets = [0, 0], sizes = [16, 34], strides = [1, 1]} : vector<18x34xf32> to vector<16x34xf32>
    %c2_56 = arith.constant 2 : index
    %799 = memref.load %arg4[%c2_56] : memref<144xf32, #tpu.memory_space<smem>>
    %800 = vector.broadcast %799 : f32 to vector<16x34xf32>
    %801 = arith.mulf %798, %800 : vector<16x34xf32>
    %802 = arith.addf %785, %801 : vector<16x34xf32>
    %c38_57 = arith.constant 38 : index
    %803 = memref.load %arg4[%c38_57] : memref<144xf32, #tpu.memory_space<smem>>
    %804 = vector.broadcast %803 : f32 to vector<16x34xf32>
    %805 = arith.mulf %798, %804 : vector<16x34xf32>
    %806 = arith.addf %789, %805 : vector<16x34xf32>
    %c74_58 = arith.constant 74 : index
    %807 = memref.load %arg4[%c74_58] : memref<144xf32, #tpu.memory_space<smem>>
    %808 = vector.broadcast %807 : f32 to vector<16x34xf32>
    %809 = arith.mulf %798, %808 : vector<16x34xf32>
    %810 = arith.addf %793, %809 : vector<16x34xf32>
    %c110_59 = arith.constant 110 : index
    %811 = memref.load %arg4[%c110_59] : memref<144xf32, #tpu.memory_space<smem>>
    %812 = vector.broadcast %811 : f32 to vector<16x34xf32>
    %813 = arith.mulf %798, %812 : vector<16x34xf32>
    %814 = arith.addf %797, %813 : vector<16x34xf32>
    %815 = vector.extract_strided_slice %761 {offsets = [1, 0], sizes = [16, 34], strides = [1, 1]} : vector<18x34xf32> to vector<16x34xf32>
    %c3_60 = arith.constant 3 : index
    %816 = memref.load %arg4[%c3_60] : memref<144xf32, #tpu.memory_space<smem>>
    %817 = vector.broadcast %816 : f32 to vector<16x34xf32>
    %818 = arith.mulf %815, %817 : vector<16x34xf32>
    %819 = arith.addf %802, %818 : vector<16x34xf32>
    %c39_61 = arith.constant 39 : index
    %820 = memref.load %arg4[%c39_61] : memref<144xf32, #tpu.memory_space<smem>>
    %821 = vector.broadcast %820 : f32 to vector<16x34xf32>
    %822 = arith.mulf %815, %821 : vector<16x34xf32>
    %823 = arith.addf %806, %822 : vector<16x34xf32>
    %c75_62 = arith.constant 75 : index
    %824 = memref.load %arg4[%c75_62] : memref<144xf32, #tpu.memory_space<smem>>
    %825 = vector.broadcast %824 : f32 to vector<16x34xf32>
    %826 = arith.mulf %815, %825 : vector<16x34xf32>
    %827 = arith.addf %810, %826 : vector<16x34xf32>
    %c111_63 = arith.constant 111 : index
    %828 = memref.load %arg4[%c111_63] : memref<144xf32, #tpu.memory_space<smem>>
    %829 = vector.broadcast %828 : f32 to vector<16x34xf32>
    %830 = arith.mulf %815, %829 : vector<16x34xf32>
    %831 = arith.addf %814, %830 : vector<16x34xf32>
    %832 = vector.extract_strided_slice %762 {offsets = [1, 0], sizes = [16, 34], strides = [1, 1]} : vector<18x34xf32> to vector<16x34xf32>
    %c4_64 = arith.constant 4 : index
    %833 = memref.load %arg4[%c4_64] : memref<144xf32, #tpu.memory_space<smem>>
    %834 = vector.broadcast %833 : f32 to vector<16x34xf32>
    %835 = arith.mulf %832, %834 : vector<16x34xf32>
    %836 = arith.addf %819, %835 : vector<16x34xf32>
    %c40_65 = arith.constant 40 : index
    %837 = memref.load %arg4[%c40_65] : memref<144xf32, #tpu.memory_space<smem>>
    %838 = vector.broadcast %837 : f32 to vector<16x34xf32>
    %839 = arith.mulf %832, %838 : vector<16x34xf32>
    %840 = arith.addf %823, %839 : vector<16x34xf32>
    %c76_66 = arith.constant 76 : index
    %841 = memref.load %arg4[%c76_66] : memref<144xf32, #tpu.memory_space<smem>>
    %842 = vector.broadcast %841 : f32 to vector<16x34xf32>
    %843 = arith.mulf %832, %842 : vector<16x34xf32>
    %844 = arith.addf %827, %843 : vector<16x34xf32>
    %c112_67 = arith.constant 112 : index
    %845 = memref.load %arg4[%c112_67] : memref<144xf32, #tpu.memory_space<smem>>
    %846 = vector.broadcast %845 : f32 to vector<16x34xf32>
    %847 = arith.mulf %832, %846 : vector<16x34xf32>
    %848 = arith.addf %831, %847 : vector<16x34xf32>
    %849 = vector.extract_strided_slice %763 {offsets = [1, 0], sizes = [16, 34], strides = [1, 1]} : vector<18x34xf32> to vector<16x34xf32>
    %c5_68 = arith.constant 5 : index
    %850 = memref.load %arg4[%c5_68] : memref<144xf32, #tpu.memory_space<smem>>
    %851 = vector.broadcast %850 : f32 to vector<16x34xf32>
    %852 = arith.mulf %849, %851 : vector<16x34xf32>
    %853 = arith.addf %836, %852 : vector<16x34xf32>
    %c41_69 = arith.constant 41 : index
    %854 = memref.load %arg4[%c41_69] : memref<144xf32, #tpu.memory_space<smem>>
    %855 = vector.broadcast %854 : f32 to vector<16x34xf32>
    %856 = arith.mulf %849, %855 : vector<16x34xf32>
    %857 = arith.addf %840, %856 : vector<16x34xf32>
    %c77_70 = arith.constant 77 : index
    %858 = memref.load %arg4[%c77_70] : memref<144xf32, #tpu.memory_space<smem>>
    %859 = vector.broadcast %858 : f32 to vector<16x34xf32>
    %860 = arith.mulf %849, %859 : vector<16x34xf32>
    %861 = arith.addf %844, %860 : vector<16x34xf32>
    %c113_71 = arith.constant 113 : index
    %862 = memref.load %arg4[%c113_71] : memref<144xf32, #tpu.memory_space<smem>>
    %863 = vector.broadcast %862 : f32 to vector<16x34xf32>
    %864 = arith.mulf %849, %863 : vector<16x34xf32>
    %865 = arith.addf %848, %864 : vector<16x34xf32>
    %866 = vector.extract_strided_slice %761 {offsets = [2, 0], sizes = [16, 34], strides = [1, 1]} : vector<18x34xf32> to vector<16x34xf32>
    %c6_72 = arith.constant 6 : index
    %867 = memref.load %arg4[%c6_72] : memref<144xf32, #tpu.memory_space<smem>>
    %868 = vector.broadcast %867 : f32 to vector<16x34xf32>
    %869 = arith.mulf %866, %868 : vector<16x34xf32>
    %870 = arith.addf %853, %869 : vector<16x34xf32>
    %c42_73 = arith.constant 42 : index
    %871 = memref.load %arg4[%c42_73] : memref<144xf32, #tpu.memory_space<smem>>
    %872 = vector.broadcast %871 : f32 to vector<16x34xf32>
    %873 = arith.mulf %866, %872 : vector<16x34xf32>
    %874 = arith.addf %857, %873 : vector<16x34xf32>
    %c78_74 = arith.constant 78 : index
    %875 = memref.load %arg4[%c78_74] : memref<144xf32, #tpu.memory_space<smem>>
    %876 = vector.broadcast %875 : f32 to vector<16x34xf32>
    %877 = arith.mulf %866, %876 : vector<16x34xf32>
    %878 = arith.addf %861, %877 : vector<16x34xf32>
    %c114_75 = arith.constant 114 : index
    %879 = memref.load %arg4[%c114_75] : memref<144xf32, #tpu.memory_space<smem>>
    %880 = vector.broadcast %879 : f32 to vector<16x34xf32>
    %881 = arith.mulf %866, %880 : vector<16x34xf32>
    %882 = arith.addf %865, %881 : vector<16x34xf32>
    %883 = vector.extract_strided_slice %762 {offsets = [2, 0], sizes = [16, 34], strides = [1, 1]} : vector<18x34xf32> to vector<16x34xf32>
    %c7_76 = arith.constant 7 : index
    %884 = memref.load %arg4[%c7_76] : memref<144xf32, #tpu.memory_space<smem>>
    %885 = vector.broadcast %884 : f32 to vector<16x34xf32>
    %886 = arith.mulf %883, %885 : vector<16x34xf32>
    %887 = arith.addf %870, %886 : vector<16x34xf32>
    %c43_77 = arith.constant 43 : index
    %888 = memref.load %arg4[%c43_77] : memref<144xf32, #tpu.memory_space<smem>>
    %889 = vector.broadcast %888 : f32 to vector<16x34xf32>
    %890 = arith.mulf %883, %889 : vector<16x34xf32>
    %891 = arith.addf %874, %890 : vector<16x34xf32>
    %c79_78 = arith.constant 79 : index
    %892 = memref.load %arg4[%c79_78] : memref<144xf32, #tpu.memory_space<smem>>
    %893 = vector.broadcast %892 : f32 to vector<16x34xf32>
    %894 = arith.mulf %883, %893 : vector<16x34xf32>
    %895 = arith.addf %878, %894 : vector<16x34xf32>
    %c115_79 = arith.constant 115 : index
    %896 = memref.load %arg4[%c115_79] : memref<144xf32, #tpu.memory_space<smem>>
    %897 = vector.broadcast %896 : f32 to vector<16x34xf32>
    %898 = arith.mulf %883, %897 : vector<16x34xf32>
    %899 = arith.addf %882, %898 : vector<16x34xf32>
    %900 = vector.extract_strided_slice %763 {offsets = [2, 0], sizes = [16, 34], strides = [1, 1]} : vector<18x34xf32> to vector<16x34xf32>
    %c8_80 = arith.constant 8 : index
    %901 = memref.load %arg4[%c8_80] : memref<144xf32, #tpu.memory_space<smem>>
    %902 = vector.broadcast %901 : f32 to vector<16x34xf32>
    %903 = arith.mulf %900, %902 : vector<16x34xf32>
    %904 = arith.addf %887, %903 : vector<16x34xf32>
    %c44_81 = arith.constant 44 : index
    %905 = memref.load %arg4[%c44_81] : memref<144xf32, #tpu.memory_space<smem>>
    %906 = vector.broadcast %905 : f32 to vector<16x34xf32>
    %907 = arith.mulf %900, %906 : vector<16x34xf32>
    %908 = arith.addf %891, %907 : vector<16x34xf32>
    %c80_82 = arith.constant 80 : index
    %909 = memref.load %arg4[%c80_82] : memref<144xf32, #tpu.memory_space<smem>>
    %910 = vector.broadcast %909 : f32 to vector<16x34xf32>
    %911 = arith.mulf %900, %910 : vector<16x34xf32>
    %912 = arith.addf %895, %911 : vector<16x34xf32>
    %c116_83 = arith.constant 116 : index
    %913 = memref.load %arg4[%c116_83] : memref<144xf32, #tpu.memory_space<smem>>
    %914 = vector.broadcast %913 : f32 to vector<16x34xf32>
    %915 = arith.mulf %900, %914 : vector<16x34xf32>
    %916 = arith.addf %899, %915 : vector<16x34xf32>
    %917 = vector.extract_strided_slice %748 {offsets = [0, 0], sizes = [18, 34], strides = [1, 1]} : vector<18x36xf32> to vector<18x34xf32>
    %918 = vector.extract_strided_slice %748 {offsets = [0, 1], sizes = [18, 34], strides = [1, 1]} : vector<18x36xf32> to vector<18x34xf32>
    %919 = vector.extract_strided_slice %748 {offsets = [0, 2], sizes = [18, 34], strides = [1, 1]} : vector<18x36xf32> to vector<18x34xf32>
    %920 = vector.extract_strided_slice %917 {offsets = [0, 0], sizes = [16, 34], strides = [1, 1]} : vector<18x34xf32> to vector<16x34xf32>
    %c9_84 = arith.constant 9 : index
    %921 = memref.load %arg4[%c9_84] : memref<144xf32, #tpu.memory_space<smem>>
    %922 = vector.broadcast %921 : f32 to vector<16x34xf32>
    %923 = arith.mulf %920, %922 : vector<16x34xf32>
    %924 = arith.addf %904, %923 : vector<16x34xf32>
    %c45_85 = arith.constant 45 : index
    %925 = memref.load %arg4[%c45_85] : memref<144xf32, #tpu.memory_space<smem>>
    %926 = vector.broadcast %925 : f32 to vector<16x34xf32>
    %927 = arith.mulf %920, %926 : vector<16x34xf32>
    %928 = arith.addf %908, %927 : vector<16x34xf32>
    %c81_86 = arith.constant 81 : index
    %929 = memref.load %arg4[%c81_86] : memref<144xf32, #tpu.memory_space<smem>>
    %930 = vector.broadcast %929 : f32 to vector<16x34xf32>
    %931 = arith.mulf %920, %930 : vector<16x34xf32>
    %932 = arith.addf %912, %931 : vector<16x34xf32>
    %c117_87 = arith.constant 117 : index
    %933 = memref.load %arg4[%c117_87] : memref<144xf32, #tpu.memory_space<smem>>
    %934 = vector.broadcast %933 : f32 to vector<16x34xf32>
    %935 = arith.mulf %920, %934 : vector<16x34xf32>
    %936 = arith.addf %916, %935 : vector<16x34xf32>
    %937 = vector.extract_strided_slice %918 {offsets = [0, 0], sizes = [16, 34], strides = [1, 1]} : vector<18x34xf32> to vector<16x34xf32>
    %c10_88 = arith.constant 10 : index
    %938 = memref.load %arg4[%c10_88] : memref<144xf32, #tpu.memory_space<smem>>
    %939 = vector.broadcast %938 : f32 to vector<16x34xf32>
    %940 = arith.mulf %937, %939 : vector<16x34xf32>
    %941 = arith.addf %924, %940 : vector<16x34xf32>
    %c46_89 = arith.constant 46 : index
    %942 = memref.load %arg4[%c46_89] : memref<144xf32, #tpu.memory_space<smem>>
    %943 = vector.broadcast %942 : f32 to vector<16x34xf32>
    %944 = arith.mulf %937, %943 : vector<16x34xf32>
    %945 = arith.addf %928, %944 : vector<16x34xf32>
    %c82_90 = arith.constant 82 : index
    %946 = memref.load %arg4[%c82_90] : memref<144xf32, #tpu.memory_space<smem>>
    %947 = vector.broadcast %946 : f32 to vector<16x34xf32>
    %948 = arith.mulf %937, %947 : vector<16x34xf32>
    %949 = arith.addf %932, %948 : vector<16x34xf32>
    %c118_91 = arith.constant 118 : index
    %950 = memref.load %arg4[%c118_91] : memref<144xf32, #tpu.memory_space<smem>>
    %951 = vector.broadcast %950 : f32 to vector<16x34xf32>
    %952 = arith.mulf %937, %951 : vector<16x34xf32>
    %953 = arith.addf %936, %952 : vector<16x34xf32>
    %954 = vector.extract_strided_slice %919 {offsets = [0, 0], sizes = [16, 34], strides = [1, 1]} : vector<18x34xf32> to vector<16x34xf32>
    %c11_92 = arith.constant 11 : index
    %955 = memref.load %arg4[%c11_92] : memref<144xf32, #tpu.memory_space<smem>>
    %956 = vector.broadcast %955 : f32 to vector<16x34xf32>
    %957 = arith.mulf %954, %956 : vector<16x34xf32>
    %958 = arith.addf %941, %957 : vector<16x34xf32>
    %c47_93 = arith.constant 47 : index
    %959 = memref.load %arg4[%c47_93] : memref<144xf32, #tpu.memory_space<smem>>
    %960 = vector.broadcast %959 : f32 to vector<16x34xf32>
    %961 = arith.mulf %954, %960 : vector<16x34xf32>
    %962 = arith.addf %945, %961 : vector<16x34xf32>
    %c83_94 = arith.constant 83 : index
    %963 = memref.load %arg4[%c83_94] : memref<144xf32, #tpu.memory_space<smem>>
    %964 = vector.broadcast %963 : f32 to vector<16x34xf32>
    %965 = arith.mulf %954, %964 : vector<16x34xf32>
    %966 = arith.addf %949, %965 : vector<16x34xf32>
    %c119_95 = arith.constant 119 : index
    %967 = memref.load %arg4[%c119_95] : memref<144xf32, #tpu.memory_space<smem>>
    %968 = vector.broadcast %967 : f32 to vector<16x34xf32>
    %969 = arith.mulf %954, %968 : vector<16x34xf32>
    %970 = arith.addf %953, %969 : vector<16x34xf32>
    %971 = vector.extract_strided_slice %917 {offsets = [1, 0], sizes = [16, 34], strides = [1, 1]} : vector<18x34xf32> to vector<16x34xf32>
    %c12_96 = arith.constant 12 : index
    %972 = memref.load %arg4[%c12_96] : memref<144xf32, #tpu.memory_space<smem>>
    %973 = vector.broadcast %972 : f32 to vector<16x34xf32>
    %974 = arith.mulf %971, %973 : vector<16x34xf32>
    %975 = arith.addf %958, %974 : vector<16x34xf32>
    %c48_97 = arith.constant 48 : index
    %976 = memref.load %arg4[%c48_97] : memref<144xf32, #tpu.memory_space<smem>>
    %977 = vector.broadcast %976 : f32 to vector<16x34xf32>
    %978 = arith.mulf %971, %977 : vector<16x34xf32>
    %979 = arith.addf %962, %978 : vector<16x34xf32>
    %c84_98 = arith.constant 84 : index
    %980 = memref.load %arg4[%c84_98] : memref<144xf32, #tpu.memory_space<smem>>
    %981 = vector.broadcast %980 : f32 to vector<16x34xf32>
    %982 = arith.mulf %971, %981 : vector<16x34xf32>
    %983 = arith.addf %966, %982 : vector<16x34xf32>
    %c120_99 = arith.constant 120 : index
    %984 = memref.load %arg4[%c120_99] : memref<144xf32, #tpu.memory_space<smem>>
    %985 = vector.broadcast %984 : f32 to vector<16x34xf32>
    %986 = arith.mulf %971, %985 : vector<16x34xf32>
    %987 = arith.addf %970, %986 : vector<16x34xf32>
    %988 = vector.extract_strided_slice %918 {offsets = [1, 0], sizes = [16, 34], strides = [1, 1]} : vector<18x34xf32> to vector<16x34xf32>
    %c13_100 = arith.constant 13 : index
    %989 = memref.load %arg4[%c13_100] : memref<144xf32, #tpu.memory_space<smem>>
    %990 = vector.broadcast %989 : f32 to vector<16x34xf32>
    %991 = arith.mulf %988, %990 : vector<16x34xf32>
    %992 = arith.addf %975, %991 : vector<16x34xf32>
    %c49_101 = arith.constant 49 : index
    %993 = memref.load %arg4[%c49_101] : memref<144xf32, #tpu.memory_space<smem>>
    %994 = vector.broadcast %993 : f32 to vector<16x34xf32>
    %995 = arith.mulf %988, %994 : vector<16x34xf32>
    %996 = arith.addf %979, %995 : vector<16x34xf32>
    %c85_102 = arith.constant 85 : index
    %997 = memref.load %arg4[%c85_102] : memref<144xf32, #tpu.memory_space<smem>>
    %998 = vector.broadcast %997 : f32 to vector<16x34xf32>
    %999 = arith.mulf %988, %998 : vector<16x34xf32>
    %1000 = arith.addf %983, %999 : vector<16x34xf32>
    %c121_103 = arith.constant 121 : index
    %1001 = memref.load %arg4[%c121_103] : memref<144xf32, #tpu.memory_space<smem>>
    %1002 = vector.broadcast %1001 : f32 to vector<16x34xf32>
    %1003 = arith.mulf %988, %1002 : vector<16x34xf32>
    %1004 = arith.addf %987, %1003 : vector<16x34xf32>
    %1005 = vector.extract_strided_slice %919 {offsets = [1, 0], sizes = [16, 34], strides = [1, 1]} : vector<18x34xf32> to vector<16x34xf32>
    %c14_104 = arith.constant 14 : index
    %1006 = memref.load %arg4[%c14_104] : memref<144xf32, #tpu.memory_space<smem>>
    %1007 = vector.broadcast %1006 : f32 to vector<16x34xf32>
    %1008 = arith.mulf %1005, %1007 : vector<16x34xf32>
    %1009 = arith.addf %992, %1008 : vector<16x34xf32>
    %c50_105 = arith.constant 50 : index
    %1010 = memref.load %arg4[%c50_105] : memref<144xf32, #tpu.memory_space<smem>>
    %1011 = vector.broadcast %1010 : f32 to vector<16x34xf32>
    %1012 = arith.mulf %1005, %1011 : vector<16x34xf32>
    %1013 = arith.addf %996, %1012 : vector<16x34xf32>
    %c86_106 = arith.constant 86 : index
    %1014 = memref.load %arg4[%c86_106] : memref<144xf32, #tpu.memory_space<smem>>
    %1015 = vector.broadcast %1014 : f32 to vector<16x34xf32>
    %1016 = arith.mulf %1005, %1015 : vector<16x34xf32>
    %1017 = arith.addf %1000, %1016 : vector<16x34xf32>
    %c122_107 = arith.constant 122 : index
    %1018 = memref.load %arg4[%c122_107] : memref<144xf32, #tpu.memory_space<smem>>
    %1019 = vector.broadcast %1018 : f32 to vector<16x34xf32>
    %1020 = arith.mulf %1005, %1019 : vector<16x34xf32>
    %1021 = arith.addf %1004, %1020 : vector<16x34xf32>
    %1022 = vector.extract_strided_slice %917 {offsets = [2, 0], sizes = [16, 34], strides = [1, 1]} : vector<18x34xf32> to vector<16x34xf32>
    %c15_108 = arith.constant 15 : index
    %1023 = memref.load %arg4[%c15_108] : memref<144xf32, #tpu.memory_space<smem>>
    %1024 = vector.broadcast %1023 : f32 to vector<16x34xf32>
    %1025 = arith.mulf %1022, %1024 : vector<16x34xf32>
    %1026 = arith.addf %1009, %1025 : vector<16x34xf32>
    %c51_109 = arith.constant 51 : index
    %1027 = memref.load %arg4[%c51_109] : memref<144xf32, #tpu.memory_space<smem>>
    %1028 = vector.broadcast %1027 : f32 to vector<16x34xf32>
    %1029 = arith.mulf %1022, %1028 : vector<16x34xf32>
    %1030 = arith.addf %1013, %1029 : vector<16x34xf32>
    %c87_110 = arith.constant 87 : index
    %1031 = memref.load %arg4[%c87_110] : memref<144xf32, #tpu.memory_space<smem>>
    %1032 = vector.broadcast %1031 : f32 to vector<16x34xf32>
    %1033 = arith.mulf %1022, %1032 : vector<16x34xf32>
    %1034 = arith.addf %1017, %1033 : vector<16x34xf32>
    %c123_111 = arith.constant 123 : index
    %1035 = memref.load %arg4[%c123_111] : memref<144xf32, #tpu.memory_space<smem>>
    %1036 = vector.broadcast %1035 : f32 to vector<16x34xf32>
    %1037 = arith.mulf %1022, %1036 : vector<16x34xf32>
    %1038 = arith.addf %1021, %1037 : vector<16x34xf32>
    %1039 = vector.extract_strided_slice %918 {offsets = [2, 0], sizes = [16, 34], strides = [1, 1]} : vector<18x34xf32> to vector<16x34xf32>
    %c16_112 = arith.constant 16 : index
    %1040 = memref.load %arg4[%c16_112] : memref<144xf32, #tpu.memory_space<smem>>
    %1041 = vector.broadcast %1040 : f32 to vector<16x34xf32>
    %1042 = arith.mulf %1039, %1041 : vector<16x34xf32>
    %1043 = arith.addf %1026, %1042 : vector<16x34xf32>
    %c52_113 = arith.constant 52 : index
    %1044 = memref.load %arg4[%c52_113] : memref<144xf32, #tpu.memory_space<smem>>
    %1045 = vector.broadcast %1044 : f32 to vector<16x34xf32>
    %1046 = arith.mulf %1039, %1045 : vector<16x34xf32>
    %1047 = arith.addf %1030, %1046 : vector<16x34xf32>
    %c88_114 = arith.constant 88 : index
    %1048 = memref.load %arg4[%c88_114] : memref<144xf32, #tpu.memory_space<smem>>
    %1049 = vector.broadcast %1048 : f32 to vector<16x34xf32>
    %1050 = arith.mulf %1039, %1049 : vector<16x34xf32>
    %1051 = arith.addf %1034, %1050 : vector<16x34xf32>
    %c124_115 = arith.constant 124 : index
    %1052 = memref.load %arg4[%c124_115] : memref<144xf32, #tpu.memory_space<smem>>
    %1053 = vector.broadcast %1052 : f32 to vector<16x34xf32>
    %1054 = arith.mulf %1039, %1053 : vector<16x34xf32>
    %1055 = arith.addf %1038, %1054 : vector<16x34xf32>
    %1056 = vector.extract_strided_slice %919 {offsets = [2, 0], sizes = [16, 34], strides = [1, 1]} : vector<18x34xf32> to vector<16x34xf32>
    %c17_116 = arith.constant 17 : index
    %1057 = memref.load %arg4[%c17_116] : memref<144xf32, #tpu.memory_space<smem>>
    %1058 = vector.broadcast %1057 : f32 to vector<16x34xf32>
    %1059 = arith.mulf %1056, %1058 : vector<16x34xf32>
    %1060 = arith.addf %1043, %1059 : vector<16x34xf32>
    %c53_117 = arith.constant 53 : index
    %1061 = memref.load %arg4[%c53_117] : memref<144xf32, #tpu.memory_space<smem>>
    %1062 = vector.broadcast %1061 : f32 to vector<16x34xf32>
    %1063 = arith.mulf %1056, %1062 : vector<16x34xf32>
    %1064 = arith.addf %1047, %1063 : vector<16x34xf32>
    %c89_118 = arith.constant 89 : index
    %1065 = memref.load %arg4[%c89_118] : memref<144xf32, #tpu.memory_space<smem>>
    %1066 = vector.broadcast %1065 : f32 to vector<16x34xf32>
    %1067 = arith.mulf %1056, %1066 : vector<16x34xf32>
    %1068 = arith.addf %1051, %1067 : vector<16x34xf32>
    %c125_119 = arith.constant 125 : index
    %1069 = memref.load %arg4[%c125_119] : memref<144xf32, #tpu.memory_space<smem>>
    %1070 = vector.broadcast %1069 : f32 to vector<16x34xf32>
    %1071 = arith.mulf %1056, %1070 : vector<16x34xf32>
    %1072 = arith.addf %1055, %1071 : vector<16x34xf32>
    %1073 = vector.extract_strided_slice %754 {offsets = [0, 0], sizes = [18, 34], strides = [1, 1]} : vector<18x36xf32> to vector<18x34xf32>
    %1074 = vector.extract_strided_slice %754 {offsets = [0, 1], sizes = [18, 34], strides = [1, 1]} : vector<18x36xf32> to vector<18x34xf32>
    %1075 = vector.extract_strided_slice %754 {offsets = [0, 2], sizes = [18, 34], strides = [1, 1]} : vector<18x36xf32> to vector<18x34xf32>
    %1076 = vector.extract_strided_slice %1073 {offsets = [0, 0], sizes = [16, 34], strides = [1, 1]} : vector<18x34xf32> to vector<16x34xf32>
    %c18_120 = arith.constant 18 : index
    %1077 = memref.load %arg4[%c18_120] : memref<144xf32, #tpu.memory_space<smem>>
    %1078 = vector.broadcast %1077 : f32 to vector<16x34xf32>
    %1079 = arith.mulf %1076, %1078 : vector<16x34xf32>
    %1080 = arith.addf %1060, %1079 : vector<16x34xf32>
    %c54_121 = arith.constant 54 : index
    %1081 = memref.load %arg4[%c54_121] : memref<144xf32, #tpu.memory_space<smem>>
    %1082 = vector.broadcast %1081 : f32 to vector<16x34xf32>
    %1083 = arith.mulf %1076, %1082 : vector<16x34xf32>
    %1084 = arith.addf %1064, %1083 : vector<16x34xf32>
    %c90_122 = arith.constant 90 : index
    %1085 = memref.load %arg4[%c90_122] : memref<144xf32, #tpu.memory_space<smem>>
    %1086 = vector.broadcast %1085 : f32 to vector<16x34xf32>
    %1087 = arith.mulf %1076, %1086 : vector<16x34xf32>
    %1088 = arith.addf %1068, %1087 : vector<16x34xf32>
    %c126_123 = arith.constant 126 : index
    %1089 = memref.load %arg4[%c126_123] : memref<144xf32, #tpu.memory_space<smem>>
    %1090 = vector.broadcast %1089 : f32 to vector<16x34xf32>
    %1091 = arith.mulf %1076, %1090 : vector<16x34xf32>
    %1092 = arith.addf %1072, %1091 : vector<16x34xf32>
    %1093 = vector.extract_strided_slice %1074 {offsets = [0, 0], sizes = [16, 34], strides = [1, 1]} : vector<18x34xf32> to vector<16x34xf32>
    %c19_124 = arith.constant 19 : index
    %1094 = memref.load %arg4[%c19_124] : memref<144xf32, #tpu.memory_space<smem>>
    %1095 = vector.broadcast %1094 : f32 to vector<16x34xf32>
    %1096 = arith.mulf %1093, %1095 : vector<16x34xf32>
    %1097 = arith.addf %1080, %1096 : vector<16x34xf32>
    %c55_125 = arith.constant 55 : index
    %1098 = memref.load %arg4[%c55_125] : memref<144xf32, #tpu.memory_space<smem>>
    %1099 = vector.broadcast %1098 : f32 to vector<16x34xf32>
    %1100 = arith.mulf %1093, %1099 : vector<16x34xf32>
    %1101 = arith.addf %1084, %1100 : vector<16x34xf32>
    %c91_126 = arith.constant 91 : index
    %1102 = memref.load %arg4[%c91_126] : memref<144xf32, #tpu.memory_space<smem>>
    %1103 = vector.broadcast %1102 : f32 to vector<16x34xf32>
    %1104 = arith.mulf %1093, %1103 : vector<16x34xf32>
    %1105 = arith.addf %1088, %1104 : vector<16x34xf32>
    %c127_127 = arith.constant 127 : index
    %1106 = memref.load %arg4[%c127_127] : memref<144xf32, #tpu.memory_space<smem>>
    %1107 = vector.broadcast %1106 : f32 to vector<16x34xf32>
    %1108 = arith.mulf %1093, %1107 : vector<16x34xf32>
    %1109 = arith.addf %1092, %1108 : vector<16x34xf32>
    %1110 = vector.extract_strided_slice %1075 {offsets = [0, 0], sizes = [16, 34], strides = [1, 1]} : vector<18x34xf32> to vector<16x34xf32>
    %c20_128 = arith.constant 20 : index
    %1111 = memref.load %arg4[%c20_128] : memref<144xf32, #tpu.memory_space<smem>>
    %1112 = vector.broadcast %1111 : f32 to vector<16x34xf32>
    %1113 = arith.mulf %1110, %1112 : vector<16x34xf32>
    %1114 = arith.addf %1097, %1113 : vector<16x34xf32>
    %c56_129 = arith.constant 56 : index
    %1115 = memref.load %arg4[%c56_129] : memref<144xf32, #tpu.memory_space<smem>>
    %1116 = vector.broadcast %1115 : f32 to vector<16x34xf32>
    %1117 = arith.mulf %1110, %1116 : vector<16x34xf32>
    %1118 = arith.addf %1101, %1117 : vector<16x34xf32>
    %c92_130 = arith.constant 92 : index
    %1119 = memref.load %arg4[%c92_130] : memref<144xf32, #tpu.memory_space<smem>>
    %1120 = vector.broadcast %1119 : f32 to vector<16x34xf32>
    %1121 = arith.mulf %1110, %1120 : vector<16x34xf32>
    %1122 = arith.addf %1105, %1121 : vector<16x34xf32>
    %c128_131 = arith.constant 128 : index
    %1123 = memref.load %arg4[%c128_131] : memref<144xf32, #tpu.memory_space<smem>>
    %1124 = vector.broadcast %1123 : f32 to vector<16x34xf32>
    %1125 = arith.mulf %1110, %1124 : vector<16x34xf32>
    %1126 = arith.addf %1109, %1125 : vector<16x34xf32>
    %1127 = vector.extract_strided_slice %1073 {offsets = [1, 0], sizes = [16, 34], strides = [1, 1]} : vector<18x34xf32> to vector<16x34xf32>
    %c21_132 = arith.constant 21 : index
    %1128 = memref.load %arg4[%c21_132] : memref<144xf32, #tpu.memory_space<smem>>
    %1129 = vector.broadcast %1128 : f32 to vector<16x34xf32>
    %1130 = arith.mulf %1127, %1129 : vector<16x34xf32>
    %1131 = arith.addf %1114, %1130 : vector<16x34xf32>
    %c57_133 = arith.constant 57 : index
    %1132 = memref.load %arg4[%c57_133] : memref<144xf32, #tpu.memory_space<smem>>
    %1133 = vector.broadcast %1132 : f32 to vector<16x34xf32>
    %1134 = arith.mulf %1127, %1133 : vector<16x34xf32>
    %1135 = arith.addf %1118, %1134 : vector<16x34xf32>
    %c93_134 = arith.constant 93 : index
    %1136 = memref.load %arg4[%c93_134] : memref<144xf32, #tpu.memory_space<smem>>
    %1137 = vector.broadcast %1136 : f32 to vector<16x34xf32>
    %1138 = arith.mulf %1127, %1137 : vector<16x34xf32>
    %1139 = arith.addf %1122, %1138 : vector<16x34xf32>
    %c129_135 = arith.constant 129 : index
    %1140 = memref.load %arg4[%c129_135] : memref<144xf32, #tpu.memory_space<smem>>
    %1141 = vector.broadcast %1140 : f32 to vector<16x34xf32>
    %1142 = arith.mulf %1127, %1141 : vector<16x34xf32>
    %1143 = arith.addf %1126, %1142 : vector<16x34xf32>
    %1144 = vector.extract_strided_slice %1074 {offsets = [1, 0], sizes = [16, 34], strides = [1, 1]} : vector<18x34xf32> to vector<16x34xf32>
    %c22_136 = arith.constant 22 : index
    %1145 = memref.load %arg4[%c22_136] : memref<144xf32, #tpu.memory_space<smem>>
    %1146 = vector.broadcast %1145 : f32 to vector<16x34xf32>
    %1147 = arith.mulf %1144, %1146 : vector<16x34xf32>
    %1148 = arith.addf %1131, %1147 : vector<16x34xf32>
    %c58_137 = arith.constant 58 : index
    %1149 = memref.load %arg4[%c58_137] : memref<144xf32, #tpu.memory_space<smem>>
    %1150 = vector.broadcast %1149 : f32 to vector<16x34xf32>
    %1151 = arith.mulf %1144, %1150 : vector<16x34xf32>
    %1152 = arith.addf %1135, %1151 : vector<16x34xf32>
    %c94_138 = arith.constant 94 : index
    %1153 = memref.load %arg4[%c94_138] : memref<144xf32, #tpu.memory_space<smem>>
    %1154 = vector.broadcast %1153 : f32 to vector<16x34xf32>
    %1155 = arith.mulf %1144, %1154 : vector<16x34xf32>
    %1156 = arith.addf %1139, %1155 : vector<16x34xf32>
    %c130_139 = arith.constant 130 : index
    %1157 = memref.load %arg4[%c130_139] : memref<144xf32, #tpu.memory_space<smem>>
    %1158 = vector.broadcast %1157 : f32 to vector<16x34xf32>
    %1159 = arith.mulf %1144, %1158 : vector<16x34xf32>
    %1160 = arith.addf %1143, %1159 : vector<16x34xf32>
    %1161 = vector.extract_strided_slice %1075 {offsets = [1, 0], sizes = [16, 34], strides = [1, 1]} : vector<18x34xf32> to vector<16x34xf32>
    %c23_140 = arith.constant 23 : index
    %1162 = memref.load %arg4[%c23_140] : memref<144xf32, #tpu.memory_space<smem>>
    %1163 = vector.broadcast %1162 : f32 to vector<16x34xf32>
    %1164 = arith.mulf %1161, %1163 : vector<16x34xf32>
    %1165 = arith.addf %1148, %1164 : vector<16x34xf32>
    %c59_141 = arith.constant 59 : index
    %1166 = memref.load %arg4[%c59_141] : memref<144xf32, #tpu.memory_space<smem>>
    %1167 = vector.broadcast %1166 : f32 to vector<16x34xf32>
    %1168 = arith.mulf %1161, %1167 : vector<16x34xf32>
    %1169 = arith.addf %1152, %1168 : vector<16x34xf32>
    %c95_142 = arith.constant 95 : index
    %1170 = memref.load %arg4[%c95_142] : memref<144xf32, #tpu.memory_space<smem>>
    %1171 = vector.broadcast %1170 : f32 to vector<16x34xf32>
    %1172 = arith.mulf %1161, %1171 : vector<16x34xf32>
    %1173 = arith.addf %1156, %1172 : vector<16x34xf32>
    %c131_143 = arith.constant 131 : index
    %1174 = memref.load %arg4[%c131_143] : memref<144xf32, #tpu.memory_space<smem>>
    %1175 = vector.broadcast %1174 : f32 to vector<16x34xf32>
    %1176 = arith.mulf %1161, %1175 : vector<16x34xf32>
    %1177 = arith.addf %1160, %1176 : vector<16x34xf32>
    %1178 = vector.extract_strided_slice %1073 {offsets = [2, 0], sizes = [16, 34], strides = [1, 1]} : vector<18x34xf32> to vector<16x34xf32>
    %c24_144 = arith.constant 24 : index
    %1179 = memref.load %arg4[%c24_144] : memref<144xf32, #tpu.memory_space<smem>>
    %1180 = vector.broadcast %1179 : f32 to vector<16x34xf32>
    %1181 = arith.mulf %1178, %1180 : vector<16x34xf32>
    %1182 = arith.addf %1165, %1181 : vector<16x34xf32>
    %c60_145 = arith.constant 60 : index
    %1183 = memref.load %arg4[%c60_145] : memref<144xf32, #tpu.memory_space<smem>>
    %1184 = vector.broadcast %1183 : f32 to vector<16x34xf32>
    %1185 = arith.mulf %1178, %1184 : vector<16x34xf32>
    %1186 = arith.addf %1169, %1185 : vector<16x34xf32>
    %c96_146 = arith.constant 96 : index
    %1187 = memref.load %arg4[%c96_146] : memref<144xf32, #tpu.memory_space<smem>>
    %1188 = vector.broadcast %1187 : f32 to vector<16x34xf32>
    %1189 = arith.mulf %1178, %1188 : vector<16x34xf32>
    %1190 = arith.addf %1173, %1189 : vector<16x34xf32>
    %c132_147 = arith.constant 132 : index
    %1191 = memref.load %arg4[%c132_147] : memref<144xf32, #tpu.memory_space<smem>>
    %1192 = vector.broadcast %1191 : f32 to vector<16x34xf32>
    %1193 = arith.mulf %1178, %1192 : vector<16x34xf32>
    %1194 = arith.addf %1177, %1193 : vector<16x34xf32>
    %1195 = vector.extract_strided_slice %1074 {offsets = [2, 0], sizes = [16, 34], strides = [1, 1]} : vector<18x34xf32> to vector<16x34xf32>
    %c25_148 = arith.constant 25 : index
    %1196 = memref.load %arg4[%c25_148] : memref<144xf32, #tpu.memory_space<smem>>
    %1197 = vector.broadcast %1196 : f32 to vector<16x34xf32>
    %1198 = arith.mulf %1195, %1197 : vector<16x34xf32>
    %1199 = arith.addf %1182, %1198 : vector<16x34xf32>
    %c61_149 = arith.constant 61 : index
    %1200 = memref.load %arg4[%c61_149] : memref<144xf32, #tpu.memory_space<smem>>
    %1201 = vector.broadcast %1200 : f32 to vector<16x34xf32>
    %1202 = arith.mulf %1195, %1201 : vector<16x34xf32>
    %1203 = arith.addf %1186, %1202 : vector<16x34xf32>
    %c97_150 = arith.constant 97 : index
    %1204 = memref.load %arg4[%c97_150] : memref<144xf32, #tpu.memory_space<smem>>
    %1205 = vector.broadcast %1204 : f32 to vector<16x34xf32>
    %1206 = arith.mulf %1195, %1205 : vector<16x34xf32>
    %1207 = arith.addf %1190, %1206 : vector<16x34xf32>
    %c133_151 = arith.constant 133 : index
    %1208 = memref.load %arg4[%c133_151] : memref<144xf32, #tpu.memory_space<smem>>
    %1209 = vector.broadcast %1208 : f32 to vector<16x34xf32>
    %1210 = arith.mulf %1195, %1209 : vector<16x34xf32>
    %1211 = arith.addf %1194, %1210 : vector<16x34xf32>
    %1212 = vector.extract_strided_slice %1075 {offsets = [2, 0], sizes = [16, 34], strides = [1, 1]} : vector<18x34xf32> to vector<16x34xf32>
    %c26_152 = arith.constant 26 : index
    %1213 = memref.load %arg4[%c26_152] : memref<144xf32, #tpu.memory_space<smem>>
    %1214 = vector.broadcast %1213 : f32 to vector<16x34xf32>
    %1215 = arith.mulf %1212, %1214 : vector<16x34xf32>
    %1216 = arith.addf %1199, %1215 : vector<16x34xf32>
    %c62_153 = arith.constant 62 : index
    %1217 = memref.load %arg4[%c62_153] : memref<144xf32, #tpu.memory_space<smem>>
    %1218 = vector.broadcast %1217 : f32 to vector<16x34xf32>
    %1219 = arith.mulf %1212, %1218 : vector<16x34xf32>
    %1220 = arith.addf %1203, %1219 : vector<16x34xf32>
    %c98_154 = arith.constant 98 : index
    %1221 = memref.load %arg4[%c98_154] : memref<144xf32, #tpu.memory_space<smem>>
    %1222 = vector.broadcast %1221 : f32 to vector<16x34xf32>
    %1223 = arith.mulf %1212, %1222 : vector<16x34xf32>
    %1224 = arith.addf %1207, %1223 : vector<16x34xf32>
    %c134_155 = arith.constant 134 : index
    %1225 = memref.load %arg4[%c134_155] : memref<144xf32, #tpu.memory_space<smem>>
    %1226 = vector.broadcast %1225 : f32 to vector<16x34xf32>
    %1227 = arith.mulf %1212, %1226 : vector<16x34xf32>
    %1228 = arith.addf %1211, %1227 : vector<16x34xf32>
    %1229 = vector.extract_strided_slice %760 {offsets = [0, 0], sizes = [18, 34], strides = [1, 1]} : vector<18x36xf32> to vector<18x34xf32>
    %1230 = vector.extract_strided_slice %760 {offsets = [0, 1], sizes = [18, 34], strides = [1, 1]} : vector<18x36xf32> to vector<18x34xf32>
    %1231 = vector.extract_strided_slice %760 {offsets = [0, 2], sizes = [18, 34], strides = [1, 1]} : vector<18x36xf32> to vector<18x34xf32>
    %1232 = vector.extract_strided_slice %1229 {offsets = [0, 0], sizes = [16, 34], strides = [1, 1]} : vector<18x34xf32> to vector<16x34xf32>
    %c27_156 = arith.constant 27 : index
    %1233 = memref.load %arg4[%c27_156] : memref<144xf32, #tpu.memory_space<smem>>
    %1234 = vector.broadcast %1233 : f32 to vector<16x34xf32>
    %1235 = arith.mulf %1232, %1234 : vector<16x34xf32>
    %1236 = arith.addf %1216, %1235 : vector<16x34xf32>
    %c63_157 = arith.constant 63 : index
    %1237 = memref.load %arg4[%c63_157] : memref<144xf32, #tpu.memory_space<smem>>
    %1238 = vector.broadcast %1237 : f32 to vector<16x34xf32>
    %1239 = arith.mulf %1232, %1238 : vector<16x34xf32>
    %1240 = arith.addf %1220, %1239 : vector<16x34xf32>
    %c99_158 = arith.constant 99 : index
    %1241 = memref.load %arg4[%c99_158] : memref<144xf32, #tpu.memory_space<smem>>
    %1242 = vector.broadcast %1241 : f32 to vector<16x34xf32>
    %1243 = arith.mulf %1232, %1242 : vector<16x34xf32>
    %1244 = arith.addf %1224, %1243 : vector<16x34xf32>
    %c135_159 = arith.constant 135 : index
    %1245 = memref.load %arg4[%c135_159] : memref<144xf32, #tpu.memory_space<smem>>
    %1246 = vector.broadcast %1245 : f32 to vector<16x34xf32>
    %1247 = arith.mulf %1232, %1246 : vector<16x34xf32>
    %1248 = arith.addf %1228, %1247 : vector<16x34xf32>
    %1249 = vector.extract_strided_slice %1230 {offsets = [0, 0], sizes = [16, 34], strides = [1, 1]} : vector<18x34xf32> to vector<16x34xf32>
    %c28_160 = arith.constant 28 : index
    %1250 = memref.load %arg4[%c28_160] : memref<144xf32, #tpu.memory_space<smem>>
    %1251 = vector.broadcast %1250 : f32 to vector<16x34xf32>
    %1252 = arith.mulf %1249, %1251 : vector<16x34xf32>
    %1253 = arith.addf %1236, %1252 : vector<16x34xf32>
    %c64_161 = arith.constant 64 : index
    %1254 = memref.load %arg4[%c64_161] : memref<144xf32, #tpu.memory_space<smem>>
    %1255 = vector.broadcast %1254 : f32 to vector<16x34xf32>
    %1256 = arith.mulf %1249, %1255 : vector<16x34xf32>
    %1257 = arith.addf %1240, %1256 : vector<16x34xf32>
    %c100_162 = arith.constant 100 : index
    %1258 = memref.load %arg4[%c100_162] : memref<144xf32, #tpu.memory_space<smem>>
    %1259 = vector.broadcast %1258 : f32 to vector<16x34xf32>
    %1260 = arith.mulf %1249, %1259 : vector<16x34xf32>
    %1261 = arith.addf %1244, %1260 : vector<16x34xf32>
    %c136_163 = arith.constant 136 : index
    %1262 = memref.load %arg4[%c136_163] : memref<144xf32, #tpu.memory_space<smem>>
    %1263 = vector.broadcast %1262 : f32 to vector<16x34xf32>
    %1264 = arith.mulf %1249, %1263 : vector<16x34xf32>
    %1265 = arith.addf %1248, %1264 : vector<16x34xf32>
    %1266 = vector.extract_strided_slice %1231 {offsets = [0, 0], sizes = [16, 34], strides = [1, 1]} : vector<18x34xf32> to vector<16x34xf32>
    %c29_164 = arith.constant 29 : index
    %1267 = memref.load %arg4[%c29_164] : memref<144xf32, #tpu.memory_space<smem>>
    %1268 = vector.broadcast %1267 : f32 to vector<16x34xf32>
    %1269 = arith.mulf %1266, %1268 : vector<16x34xf32>
    %1270 = arith.addf %1253, %1269 : vector<16x34xf32>
    %c65_165 = arith.constant 65 : index
    %1271 = memref.load %arg4[%c65_165] : memref<144xf32, #tpu.memory_space<smem>>
    %1272 = vector.broadcast %1271 : f32 to vector<16x34xf32>
    %1273 = arith.mulf %1266, %1272 : vector<16x34xf32>
    %1274 = arith.addf %1257, %1273 : vector<16x34xf32>
    %c101_166 = arith.constant 101 : index
    %1275 = memref.load %arg4[%c101_166] : memref<144xf32, #tpu.memory_space<smem>>
    %1276 = vector.broadcast %1275 : f32 to vector<16x34xf32>
    %1277 = arith.mulf %1266, %1276 : vector<16x34xf32>
    %1278 = arith.addf %1261, %1277 : vector<16x34xf32>
    %c137_167 = arith.constant 137 : index
    %1279 = memref.load %arg4[%c137_167] : memref<144xf32, #tpu.memory_space<smem>>
    %1280 = vector.broadcast %1279 : f32 to vector<16x34xf32>
    %1281 = arith.mulf %1266, %1280 : vector<16x34xf32>
    %1282 = arith.addf %1265, %1281 : vector<16x34xf32>
    %1283 = vector.extract_strided_slice %1229 {offsets = [1, 0], sizes = [16, 34], strides = [1, 1]} : vector<18x34xf32> to vector<16x34xf32>
    %c30_168 = arith.constant 30 : index
    %1284 = memref.load %arg4[%c30_168] : memref<144xf32, #tpu.memory_space<smem>>
    %1285 = vector.broadcast %1284 : f32 to vector<16x34xf32>
    %1286 = arith.mulf %1283, %1285 : vector<16x34xf32>
    %1287 = arith.addf %1270, %1286 : vector<16x34xf32>
    %c66_169 = arith.constant 66 : index
    %1288 = memref.load %arg4[%c66_169] : memref<144xf32, #tpu.memory_space<smem>>
    %1289 = vector.broadcast %1288 : f32 to vector<16x34xf32>
    %1290 = arith.mulf %1283, %1289 : vector<16x34xf32>
    %1291 = arith.addf %1274, %1290 : vector<16x34xf32>
    %c102_170 = arith.constant 102 : index
    %1292 = memref.load %arg4[%c102_170] : memref<144xf32, #tpu.memory_space<smem>>
    %1293 = vector.broadcast %1292 : f32 to vector<16x34xf32>
    %1294 = arith.mulf %1283, %1293 : vector<16x34xf32>
    %1295 = arith.addf %1278, %1294 : vector<16x34xf32>
    %c138_171 = arith.constant 138 : index
    %1296 = memref.load %arg4[%c138_171] : memref<144xf32, #tpu.memory_space<smem>>
    %1297 = vector.broadcast %1296 : f32 to vector<16x34xf32>
    %1298 = arith.mulf %1283, %1297 : vector<16x34xf32>
    %1299 = arith.addf %1282, %1298 : vector<16x34xf32>
    %1300 = vector.extract_strided_slice %1230 {offsets = [1, 0], sizes = [16, 34], strides = [1, 1]} : vector<18x34xf32> to vector<16x34xf32>
    %c31_172 = arith.constant 31 : index
    %1301 = memref.load %arg4[%c31_172] : memref<144xf32, #tpu.memory_space<smem>>
    %1302 = vector.broadcast %1301 : f32 to vector<16x34xf32>
    %1303 = arith.mulf %1300, %1302 : vector<16x34xf32>
    %1304 = arith.addf %1287, %1303 : vector<16x34xf32>
    %c67_173 = arith.constant 67 : index
    %1305 = memref.load %arg4[%c67_173] : memref<144xf32, #tpu.memory_space<smem>>
    %1306 = vector.broadcast %1305 : f32 to vector<16x34xf32>
    %1307 = arith.mulf %1300, %1306 : vector<16x34xf32>
    %1308 = arith.addf %1291, %1307 : vector<16x34xf32>
    %c103_174 = arith.constant 103 : index
    %1309 = memref.load %arg4[%c103_174] : memref<144xf32, #tpu.memory_space<smem>>
    %1310 = vector.broadcast %1309 : f32 to vector<16x34xf32>
    %1311 = arith.mulf %1300, %1310 : vector<16x34xf32>
    %1312 = arith.addf %1295, %1311 : vector<16x34xf32>
    %c139_175 = arith.constant 139 : index
    %1313 = memref.load %arg4[%c139_175] : memref<144xf32, #tpu.memory_space<smem>>
    %1314 = vector.broadcast %1313 : f32 to vector<16x34xf32>
    %1315 = arith.mulf %1300, %1314 : vector<16x34xf32>
    %1316 = arith.addf %1299, %1315 : vector<16x34xf32>
    %1317 = vector.extract_strided_slice %1231 {offsets = [1, 0], sizes = [16, 34], strides = [1, 1]} : vector<18x34xf32> to vector<16x34xf32>
    %c32_176 = arith.constant 32 : index
    %1318 = memref.load %arg4[%c32_176] : memref<144xf32, #tpu.memory_space<smem>>
    %1319 = vector.broadcast %1318 : f32 to vector<16x34xf32>
    %1320 = arith.mulf %1317, %1319 : vector<16x34xf32>
    %1321 = arith.addf %1304, %1320 : vector<16x34xf32>
    %c68_177 = arith.constant 68 : index
    %1322 = memref.load %arg4[%c68_177] : memref<144xf32, #tpu.memory_space<smem>>
    %1323 = vector.broadcast %1322 : f32 to vector<16x34xf32>
    %1324 = arith.mulf %1317, %1323 : vector<16x34xf32>
    %1325 = arith.addf %1308, %1324 : vector<16x34xf32>
    %c104_178 = arith.constant 104 : index
    %1326 = memref.load %arg4[%c104_178] : memref<144xf32, #tpu.memory_space<smem>>
    %1327 = vector.broadcast %1326 : f32 to vector<16x34xf32>
    %1328 = arith.mulf %1317, %1327 : vector<16x34xf32>
    %1329 = arith.addf %1312, %1328 : vector<16x34xf32>
    %c140_179 = arith.constant 140 : index
    %1330 = memref.load %arg4[%c140_179] : memref<144xf32, #tpu.memory_space<smem>>
    %1331 = vector.broadcast %1330 : f32 to vector<16x34xf32>
    %1332 = arith.mulf %1317, %1331 : vector<16x34xf32>
    %1333 = arith.addf %1316, %1332 : vector<16x34xf32>
    %1334 = vector.extract_strided_slice %1229 {offsets = [2, 0], sizes = [16, 34], strides = [1, 1]} : vector<18x34xf32> to vector<16x34xf32>
    %c33_180 = arith.constant 33 : index
    %1335 = memref.load %arg4[%c33_180] : memref<144xf32, #tpu.memory_space<smem>>
    %1336 = vector.broadcast %1335 : f32 to vector<16x34xf32>
    %1337 = arith.mulf %1334, %1336 : vector<16x34xf32>
    %1338 = arith.addf %1321, %1337 : vector<16x34xf32>
    %c69_181 = arith.constant 69 : index
    %1339 = memref.load %arg4[%c69_181] : memref<144xf32, #tpu.memory_space<smem>>
    %1340 = vector.broadcast %1339 : f32 to vector<16x34xf32>
    %1341 = arith.mulf %1334, %1340 : vector<16x34xf32>
    %1342 = arith.addf %1325, %1341 : vector<16x34xf32>
    %c105_182 = arith.constant 105 : index
    %1343 = memref.load %arg4[%c105_182] : memref<144xf32, #tpu.memory_space<smem>>
    %1344 = vector.broadcast %1343 : f32 to vector<16x34xf32>
    %1345 = arith.mulf %1334, %1344 : vector<16x34xf32>
    %1346 = arith.addf %1329, %1345 : vector<16x34xf32>
    %c141_183 = arith.constant 141 : index
    %1347 = memref.load %arg4[%c141_183] : memref<144xf32, #tpu.memory_space<smem>>
    %1348 = vector.broadcast %1347 : f32 to vector<16x34xf32>
    %1349 = arith.mulf %1334, %1348 : vector<16x34xf32>
    %1350 = arith.addf %1333, %1349 : vector<16x34xf32>
    %1351 = vector.extract_strided_slice %1230 {offsets = [2, 0], sizes = [16, 34], strides = [1, 1]} : vector<18x34xf32> to vector<16x34xf32>
    %c34_184 = arith.constant 34 : index
    %1352 = memref.load %arg4[%c34_184] : memref<144xf32, #tpu.memory_space<smem>>
    %1353 = vector.broadcast %1352 : f32 to vector<16x34xf32>
    %1354 = arith.mulf %1351, %1353 : vector<16x34xf32>
    %1355 = arith.addf %1338, %1354 : vector<16x34xf32>
    %c70_185 = arith.constant 70 : index
    %1356 = memref.load %arg4[%c70_185] : memref<144xf32, #tpu.memory_space<smem>>
    %1357 = vector.broadcast %1356 : f32 to vector<16x34xf32>
    %1358 = arith.mulf %1351, %1357 : vector<16x34xf32>
    %1359 = arith.addf %1342, %1358 : vector<16x34xf32>
    %c106_186 = arith.constant 106 : index
    %1360 = memref.load %arg4[%c106_186] : memref<144xf32, #tpu.memory_space<smem>>
    %1361 = vector.broadcast %1360 : f32 to vector<16x34xf32>
    %1362 = arith.mulf %1351, %1361 : vector<16x34xf32>
    %1363 = arith.addf %1346, %1362 : vector<16x34xf32>
    %c142_187 = arith.constant 142 : index
    %1364 = memref.load %arg4[%c142_187] : memref<144xf32, #tpu.memory_space<smem>>
    %1365 = vector.broadcast %1364 : f32 to vector<16x34xf32>
    %1366 = arith.mulf %1351, %1365 : vector<16x34xf32>
    %1367 = arith.addf %1350, %1366 : vector<16x34xf32>
    %1368 = vector.extract_strided_slice %1231 {offsets = [2, 0], sizes = [16, 34], strides = [1, 1]} : vector<18x34xf32> to vector<16x34xf32>
    %c35_188 = arith.constant 35 : index
    %1369 = memref.load %arg4[%c35_188] : memref<144xf32, #tpu.memory_space<smem>>
    %1370 = vector.broadcast %1369 : f32 to vector<16x34xf32>
    %1371 = arith.mulf %1368, %1370 : vector<16x34xf32>
    %1372 = arith.addf %1355, %1371 : vector<16x34xf32>
    %c71_189 = arith.constant 71 : index
    %1373 = memref.load %arg4[%c71_189] : memref<144xf32, #tpu.memory_space<smem>>
    %1374 = vector.broadcast %1373 : f32 to vector<16x34xf32>
    %1375 = arith.mulf %1368, %1374 : vector<16x34xf32>
    %1376 = arith.addf %1359, %1375 : vector<16x34xf32>
    %c107_190 = arith.constant 107 : index
    %1377 = memref.load %arg4[%c107_190] : memref<144xf32, #tpu.memory_space<smem>>
    %1378 = vector.broadcast %1377 : f32 to vector<16x34xf32>
    %1379 = arith.mulf %1368, %1378 : vector<16x34xf32>
    %1380 = arith.addf %1363, %1379 : vector<16x34xf32>
    %c143_191 = arith.constant 143 : index
    %1381 = memref.load %arg4[%c143_191] : memref<144xf32, #tpu.memory_space<smem>>
    %1382 = vector.broadcast %1381 : f32 to vector<16x34xf32>
    %1383 = arith.mulf %1368, %1382 : vector<16x34xf32>
    %1384 = arith.addf %1367, %1383 : vector<16x34xf32>
    %1385 = vector.extract_strided_slice %1372 {offsets = [0, 0], sizes = [16, 16], strides = [1, 1]} : vector<16x34xf32> to vector<16x16xf32>
    %1386 = vector.extract_strided_slice %1372 {offsets = [0, 18], sizes = [16, 16], strides = [1, 1]} : vector<16x34xf32> to vector<16x16xf32>
    %1387 = vector.extract_strided_slice %1376 {offsets = [0, 0], sizes = [16, 16], strides = [1, 1]} : vector<16x34xf32> to vector<16x16xf32>
    %1388 = vector.extract_strided_slice %1376 {offsets = [0, 18], sizes = [16, 16], strides = [1, 1]} : vector<16x34xf32> to vector<16x16xf32>
    %1389 = vector.extract_strided_slice %1380 {offsets = [0, 0], sizes = [16, 16], strides = [1, 1]} : vector<16x34xf32> to vector<16x16xf32>
    %1390 = vector.extract_strided_slice %1380 {offsets = [0, 18], sizes = [16, 16], strides = [1, 1]} : vector<16x34xf32> to vector<16x16xf32>
    %1391 = vector.extract_strided_slice %1384 {offsets = [0, 0], sizes = [16, 16], strides = [1, 1]} : vector<16x34xf32> to vector<16x16xf32>
    %1392 = vector.extract_strided_slice %1384 {offsets = [0, 18], sizes = [16, 16], strides = [1, 1]} : vector<16x34xf32> to vector<16x16xf32>
    %1393 = tpu.concatenate %1385, %1386, %1387, %1388, %1389, %1390, %1391, %1392 in 1 : vector<16x16xf32>, vector<16x16xf32>, vector<16x16xf32>, vector<16x16xf32>, vector<16x16xf32>, vector<16x16xf32>, vector<16x16xf32>, vector<16x16xf32> -> vector<16x128xf32>
    %c0_192 = arith.constant 0 : index
    %c0_193 = arith.constant 0 : index
    %1394 = vector.load %arg7[%c0_192, %c0_193] : memref<16x128xf32, #tpu.memory_space<vmem>>, vector<16x128xf32>
    tpu.vector_store %arg7[%c0_192, %c0_193], %1393 {strides = array<i32>} : memref<16x128xf32, #tpu.memory_space<vmem>>, vector<16x128xf32>,
    return
  }
  func.func @transform_0(%arg0: i32) -> (i32, i32, i32) {
    %c0_i32 = arith.constant 0 : i32
    %c0_i32_0 = arith.constant 0 : i32
    %c0_i32_1 = arith.constant 0 : i32
    %c0_i32_2 = arith.constant 0 : i32
    return %c0_i32, %c0_i32_0, %c0_i32_1 : i32, i32, i32
  }
  func.func @transform_1(%arg0: i32) -> i32 {
    %c0_i32 = arith.constant 0 : i32
    %c0_i32_0 = arith.constant 0 : i32
    return %c0_i32 : i32
  }
  func.func @transform_2(%arg0: i32) -> i32 {
    %c0_i32 = arith.constant 0 : i32
    %c0_i32_0 = arith.constant 0 : i32
    return %c0_i32 : i32
  }
  func.func @transform_3(%arg0: i32) -> i32 {
    %c0_i32 = arith.constant 0 : i32
    %c0_i32_0 = arith.constant 0 : i32
    return %c0_i32 : i32
  }
  func.func @transform_4(%arg0: i32) -> i32 {
    %c0_i32 = arith.constant 0 : i32
    %c0_i32_0 = arith.constant 0 : i32
    return %c0_i32 : i32
  }
  func.func @transform_5(%arg0: i32) -> i32 {
    %c0_i32 = arith.constant 0 : i32
    %c0_i32_0 = arith.constant 0 : i32
    return %c0_i32 : i32
  }
  func.func @transform_6(%arg0: i32) -> (i32, i32) {
    %c0_i32 = arith.constant 0 : i32
    %c0_i32_0 = arith.constant 0 : i32
    %c0_i32_1 = arith.constant 0 : i32
    return %c0_i32, %c0_i32_0 : i32, i32
  }
}

</mosaic_0001>

<llo_original>
// kernel: tpu_custom_call.1
$region0: #{tpu_custom_call.1}
  #allocation0 [shape = 'u32[]', space=smem, size = 0x4, offset = 0x4, fixed_abs, tag = 'smem constant byte address 0x4 - core index']
  #allocation1 [shape = 'u32[144,128]{1,0:T(1,128)}', space=vmem, size = 0x12000, scoped, tag = 'internal scratch']
  %s0 = inlined_call_operand.vmem [shape: f32[4,18,36], index: 0, kind: input, shape index: {}]
  %s1 = inlined_call_operand.vmem [shape: f32[144], index: 1, kind: input, shape index: {}]
  %s2 = inlined_call_operand.vmem [shape: f32[4], index: 2, kind: input, shape index: {}]
  %s3 = inlined_call_operand.vmem [shape: f32[144], index: 3, kind: input, shape index: {}]
  %s4 = inlined_call_operand.vmem [shape: f32[4], index: 4, kind: input, shape index: {}]
  %s5 = inlined_call_operand.vmem [shape: f32[16], index: 5, kind: input, shape index: {}]
  %s6 = inlined_call_operand.hbm [shape: f32[16,128], index: 6, kind: output, shape index: {}]
  %s7 = sld [smem:[#allocation0]]
  $region54: #{tpu_custom_call.1} parent=0
    _
  %s9 = ssub.s32 1, %s7
  %s10 = scalar_select 0, %s9, %s7
  $region1: #{tpu_custom_call.1} parent=0
    #allocation2 [shape = 'u8[1024]{0}', space=smem, size = 0x400, scoped, tag = 'input window, operand 1, single buffered']
    #allocation3 [shape = 's32[1]{0}', space=sflag, size = 0x4, scoped, tag = 'scoped memory for tpu_custom_call.1']
    #allocation4 [shape = 's32[1]{0}', space=sflag, size = 0x4, scoped, tag = 'scoped memory for tpu_custom_call.1']
    #allocation5 [shape = 'u8[512]{0}', space=smem, size = 0x200, scoped, tag = 'input window, operand 2, single buffered']
    #allocation6 [shape = 's32[1]{0}', space=sflag, size = 0x4, scoped, tag = 'scoped memory for tpu_custom_call.1']
    #allocation7 [shape = 'u8[1024]{0}', space=smem, size = 0x400, scoped, tag = 'input window, operand 3, single buffered']
    #allocation8 [shape = 'u8[512]{0}', space=smem, size = 0x200, scoped, tag = 'input window, operand 4, single buffered']
    #allocation9 [shape = 's32[1]{0}', space=sflag, size = 0x4, scoped, tag = 'scoped memory for tpu_custom_call.1']
    #allocation10 [shape = 'u8[512]{0}', space=smem, size = 0x200, scoped, tag = 'input window, operand 5, single buffered']
    #allocation11 [shape = 'u8[8192]{0}', space=vmem, size = 0x2000, scoped, tag = 'output window, operand 0, single buffered']
    %11 = vsyncpa [#allocation4], 0
    %12 = vsyncpa [#allocation6], 0
    %13 = vsyncpa [#allocation9], 0
    %14 = vsyncpa [#allocation3], 0
    // Predicated region
    $region2: #{tpu_custom_call.1} parent=1 // pred_check
      _
    $region3: #{tpu_custom_call.1} parent=1 // pred_check_branch
      %16 = sbr.rel (0) target = $region5
    $region4: #{tpu_custom_call.1} parent=1 // pred_region
      _
    $region5: #{tpu_custom_call.1} parent=1 // pred_fallthru
      _
    // Predicated region
    $region6: #{tpu_custom_call.1} parent=1 // pred_check
      _
    $region7: #{tpu_custom_call.1} parent=1 // pred_check_branch
      %18 = sbr.rel (0) target = $region9
    $region8: #{tpu_custom_call.1} parent=1 // pred_region
      %s20 = ssub.s32 32, 32
      %21 = vsyncadd [#allocation4], %s20
      %s23 = sshll.u32 %s1, 4
      %s24 = int_to_ptr.vmem [resolvable:$true] %s23
      %26 = dma.vmem_to_smem %s24, 32, [#allocation2], [#allocation4]
    $region9: #{tpu_custom_call.1} parent=1 // pred_fallthru
      _
    // Predicated region
    $region10: #{tpu_custom_call.1} parent=1 // pred_check
      _
    $region11: #{tpu_custom_call.1} parent=1 // pred_check_branch
      %28 = sbr.rel (0) target = $region13
    $region12: #{tpu_custom_call.1} parent=1 // pred_region
      %s30 = ssub.s32 16, 16
      %31 = vsyncadd [#allocation6], %s30
      %s33 = sshll.u32 %s2, 4
      %s34 = int_to_ptr.vmem [resolvable:$true] %s33
      %36 = dma.vmem_to_smem %s34, 16, [#allocation5], [#allocation6]
    $region13: #{tpu_custom_call.1} parent=1 // pred_fallthru
      _
    // Predicated region
    $region14: #{tpu_custom_call.1} parent=1 // pred_check
      _
    $region15: #{tpu_custom_call.1} parent=1 // pred_check_branch
      %38 = sbr.rel (0) target = $region17
    $region16: #{tpu_custom_call.1} parent=1 // pred_region
      %s40 = ssub.s32 32, 32
      %41 = vsyncadd [#allocation6], %s40
      %s43 = sshll.u32 %s3, 4
      %s44 = int_to_ptr.vmem [resolvable:$true] %s43
      %46 = dma.vmem_to_smem %s44, 32, [#allocation7], [#allocation6]
    $region17: #{tpu_custom_call.1} parent=1 // pred_fallthru
      _
    // Predicated region
    $region18: #{tpu_custom_call.1} parent=1 // pred_check
      _
    $region19: #{tpu_custom_call.1} parent=1 // pred_check_branch
      %48 = sbr.rel (0) target = $region21
    $region20: #{tpu_custom_call.1} parent=1 // pred_region
      %s50 = ssub.s32 16, 16
      %51 = vsyncadd [#allocation9], %s50
      %s53 = sshll.u32 %s4, 4
      %s54 = int_to_ptr.vmem [resolvable:$true] %s53
      %56 = dma.vmem_to_smem %s54, 16, [#allocation8], [#allocation9]
    $region21: #{tpu_custom_call.1} parent=1 // pred_fallthru
      _
    // Predicated region
    $region22: #{tpu_custom_call.1} parent=1 // pred_check
      _
    $region23: #{tpu_custom_call.1} parent=1 // pred_check_branch
      %58 = sbr.rel (0) target = $region25
    $region24: #{tpu_custom_call.1} parent=1 // pred_region
      %s60 = ssub.s32 16, 16
      %61 = vsyncadd [#allocation9], %s60
      %s63 = sshll.u32 %s5, 4
      %s64 = int_to_ptr.vmem [resolvable:$true] %s63
      %66 = dma.vmem_to_smem %s64, 16, [#allocation10], [#allocation9]
    $region25: #{tpu_custom_call.1} parent=1 // pred_fallthru
      _
    // Predicated region
    $region26: #{tpu_custom_call.1} parent=1 // pred_check
      _
    $region27: #{tpu_custom_call.1} parent=1 // pred_check_branch
      %68 = sbr.rel (0) target = $region29
    $region28: #{tpu_custom_call.1} parent=1 // pred_region
      %69 = dma.done [#allocation4], 32
    $region29: #{tpu_custom_call.1} parent=1 // pred_fallthru
      _
    // Predicated region
    $region30: #{tpu_custom_call.1} parent=1 // pred_check
      _
    $region31: #{tpu_custom_call.1} parent=1 // pred_check_branch
      %71 = sbr.rel (0) target = $region33
    $region32: #{tpu_custom_call.1} parent=1 // pred_region
      %72 = dma.done [#allocation6], 16
    $region33: #{tpu_custom_call.1} parent=1 // pred_fallthru
      _
    // Predicated region
    $region34: #{tpu_custom_call.1} parent=1 // pred_check
      _
    $region35: #{tpu_custom_call.1} parent=1 // pred_check_branch
      %74 = sbr.rel (0) target = $region37
    $region36: #{tpu_custom_call.1} parent=1 // pred_region
      %75 = dma.done [#allocation6], 32
    $region37: #{tpu_custom_call.1} parent=1 // pred_fallthru
      _
    // Predicated region
    $region38: #{tpu_custom_call.1} parent=1 // pred_check
      _
    $region39: #{tpu_custom_call.1} parent=1 // pred_check_branch
      %77 = sbr.rel (0) target = $region41
    $region40: #{tpu_custom_call.1} parent=1 // pred_region
      %78 = dma.done [#allocation9], 16
    $region41: #{tpu_custom_call.1} parent=1 // pred_fallthru
      _
    // Predicated region
    $region42: #{tpu_custom_call.1} parent=1 // pred_check
      _
    $region43: #{tpu_custom_call.1} parent=1 // pred_check_branch
      %80 = sbr.rel (0) target = $region45
    $region44: #{tpu_custom_call.1} parent=1 // pred_region
      %81 = dma.done [#allocation9], 16
    $region45: #{tpu_custom_call.1} parent=1 // pred_fallthru
      _
    %82 = sfence
    %v83 = vlaneseq
    %v84 = vand.u32 %v83, 127
    %vm85 = vcmp.lt.s32.totalorder %v84, 0
    %v86 = vsub.s32 0, %v84
    %v87 = vsel %vm85, %v86, %v84
    %v88 = vmul.u32.u64.compose %v87, 3817748708
    %v89 = vextract.low.u32 %v88
    %v90 = vextract.high.u32 %v88
    %v91 = vshrl.u32 %v90, 4
    %v92 = vmul.u32 %v91, 18
    %v93 = vsub.s32 %v87, %v92
    %v94 = vsub.s32 0, %v93
    %v95 = vsel %vm85, %v94, %v93
    %vm96 = vcmp.ne.s32.totalorder %v95, 0
    %vm97 = vcmp.lt.s32.totalorder %v95, 0
    %vm98 = vmand %vm97, %vm96
    %v99 = vadd.s32 %v95, 18
    %v100 = vsel %vm98, %v99, %v95
    %vm101 = vcmp.lt.s32.totalorder %v100, 16
    %s102 = sld [smem:[#allocation5]]
    %v103 = vstv %s102
    %s104 = sld [smem:[#allocation5 + $0x1]]
    %v105 = vstv %s104
    %s106 = sld [smem:[#allocation5 + $0x2]]
    %v107 = vstv %s106
    %s108 = sld [smem:[#allocation5 + $0x3]]
    %v109 = vstv %s108
    %s110 = sld [smem:[#allocation8]]
    %v111 = vstv %s110
    %s112 = sld [smem:[#allocation8 + $0x1]]
    %v113 = vstv %s112
    %s114 = sld [smem:[#allocation8 + $0x2]]
    %v115 = vstv %s114
    %s116 = sld [smem:[#allocation8 + $0x3]]
    %v117 = vstv %s116
    %v118 = vld [vmem:[%s0] sm:$0xff]
    %v119 = vld [vmem:[%s0 + $0x8] sm:$0xff]
    %v120 = vld [vmem:[%s0 + $0x10] sm:$0x3]
    %s121 = sld [smem:[#allocation10]]
    %v122 = vstv %s121
    %v123 = vmul.f32 %v118, %v122
    %v124 = vmul.f32 %v119, %v122
    %v125 = vmul.f32 %v120, %v122
    %v126 = vadd.f32 %v111, %v123
    %v127 = vadd.f32 %v111, %v124
    %v128 = vadd.f32 %v111, %v125
    %s129 = sld [smem:[#allocation10 + $0x4]]
    %v130 = vstv %s129
    %v131 = vmul.f32 %v118, %v130
    %v132 = vmul.f32 %v119, %v130
    %v133 = vmul.f32 %v120, %v130
    %v134 = vadd.f32 %v113, %v131
    %v135 = vadd.f32 %v113, %v132
    %v136 = vadd.f32 %v113, %v133
    %s137 = sld [smem:[#allocation10 + $0x8]]
    %v138 = vstv %s137
    %v139 = vmul.f32 %v118, %v138
    %v140 = vmul.f32 %v119, %v138
    %v141 = vmul.f32 %v120, %v138
    %v142 = vadd.f32 %v115, %v139
    %v143 = vadd.f32 %v115, %v140
    %v144 = vadd.f32 %v115, %v141
    %s145 = sld [smem:[#allocation10 + $0xc]]
    %v146 = vstv %s145
    %v147 = vmul.f32 %v118, %v146
    %v148 = vmul.f32 %v119, %v146
    %v149 = vmul.f32 %v120, %v146
    %v150 = vadd.f32 %v117, %v147
    %v151 = vadd.f32 %v117, %v148
    %v152 = vadd.f32 %v117, %v149
    %s153 = sld [smem:[#allocation2]]
    %v154 = vstv %s153
    %v155 = vmul.f32 %v118, %v154
    %v156 = vmul.f32 %v119, %v154
    %v157 = vadd.f32 %v103, %v155
    %v158 = vadd.f32 %v103, %v156
    %s159 = sld [smem:[#allocation2 + $0x24]]
    %v160 = vstv %s159
    %v161 = vmul.f32 %v118, %v160
    %v162 = vmul.f32 %v119, %v160
    %v163 = vadd.f32 %v105, %v161
    %v164 = vadd.f32 %v105, %v162
    %s165 = sld [smem:[#allocation2 + $0x48]]
    %v166 = vstv %s165
    %v167 = vmul.f32 %v118, %v166
    %v168 = vmul.f32 %v119, %v166
    %v169 = vadd.f32 %v107, %v167
    %v170 = vadd.f32 %v107, %v168
    %s171 = sld [smem:[#allocation2 + $0x6c]]
    %v172 = vstv %s171
    %v173 = vmul.f32 %v118, %v172
    %v174 = vmul.f32 %v119, %v172
    %v175 = vadd.f32 %v109, %v173
    %v176 = vadd.f32 %v109, %v174
    %s177 = sld [smem:[#allocation2 + $0x1]]
    %v178 = vstv %s177
    %v179 = vmul.f32 %v118, %v178
    %v180 = vmul.f32 %v119, %v178
    %183 = vrot.lane.b32.xlu0 %v179, 127
    %v184 = vpop.permute.xlu0 %183
    %185 = vrot.lane.b32.xlu0 %v180, 127
    %v186 = vpop.permute.xlu0 %185
    %v189 = vadd.f32 %v157, %v184
    %v190 = vadd.f32 %v158, %v186
    %s191 = sld [smem:[#allocation2 + $0x25]]
    %v192 = vstv %s191
    %v193 = vmul.f32 %v118, %v192
    %v194 = vmul.f32 %v119, %v192
    %197 = vrot.lane.b32.xlu0 %v193, 127
    %v198 = vpop.permute.xlu0 %197
    %199 = vrot.lane.b32.xlu0 %v194, 127
    %v200 = vpop.permute.xlu0 %199
    %v203 = vadd.f32 %v163, %v198
    %v204 = vadd.f32 %v164, %v200
    %s205 = sld [smem:[#allocation2 + $0x49]]
    %v206 = vstv %s205
    %v207 = vmul.f32 %v118, %v206
    %v208 = vmul.f32 %v119, %v206
    %211 = vrot.lane.b32.xlu0 %v207, 127
    %v212 = vpop.permute.xlu0 %211
    %213 = vrot.lane.b32.xlu0 %v208, 127
    %v214 = vpop.permute.xlu0 %213
    %v217 = vadd.f32 %v169, %v212
    %v218 = vadd.f32 %v170, %v214
    %s219 = sld [smem:[#allocation2 + $0x6d]]
    %v220 = vstv %s219
    %v221 = vmul.f32 %v118, %v220
    %v222 = vmul.f32 %v119, %v220
    %225 = vrot.lane.b32.xlu0 %v221, 127
    %v226 = vpop.permute.xlu0 %225
    %227 = vrot.lane.b32.xlu0 %v222, 127
    %v228 = vpop.permute.xlu0 %227
    %v231 = vadd.f32 %v175, %v226
    %v232 = vadd.f32 %v176, %v228
    %s233 = sld [smem:[#allocation2 + $0x2]]
    %v234 = vstv %s233
    %v235 = vmul.f32 %v118, %v234
    %v236 = vmul.f32 %v119, %v234
    %239 = vrot.lane.b32.xlu0 %v235, 126
    %v240 = vpop.permute.xlu0 %239
    %241 = vrot.lane.b32.xlu0 %v236, 126
    %v242 = vpop.permute.xlu0 %241
    %v245 = vadd.f32 %v189, %v240
    %v246 = vadd.f32 %v190, %v242
    %s247 = sld [smem:[#allocation2 + $0x26]]
    %v248 = vstv %s247
    %v249 = vmul.f32 %v118, %v248
    %v250 = vmul.f32 %v119, %v248
    %253 = vrot.lane.b32.xlu0 %v249, 126
    %v254 = vpop.permute.xlu0 %253
    %255 = vrot.lane.b32.xlu0 %v250, 126
    %v256 = vpop.permute.xlu0 %255
    %v259 = vadd.f32 %v203, %v254
    %v260 = vadd.f32 %v204, %v256
    %s261 = sld [smem:[#allocation2 + $0x4a]]
    %v262 = vstv %s261
    %v263 = vmul.f32 %v118, %v262
    %v264 = vmul.f32 %v119, %v262
    %267 = vrot.lane.b32.xlu0 %v263, 126
    %v268 = vpop.permute.xlu0 %267
    %269 = vrot.lane.b32.xlu0 %v264, 126
    %v270 = vpop.permute.xlu0 %269
    %v273 = vadd.f32 %v217, %v268
    %v274 = vadd.f32 %v218, %v270
    %s275 = sld [smem:[#allocation2 + $0x6e]]
    %v276 = vstv %s275
    %v277 = vmul.f32 %v118, %v276
    %v278 = vmul.f32 %v119, %v276
    %281 = vrot.lane.b32.xlu0 %v277, 126
    %v282 = vpop.permute.xlu0 %281
    %283 = vrot.lane.b32.xlu0 %v278, 126
    %v284 = vpop.permute.xlu0 %283
    %v287 = vadd.f32 %v231, %v282
    %v288 = vadd.f32 %v232, %v284
    %s289 = sld [smem:[#allocation2 + $0x3]]
    %v290 = vstv %s289
    %v291 = vmul.f32 %v118, %v290
    %v292 = vmul.f32 %v119, %v290
    %v293 = vmul.f32 %v120, %v290
    %vm297 = vcmask 1046528
    %v298 = vrot.slane %v291, 1
    %v299 = vrot.slane %v292, 1
    %v300 = vsel %vm297, %v298, %v299
    %v301 = vrot.slane %v293, 1
    %v302 = vsel %vm297, %v299, %v301
    %v305 = vadd.f32 %v245, %v300
    %v306 = vadd.f32 %v246, %v302
    %s307 = sld [smem:[#allocation2 + $0x27]]
    %v308 = vstv %s307
    %v309 = vmul.f32 %v118, %v308
    %v310 = vmul.f32 %v119, %v308
    %v311 = vmul.f32 %v120, %v308
    %v315 = vrot.slane %v309, 1
    %v316 = vrot.slane %v310, 1
    %v317 = vsel %vm297, %v315, %v316
    %v318 = vrot.slane %v311, 1
    %v319 = vsel %vm297, %v316, %v318
    %v322 = vadd.f32 %v259, %v317
    %v323 = vadd.f32 %v260, %v319
    %s324 = sld [smem:[#allocation2 + $0x4b]]
    %v325 = vstv %s324
    %v326 = vmul.f32 %v118, %v325
    %v327 = vmul.f32 %v119, %v325
    %v328 = vmul.f32 %v120, %v325
    %v332 = vrot.slane %v326, 1
    %v333 = vrot.slane %v327, 1
    %v334 = vsel %vm297, %v332, %v333
    %v335 = vrot.slane %v328, 1
    %v336 = vsel %vm297, %v333, %v335
    %v339 = vadd.f32 %v273, %v334
    %v340 = vadd.f32 %v274, %v336
    %s341 = sld [smem:[#allocation2 + $0x6f]]
    %v342 = vstv %s341
    %v343 = vmul.f32 %v118, %v342
    %v344 = vmul.f32 %v119, %v342
    %v345 = vmul.f32 %v120, %v342
    %v349 = vrot.slane %v343, 1
    %v350 = vrot.slane %v344, 1
    %v351 = vsel %vm297, %v349, %v350
    %v352 = vrot.slane %v345, 1
    %v353 = vsel %vm297, %v350, %v352
    %v356 = vadd.f32 %v287, %v351
    %v357 = vadd.f32 %v288, %v353
    %s358 = sld [smem:[#allocation2 + $0x4]]
    %v359 = vstv %s358
    %v360 = vmul.f32 %v118, %v359
    %v361 = vmul.f32 %v119, %v359
    %v362 = vmul.f32 %v120, %v359
    %v366 = vrot.slane %v360, 1
    %v367 = vrot.slane %v361, 1
    %v368 = vsel %vm297, %v366, %v367
    %v369 = vrot.slane %v362, 1
    %v370 = vsel %vm297, %v367, %v369
    %371 = vrot.lane.b32.xlu0 %v368, 127
    %v372 = vpop.permute.xlu0 %371
    %373 = vrot.lane.b32.xlu0 %v370, 127
    %v374 = vpop.permute.xlu0 %373
    %v377 = vadd.f32 %v305, %v372
    %v378 = vadd.f32 %v306, %v374
    %s379 = sld [smem:[#allocation2 + $0x28]]
    %v380 = vstv %s379
    %v381 = vmul.f32 %v118, %v380
    %v382 = vmul.f32 %v119, %v380
    %v383 = vmul.f32 %v120, %v380
    %v387 = vrot.slane %v381, 1
    %v388 = vrot.slane %v382, 1
    %v389 = vsel %vm297, %v387, %v388
    %v390 = vrot.slane %v383, 1
    %v391 = vsel %vm297, %v388, %v390
    %392 = vrot.lane.b32.xlu0 %v389, 127
    %v393 = vpop.permute.xlu0 %392
    %394 = vrot.lane.b32.xlu0 %v391, 127
    %v395 = vpop.permute.xlu0 %394
    %v398 = vadd.f32 %v322, %v393
    %v399 = vadd.f32 %v323, %v395
    %s400 = sld [smem:[#allocation2 + $0x4c]]
    %v401 = vstv %s400
    %v402 = vmul.f32 %v118, %v401
    %v403 = vmul.f32 %v119, %v401
    %v404 = vmul.f32 %v120, %v401
    %v408 = vrot.slane %v402, 1
    %v409 = vrot.slane %v403, 1
    %v410 = vsel %vm297, %v408, %v409
    %v411 = vrot.slane %v404, 1
    %v412 = vsel %vm297, %v409, %v411
    %413 = vrot.lane.b32.xlu0 %v410, 127
    %v414 = vpop.permute.xlu0 %413
    %415 = vrot.lane.b32.xlu0 %v412, 127
    %v416 = vpop.permute.xlu0 %415
    %v419 = vadd.f32 %v339, %v414
    %v420 = vadd.f32 %v340, %v416
    %s421 = sld [smem:[#allocation2 + $0x70]]
    %v422 = vstv %s421
    %v423 = vmul.f32 %v118, %v422
    %v424 = vmul.f32 %v119, %v422
    %v425 = vmul.f32 %v120, %v422
    %v429 = vrot.slane %v423, 1
    %v430 = vrot.slane %v424, 1
    %v431 = vsel %vm297, %v429, %v430
    %v432 = vrot.slane %v425, 1
    %v433 = vsel %vm297, %v430, %v432
    %434 = vrot.lane.b32.xlu0 %v431, 127
    %v435 = vpop.permute.xlu0 %434
    %436 = vrot.lane.b32.xlu0 %v433, 127
    %v437 = vpop.permute.xlu0 %436
    %v440 = vadd.f32 %v356, %v435
    %v441 = vadd.f32 %v357, %v437
    %s442 = sld [smem:[#allocation2 + $0x5]]
    %v443 = vstv %s442
    %v444 = vmul.f32 %v118, %v443
    %v445 = vmul.f32 %v119, %v443
    %v446 = vmul.f32 %v120, %v443
    %v450 = vrot.slane %v444, 1
    %v451 = vrot.slane %v445, 1
    %v452 = vsel %vm297, %v450, %v451
    %v453 = vrot.slane %v446, 1
    %v454 = vsel %vm297, %v451, %v453
    %455 = vrot.lane.b32.xlu0 %v452, 126
    %v456 = vpop.permute.xlu0 %455
    %457 = vrot.lane.b32.xlu0 %v454, 126
    %v458 = vpop.permute.xlu0 %457
    %v461 = vadd.f32 %v377, %v456
    %v462 = vadd.f32 %v378, %v458
    %s463 = sld [smem:[#allocation2 + $0x29]]
    %v464 = vstv %s463
    %v465 = vmul.f32 %v118, %v464
    %v466 = vmul.f32 %v119, %v464
    %v467 = vmul.f32 %v120, %v464
    %v471 = vrot.slane %v465, 1
    %v472 = vrot.slane %v466, 1
    %v473 = vsel %vm297, %v471, %v472
    %v474 = vrot.slane %v467, 1
    %v475 = vsel %vm297, %v472, %v474
    %476 = vrot.lane.b32.xlu0 %v473, 126
    %v477 = vpop.permute.xlu0 %476
    %478 = vrot.lane.b32.xlu0 %v475, 126
    %v479 = vpop.permute.xlu0 %478
    %v482 = vadd.f32 %v398, %v477
    %v483 = vadd.f32 %v399, %v479
    %s484 = sld [smem:[#allocation2 + $0x4d]]
    %v485 = vstv %s484
    %v486 = vmul.f32 %v118, %v485
    %v487 = vmul.f32 %v119, %v485
    %v488 = vmul.f32 %v120, %v485
    %v492 = vrot.slane %v486, 1
    %v493 = vrot.slane %v487, 1
    %v494 = vsel %vm297, %v492, %v493
    %v495 = vrot.slane %v488, 1
    %v496 = vsel %vm297, %v493, %v495
    %497 = vrot.lane.b32.xlu0 %v494, 126
    %v498 = vpop.permute.xlu0 %497
    %499 = vrot.lane.b32.xlu0 %v496, 126
    %v500 = vpop.permute.xlu0 %499
    %v503 = vadd.f32 %v419, %v498
    %v504 = vadd.f32 %v420, %v500
    %s505 = sld [smem:[#allocation2 + $0x71]]
    %v506 = vstv %s505
    %v507 = vmul.f32 %v118, %v506
    %v508 = vmul.f32 %v119, %v506
    %v509 = vmul.f32 %v120, %v506
    %v513 = vrot.slane %v507, 1
    %v514 = vrot.slane %v508, 1
    %v515 = vsel %vm297, %v513, %v514
    %v516 = vrot.slane %v509, 1
    %v517 = vsel %vm297, %v514, %v516
    %518 = vrot.lane.b32.xlu0 %v515, 126
    %v519 = vpop.permute.xlu0 %518
    %520 = vrot.lane.b32.xlu0 %v517, 126
    %v521 = vpop.permute.xlu0 %520
    %v524 = vadd.f32 %v440, %v519
    %v525 = vadd.f32 %v441, %v521
    %s526 = sld [smem:[#allocation2 + $0x6]]
    %v527 = vstv %s526
    %v528 = vmul.f32 %v118, %v527
    %v529 = vmul.f32 %v119, %v527
    %v530 = vmul.f32 %v120, %v527
    %vm534 = vcmask 1045504
    %v535 = vrot.slane %v528, 2
    %v536 = vrot.slane %v529, 2
    %v537 = vsel %vm534, %v535, %v536
    %v538 = vrot.slane %v530, 2
    %v539 = vsel %vm534, %v536, %v538
    %v542 = vadd.f32 %v461, %v537
    %v543 = vadd.f32 %v462, %v539
    %s544 = sld [smem:[#allocation2 + $0x2a]]
    %v545 = vstv %s544
    %v546 = vmul.f32 %v118, %v545
    %v547 = vmul.f32 %v119, %v545
    %v548 = vmul.f32 %v120, %v545
    %v552 = vrot.slane %v546, 2
    %v553 = vrot.slane %v547, 2
    %v554 = vsel %vm534, %v552, %v553
    %v555 = vrot.slane %v548, 2
    %v556 = vsel %vm534, %v553, %v555
    %v559 = vadd.f32 %v482, %v554
    %v560 = vadd.f32 %v483, %v556
    %s561 = sld [smem:[#allocation2 + $0x4e]]
    %v562 = vstv %s561
    %v563 = vmul.f32 %v118, %v562
    %v564 = vmul.f32 %v119, %v562
    %v565 = vmul.f32 %v120, %v562
    %v569 = vrot.slane %v563, 2
    %v570 = vrot.slane %v564, 2
    %v571 = vsel %vm534, %v569, %v570
    %v572 = vrot.slane %v565, 2
    %v573 = vsel %vm534, %v570, %v572
    %v576 = vadd.f32 %v503, %v571
    %v577 = vadd.f32 %v504, %v573
    %s578 = sld [smem:[#allocation2 + $0x72]]
    %v579 = vstv %s578
    %v580 = vmul.f32 %v118, %v579
    %v581 = vmul.f32 %v119, %v579
    %v582 = vmul.f32 %v120, %v579
    %v586 = vrot.slane %v580, 2
    %v587 = vrot.slane %v581, 2
    %v588 = vsel %vm534, %v586, %v587
    %v589 = vrot.slane %v582, 2
    %v590 = vsel %vm534, %v587, %v589
    %v593 = vadd.f32 %v524, %v588
    %v594 = vadd.f32 %v525, %v590
    %s595 = sld [smem:[#allocation2 + $0x7]]
    %v596 = vstv %s595
    %v597 = vmul.f32 %v118, %v596
    %v598 = vmul.f32 %v119, %v596
    %v599 = vmul.f32 %v120, %v596
    %v603 = vrot.slane %v597, 2
    %v604 = vrot.slane %v598, 2
    %v605 = vsel %vm534, %v603, %v604
    %v606 = vrot.slane %v599, 2
    %v607 = vsel %vm534, %v604, %v606
    %608 = vrot.lane.b32.xlu0 %v605, 127
    %v609 = vpop.permute.xlu0 %608
    %610 = vrot.lane.b32.xlu0 %v607, 127
    %v611 = vpop.permute.xlu0 %610
    %v614 = vadd.f32 %v542, %v609
    %v615 = vadd.f32 %v543, %v611
    %s616 = sld [smem:[#allocation2 + $0x2b]]
    %v617 = vstv %s616
    %v618 = vmul.f32 %v118, %v617
    %v619 = vmul.f32 %v119, %v617
    %v620 = vmul.f32 %v120, %v617
    %v624 = vrot.slane %v618, 2
    %v625 = vrot.slane %v619, 2
    %v626 = vsel %vm534, %v624, %v625
    %v627 = vrot.slane %v620, 2
    %v628 = vsel %vm534, %v625, %v627
    %629 = vrot.lane.b32.xlu0 %v626, 127
    %v630 = vpop.permute.xlu0 %629
    %631 = vrot.lane.b32.xlu0 %v628, 127
    %v632 = vpop.permute.xlu0 %631
    %v635 = vadd.f32 %v559, %v630
    %v636 = vadd.f32 %v560, %v632
    %s637 = sld [smem:[#allocation2 + $0x4f]]
    %v638 = vstv %s637
    %v639 = vmul.f32 %v118, %v638
    %v640 = vmul.f32 %v119, %v638
    %v641 = vmul.f32 %v120, %v638
    %v645 = vrot.slane %v639, 2
    %v646 = vrot.slane %v640, 2
    %v647 = vsel %vm534, %v645, %v646
    %v648 = vrot.slane %v641, 2
    %v649 = vsel %vm534, %v646, %v648
    %650 = vrot.lane.b32.xlu0 %v647, 127
    %v651 = vpop.permute.xlu0 %650
    %652 = vrot.lane.b32.xlu0 %v649, 127
    %v653 = vpop.permute.xlu0 %652
    %v656 = vadd.f32 %v576, %v651
    %v657 = vadd.f32 %v577, %v653
    %s658 = sld [smem:[#allocation2 + $0x73]]
    %v659 = vstv %s658
    %v660 = vmul.f32 %v118, %v659
    %v661 = vmul.f32 %v119, %v659
    %v662 = vmul.f32 %v120, %v659
    %v666 = vrot.slane %v660, 2
    %v667 = vrot.slane %v661, 2
    %v668 = vsel %vm534, %v666, %v667
    %v669 = vrot.slane %v662, 2
    %v670 = vsel %vm534, %v667, %v669
    %671 = vrot.lane.b32.xlu0 %v668, 127
    %v672 = vpop.permute.xlu0 %671
    %673 = vrot.lane.b32.xlu0 %v670, 127
    %v674 = vpop.permute.xlu0 %673
    %v677 = vadd.f32 %v593, %v672
    %v678 = vadd.f32 %v594, %v674
    %s679 = sld [smem:[#allocation2 + $0x8]]
    %v680 = vstv %s679
    %v681 = vmul.f32 %v118, %v680
    %v682 = vmul.f32 %v119, %v680
    %v683 = vmul.f32 %v120, %v680
    %v687 = vrot.slane %v681, 2
    %v688 = vrot.slane %v682, 2
    %v689 = vsel %vm534, %v687, %v688
    %v690 = vrot.slane %v683, 2
    %v691 = vsel %vm534, %v688, %v690
    %692 = vrot.lane.b32.xlu0 %v689, 126
    %v693 = vpop.permute.xlu0 %692
    %694 = vrot.lane.b32.xlu0 %v691, 126
    %v695 = vpop.permute.xlu0 %694
    %v698 = vadd.f32 %v614, %v693
    %v699 = vadd.f32 %v615, %v695
    %s700 = sld [smem:[#allocation2 + $0x2c]]
    %v701 = vstv %s700
    %v702 = vmul.f32 %v118, %v701
    %v703 = vmul.f32 %v119, %v701
    %v704 = vmul.f32 %v120, %v701
    %v708 = vrot.slane %v702, 2
    %v709 = vrot.slane %v703, 2
    %v710 = vsel %vm534, %v708, %v709
    %v711 = vrot.slane %v704, 2
    %v712 = vsel %vm534, %v709, %v711
    %713 = vrot.lane.b32.xlu0 %v710, 126
    %v714 = vpop.permute.xlu0 %713
    %715 = vrot.lane.b32.xlu0 %v712, 126
    %v716 = vpop.permute.xlu0 %715
    %v719 = vadd.f32 %v635, %v714
    %v720 = vadd.f32 %v636, %v716
    %s721 = sld [smem:[#allocation2 + $0x50]]
    %v722 = vstv %s721
    %v723 = vmul.f32 %v118, %v722
    %v724 = vmul.f32 %v119, %v722
    %v725 = vmul.f32 %v120, %v722
    %v729 = vrot.slane %v723, 2
    %v730 = vrot.slane %v724, 2
    %v731 = vsel %vm534, %v729, %v730
    %v732 = vrot.slane %v725, 2
    %v733 = vsel %vm534, %v730, %v732
    %734 = vrot.lane.b32.xlu0 %v731, 126
    %v735 = vpop.permute.xlu0 %734
    %736 = vrot.lane.b32.xlu0 %v733, 126
    %v737 = vpop.permute.xlu0 %736
    %v740 = vadd.f32 %v656, %v735
    %v741 = vadd.f32 %v657, %v737
    %s742 = sld [smem:[#allocation2 + $0x74]]
    %v743 = vstv %s742
    %v744 = vmul.f32 %v118, %v743
    %v745 = vmul.f32 %v119, %v743
    %v746 = vmul.f32 %v120, %v743
    %v750 = vrot.slane %v744, 2
    %v751 = vrot.slane %v745, 2
    %v752 = vsel %vm534, %v750, %v751
    %v753 = vrot.slane %v746, 2
    %v754 = vsel %vm534, %v751, %v753
    %755 = vrot.lane.b32.xlu0 %v752, 126
    %v756 = vpop.permute.xlu0 %755
    %757 = vrot.lane.b32.xlu0 %v754, 126
    %v758 = vpop.permute.xlu0 %757
    %v761 = vadd.f32 %v677, %v756
    %v762 = vadd.f32 %v678, %v758
    %s763 = scalar_lea.vmem %s0, 24
    %v764 = vld [vmem:[%s763] sm:$0xff]
    %v765 = vld [vmem:[%s763 + $0x8] sm:$0xff]
    %v766 = vld [vmem:[%s763 + $0x10] sm:$0x3]
    %s767 = sld [smem:[#allocation10 + $0x1]]
    %v768 = vstv %s767
    %v769 = vmul.f32 %v764, %v768
    %v770 = vmul.f32 %v765, %v768
    %v771 = vmul.f32 %v766, %v768
    %v772 = vadd.f32 %v126, %v769
    %v773 = vadd.f32 %v127, %v770
    %v774 = vadd.f32 %v128, %v771
    %s775 = sld [smem:[#allocation10 + $0x5]]
    %v776 = vstv %s775
    %v777 = vmul.f32 %v764, %v776
    %v778 = vmul.f32 %v765, %v776
    %v779 = vmul.f32 %v766, %v776
    %v780 = vadd.f32 %v134, %v777
    %v781 = vadd.f32 %v135, %v778
    %v782 = vadd.f32 %v136, %v779
    %s783 = sld [smem:[#allocation10 + $0x9]]
    %v784 = vstv %s783
    %v785 = vmul.f32 %v764, %v784
    %v786 = vmul.f32 %v765, %v784
    %v787 = vmul.f32 %v766, %v784
    %v788 = vadd.f32 %v142, %v785
    %v789 = vadd.f32 %v143, %v786
    %v790 = vadd.f32 %v144, %v787
    %s791 = sld [smem:[#allocation10 + $0xd]]
    %v792 = vstv %s791
    %v793 = vmul.f32 %v764, %v792
    %v794 = vmul.f32 %v765, %v792
    %v795 = vmul.f32 %v766, %v792
    %v796 = vadd.f32 %v150, %v793
    %v797 = vadd.f32 %v151, %v794
    %v798 = vadd.f32 %v152, %v795
    %s799 = sld [smem:[#allocation2 + $0x9]]
    %v800 = vstv %s799
    %v801 = vmul.f32 %v764, %v800
    %v802 = vmul.f32 %v765, %v800
    %v803 = vadd.f32 %v698, %v801
    %v804 = vadd.f32 %v699, %v802
    %s805 = sld [smem:[#allocation2 + $0x2d]]
    %v806 = vstv %s805
    %v807 = vmul.f32 %v764, %v806
    %v808 = vmul.f32 %v765, %v806
    %v809 = vadd.f32 %v719, %v807
    %v810 = vadd.f32 %v720, %v808
    %s811 = sld [smem:[#allocation2 + $0x51]]
    %v812 = vstv %s811
    %v813 = vmul.f32 %v764, %v812
    %v814 = vmul.f32 %v765, %v812
    %v815 = vadd.f32 %v740, %v813
    %v816 = vadd.f32 %v741, %v814
    %s817 = sld [smem:[#allocation2 + $0x75]]
    %v818 = vstv %s817
    %v819 = vmul.f32 %v764, %v818
    %v820 = vmul.f32 %v765, %v818
    %v821 = vadd.f32 %v761, %v819
    %v822 = vadd.f32 %v762, %v820
    %s823 = sld [smem:[#allocation2 + $0xa]]
    %v824 = vstv %s823
    %v825 = vmul.f32 %v764, %v824
    %v826 = vmul.f32 %v765, %v824
    %829 = vrot.lane.b32.xlu0 %v825, 127
    %v830 = vpop.permute.xlu0 %829
    %831 = vrot.lane.b32.xlu0 %v826, 127
    %v832 = vpop.permute.xlu0 %831
    %v835 = vadd.f32 %v803, %v830
    %v836 = vadd.f32 %v804, %v832
    %s837 = sld [smem:[#allocation2 + $0x2e]]
    %v838 = vstv %s837
    %v839 = vmul.f32 %v764, %v838
    %v840 = vmul.f32 %v765, %v838
    %843 = vrot.lane.b32.xlu0 %v839, 127
    %v844 = vpop.permute.xlu0 %843
    %845 = vrot.lane.b32.xlu0 %v840, 127
    %v846 = vpop.permute.xlu0 %845
    %v849 = vadd.f32 %v809, %v844
    %v850 = vadd.f32 %v810, %v846
    %s851 = sld [smem:[#allocation2 + $0x52]]
    %v852 = vstv %s851
    %v853 = vmul.f32 %v764, %v852
    %v854 = vmul.f32 %v765, %v852
    %857 = vrot.lane.b32.xlu0 %v853, 127
    %v858 = vpop.permute.xlu0 %857
    %859 = vrot.lane.b32.xlu0 %v854, 127
    %v860 = vpop.permute.xlu0 %859
    %v863 = vadd.f32 %v815, %v858
    %v864 = vadd.f32 %v816, %v860
    %s865 = sld [smem:[#allocation2 + $0x76]]
    %v866 = vstv %s865
    %v867 = vmul.f32 %v764, %v866
    %v868 = vmul.f32 %v765, %v866
    %871 = vrot.lane.b32.xlu0 %v867, 127
    %v872 = vpop.permute.xlu0 %871
    %873 = vrot.lane.b32.xlu0 %v868, 127
    %v874 = vpop.permute.xlu0 %873
    %v877 = vadd.f32 %v821, %v872
    %v878 = vadd.f32 %v822, %v874
    %s879 = sld [smem:[#allocation2 + $0xb]]
    %v880 = vstv %s879
    %v881 = vmul.f32 %v764, %v880
    %v882 = vmul.f32 %v765, %v880
    %885 = vrot.lane.b32.xlu0 %v881, 126
    %v886 = vpop.permute.xlu0 %885
    %887 = vrot.lane.b32.xlu0 %v882, 126
    %v888 = vpop.permute.xlu0 %887
    %v891 = vadd.f32 %v835, %v886
    %v892 = vadd.f32 %v836, %v888
    %s893 = sld [smem:[#allocation2 + $0x2f]]
    %v894 = vstv %s893
    %v895 = vmul.f32 %v764, %v894
    %v896 = vmul.f32 %v765, %v894
    %899 = vrot.lane.b32.xlu0 %v895, 126
    %v900 = vpop.permute.xlu0 %899
    %901 = vrot.lane.b32.xlu0 %v896, 126
    %v902 = vpop.permute.xlu0 %901
    %v905 = vadd.f32 %v849, %v900
    %v906 = vadd.f32 %v850, %v902
    %s907 = sld [smem:[#allocation2 + $0x53]]
    %v908 = vstv %s907
    %v909 = vmul.f32 %v764, %v908
    %v910 = vmul.f32 %v765, %v908
    %913 = vrot.lane.b32.xlu0 %v909, 126
    %v914 = vpop.permute.xlu0 %913
    %915 = vrot.lane.b32.xlu0 %v910, 126
    %v916 = vpop.permute.xlu0 %915
    %v919 = vadd.f32 %v863, %v914
    %v920 = vadd.f32 %v864, %v916
    %s921 = sld [smem:[#allocation2 + $0x77]]
    %v922 = vstv %s921
    %v923 = vmul.f32 %v764, %v922
    %v924 = vmul.f32 %v765, %v922
    %927 = vrot.lane.b32.xlu0 %v923, 126
    %v928 = vpop.permute.xlu0 %927
    %929 = vrot.lane.b32.xlu0 %v924, 126
    %v930 = vpop.permute.xlu0 %929
    %v933 = vadd.f32 %v877, %v928
    %v934 = vadd.f32 %v878, %v930
    %s935 = sld [smem:[#allocation2 + $0xc]]
    %v936 = vstv %s935
    %v937 = vmul.f32 %v764, %v936
    %v938 = vmul.f32 %v765, %v936
    %v939 = vmul.f32 %v766, %v936
    %v943 = vrot.slane %v937, 1
    %v944 = vrot.slane %v938, 1
    %v945 = vsel %vm297, %v943, %v944
    %v946 = vrot.slane %v939, 1
    %v947 = vsel %vm297, %v944, %v946
    %v950 = vadd.f32 %v891, %v945
    %v951 = vadd.f32 %v892, %v947
    %s952 = sld [smem:[#allocation2 + $0x30]]
    %v953 = vstv %s952
    %v954 = vmul.f32 %v764, %v953
    %v955 = vmul.f32 %v765, %v953
    %v956 = vmul.f32 %v766, %v953
    %v960 = vrot.slane %v954, 1
    %v961 = vrot.slane %v955, 1
    %v962 = vsel %vm297, %v960, %v961
    %v963 = vrot.slane %v956, 1
    %v964 = vsel %vm297, %v961, %v963
    %v967 = vadd.f32 %v905, %v962
    %v968 = vadd.f32 %v906, %v964
    %s969 = sld [smem:[#allocation2 + $0x54]]
    %v970 = vstv %s969
    %v971 = vmul.f32 %v764, %v970
    %v972 = vmul.f32 %v765, %v970
    %v973 = vmul.f32 %v766, %v970
    %v977 = vrot.slane %v971, 1
    %v978 = vrot.slane %v972, 1
    %v979 = vsel %vm297, %v977, %v978
    %v980 = vrot.slane %v973, 1
    %v981 = vsel %vm297, %v978, %v980
    %v984 = vadd.f32 %v919, %v979
    %v985 = vadd.f32 %v920, %v981
    %s986 = sld [smem:[#allocation2 + $0x78]]
    %v987 = vstv %s986
    %v988 = vmul.f32 %v764, %v987
    %v989 = vmul.f32 %v765, %v987
    %v990 = vmul.f32 %v766, %v987
    %v994 = vrot.slane %v988, 1
    %v995 = vrot.slane %v989, 1
    %v996 = vsel %vm297, %v994, %v995
    %v997 = vrot.slane %v990, 1
    %v998 = vsel %vm297, %v995, %v997
    %v1001 = vadd.f32 %v933, %v996
    %v1002 = vadd.f32 %v934, %v998
    %s1003 = sld [smem:[#allocation2 + $0xd]]
    %v1004 = vstv %s1003
    %v1005 = vmul.f32 %v764, %v1004
    %v1006 = vmul.f32 %v765, %v1004
    %v1007 = vmul.f32 %v766, %v1004
    %v1011 = vrot.slane %v1005, 1
    %v1012 = vrot.slane %v1006, 1
    %v1013 = vsel %vm297, %v1011, %v1012
    %v1014 = vrot.slane %v1007, 1
    %v1015 = vsel %vm297, %v1012, %v1014
    %1016 = vrot.lane.b32.xlu0 %v1013, 127
    %v1017 = vpop.permute.xlu0 %1016
    %1018 = vrot.lane.b32.xlu0 %v1015, 127
    %v1019 = vpop.permute.xlu0 %1018
    %v1022 = vadd.f32 %v950, %v1017
    %v1023 = vadd.f32 %v951, %v1019
    %s1024 = sld [smem:[#allocation2 + $0x31]]
    %v1025 = vstv %s1024
    %v1026 = vmul.f32 %v764, %v1025
    %v1027 = vmul.f32 %v765, %v1025
    %v1028 = vmul.f32 %v766, %v1025
    %v1032 = vrot.slane %v1026, 1
    %v1033 = vrot.slane %v1027, 1
    %v1034 = vsel %vm297, %v1032, %v1033
    %v1035 = vrot.slane %v1028, 1
    %v1036 = vsel %vm297, %v1033, %v1035
    %1037 = vrot.lane.b32.xlu0 %v1034, 127
    %v1038 = vpop.permute.xlu0 %1037
    %1039 = vrot.lane.b32.xlu0 %v1036, 127
    %v1040 = vpop.permute.xlu0 %1039
    %v1043 = vadd.f32 %v967, %v1038
    %v1044 = vadd.f32 %v968, %v1040
    %s1045 = sld [smem:[#allocation2 + $0x55]]
    %v1046 = vstv %s1045
    %v1047 = vmul.f32 %v764, %v1046
    %v1048 = vmul.f32 %v765, %v1046
    %v1049 = vmul.f32 %v766, %v1046
    %v1053 = vrot.slane %v1047, 1
    %v1054 = vrot.slane %v1048, 1
    %v1055 = vsel %vm297, %v1053, %v1054
    %v1056 = vrot.slane %v1049, 1
    %v1057 = vsel %vm297, %v1054, %v1056
    %1058 = vrot.lane.b32.xlu0 %v1055, 127
    %v1059 = vpop.permute.xlu0 %1058
    %1060 = vrot.lane.b32.xlu0 %v1057, 127
    %v1061 = vpop.permute.xlu0 %1060
    %v1064 = vadd.f32 %v984, %v1059
    %v1065 = vadd.f32 %v985, %v1061
    %s1066 = sld [smem:[#allocation2 + $0x79]]
    %v1067 = vstv %s1066
    %v1068 = vmul.f32 %v764, %v1067
    %v1069 = vmul.f32 %v765, %v1067
    %v1070 = vmul.f32 %v766, %v1067
    %v1074 = vrot.slane %v1068, 1
    %v1075 = vrot.slane %v1069, 1
    %v1076 = vsel %vm297, %v1074, %v1075
    %v1077 = vrot.slane %v1070, 1
    %v1078 = vsel %vm297, %v1075, %v1077
    %1079 = vrot.lane.b32.xlu0 %v1076, 127
    %v1080 = vpop.permute.xlu0 %1079
    %1081 = vrot.lane.b32.xlu0 %v1078, 127
    %v1082 = vpop.permute.xlu0 %1081
    %v1085 = vadd.f32 %v1001, %v1080
    %v1086 = vadd.f32 %v1002, %v1082
    %s1087 = sld [smem:[#allocation2 + $0xe]]
    %v1088 = vstv %s1087
    %v1089 = vmul.f32 %v764, %v1088
    %v1090 = vmul.f32 %v765, %v1088
    %v1091 = vmul.f32 %v766, %v1088
    %v1095 = vrot.slane %v1089, 1
    %v1096 = vrot.slane %v1090, 1
    %v1097 = vsel %vm297, %v1095, %v1096
    %v1098 = vrot.slane %v1091, 1
    %v1099 = vsel %vm297, %v1096, %v1098
    %1100 = vrot.lane.b32.xlu0 %v1097, 126
    %v1101 = vpop.permute.xlu0 %1100
    %1102 = vrot.lane.b32.xlu0 %v1099, 126
    %v1103 = vpop.permute.xlu0 %1102
    %v1106 = vadd.f32 %v1022, %v1101
    %v1107 = vadd.f32 %v1023, %v1103
    %s1108 = sld [smem:[#allocation2 + $0x32]]
    %v1109 = vstv %s1108
    %v1110 = vmul.f32 %v764, %v1109
    %v1111 = vmul.f32 %v765, %v1109
    %v1112 = vmul.f32 %v766, %v1109
    %v1116 = vrot.slane %v1110, 1
    %v1117 = vrot.slane %v1111, 1
    %v1118 = vsel %vm297, %v1116, %v1117
    %v1119 = vrot.slane %v1112, 1
    %v1120 = vsel %vm297, %v1117, %v1119
    %1121 = vrot.lane.b32.xlu0 %v1118, 126
    %v1122 = vpop.permute.xlu0 %1121
    %1123 = vrot.lane.b32.xlu0 %v1120, 126
    %v1124 = vpop.permute.xlu0 %1123
    %v1127 = vadd.f32 %v1043, %v1122
    %v1128 = vadd.f32 %v1044, %v1124
    %s1129 = sld [smem:[#allocation2 + $0x56]]
    %v1130 = vstv %s1129
    %v1131 = vmul.f32 %v764, %v1130
    %v1132 = vmul.f32 %v765, %v1130
    %v1133 = vmul.f32 %v766, %v1130
    %v1137 = vrot.slane %v1131, 1
    %v1138 = vrot.slane %v1132, 1
    %v1139 = vsel %vm297, %v1137, %v1138
    %v1140 = vrot.slane %v1133, 1
    %v1141 = vsel %vm297, %v1138, %v1140
    %1142 = vrot.lane.b32.xlu0 %v1139, 126
    %v1143 = vpop.permute.xlu0 %1142
    %1144 = vrot.lane.b32.xlu0 %v1141, 126
    %v1145 = vpop.permute.xlu0 %1144
    %v1148 = vadd.f32 %v1064, %v1143
    %v1149 = vadd.f32 %v1065, %v1145
    %s1150 = sld [smem:[#allocation2 + $0x7a]]
    %v1151 = vstv %s1150
    %v1152 = vmul.f32 %v764, %v1151
    %v1153 = vmul.f32 %v765, %v1151
    %v1154 = vmul.f32 %v766, %v1151
    %v1158 = vrot.slane %v1152, 1
    %v1159 = vrot.slane %v1153, 1
    %v1160 = vsel %vm297, %v1158, %v1159
    %v1161 = vrot.slane %v1154, 1
    %v1162 = vsel %vm297, %v1159, %v1161
    %1163 = vrot.lane.b32.xlu0 %v1160, 126
    %v1164 = vpop.permute.xlu0 %1163
    %1165 = vrot.lane.b32.xlu0 %v1162, 126
    %v1166 = vpop.permute.xlu0 %1165
    %v1169 = vadd.f32 %v1085, %v1164
    %v1170 = vadd.f32 %v1086, %v1166
    %s1171 = sld [smem:[#allocation2 + $0xf]]
    %v1172 = vstv %s1171
    %v1173 = vmul.f32 %v764, %v1172
    %v1174 = vmul.f32 %v765, %v1172
    %v1175 = vmul.f32 %v766, %v1172
    %v1179 = vrot.slane %v1173, 2
    %v1180 = vrot.slane %v1174, 2
    %v1181 = vsel %vm534, %v1179, %v1180
    %v1182 = vrot.slane %v1175, 2
    %v1183 = vsel %vm534, %v1180, %v1182
    %v1186 = vadd.f32 %v1106, %v1181
    %v1187 = vadd.f32 %v1107, %v1183
    %s1188 = sld [smem:[#allocation2 + $0x33]]
    %v1189 = vstv %s1188
    %v1190 = vmul.f32 %v764, %v1189
    %v1191 = vmul.f32 %v765, %v1189
    %v1192 = vmul.f32 %v766, %v1189
    %v1196 = vrot.slane %v1190, 2
    %v1197 = vrot.slane %v1191, 2
    %v1198 = vsel %vm534, %v1196, %v1197
    %v1199 = vrot.slane %v1192, 2
    %v1200 = vsel %vm534, %v1197, %v1199
    %v1203 = vadd.f32 %v1127, %v1198
    %v1204 = vadd.f32 %v1128, %v1200
    %s1205 = sld [smem:[#allocation2 + $0x57]]
    %v1206 = vstv %s1205
    %v1207 = vmul.f32 %v764, %v1206
    %v1208 = vmul.f32 %v765, %v1206
    %v1209 = vmul.f32 %v766, %v1206
    %v1213 = vrot.slane %v1207, 2
    %v1214 = vrot.slane %v1208, 2
    %v1215 = vsel %vm534, %v1213, %v1214
    %v1216 = vrot.slane %v1209, 2
    %v1217 = vsel %vm534, %v1214, %v1216
    %v1220 = vadd.f32 %v1148, %v1215
    %v1221 = vadd.f32 %v1149, %v1217
    %s1222 = sld [smem:[#allocation2 + $0x7b]]
    %v1223 = vstv %s1222
    %v1224 = vmul.f32 %v764, %v1223
    %v1225 = vmul.f32 %v765, %v1223
    %v1226 = vmul.f32 %v766, %v1223
    %v1230 = vrot.slane %v1224, 2
    %v1231 = vrot.slane %v1225, 2
    %v1232 = vsel %vm534, %v1230, %v1231
    %v1233 = vrot.slane %v1226, 2
    %v1234 = vsel %vm534, %v1231, %v1233
    %v1237 = vadd.f32 %v1169, %v1232
    %v1238 = vadd.f32 %v1170, %v1234
    %s1239 = sld [smem:[#allocation2 + $0x10]]
    %v1240 = vstv %s1239
    %v1241 = vmul.f32 %v764, %v1240
    %v1242 = vmul.f32 %v765, %v1240
    %v1243 = vmul.f32 %v766, %v1240
    %v1247 = vrot.slane %v1241, 2
    %v1248 = vrot.slane %v1242, 2
    %v1249 = vsel %vm534, %v1247, %v1248
    %v1250 = vrot.slane %v1243, 2
    %v1251 = vsel %vm534, %v1248, %v1250
    %1252 = vrot.lane.b32.xlu0 %v1249, 127
    %v1253 = vpop.permute.xlu0 %1252
    %1254 = vrot.lane.b32.xlu0 %v1251, 127
    %v1255 = vpop.permute.xlu0 %1254
    %v1258 = vadd.f32 %v1186, %v1253
    %v1259 = vadd.f32 %v1187, %v1255
    %s1260 = sld [smem:[#allocation2 + $0x34]]
    %v1261 = vstv %s1260
    %v1262 = vmul.f32 %v764, %v1261
    %v1263 = vmul.f32 %v765, %v1261
    %v1264 = vmul.f32 %v766, %v1261
    %v1268 = vrot.slane %v1262, 2
    %v1269 = vrot.slane %v1263, 2
    %v1270 = vsel %vm534, %v1268, %v1269
    %v1271 = vrot.slane %v1264, 2
    %v1272 = vsel %vm534, %v1269, %v1271
    %1273 = vrot.lane.b32.xlu0 %v1270, 127
    %v1274 = vpop.permute.xlu0 %1273
    %1275 = vrot.lane.b32.xlu0 %v1272, 127
    %v1276 = vpop.permute.xlu0 %1275
    %v1279 = vadd.f32 %v1203, %v1274
    %v1280 = vadd.f32 %v1204, %v1276
    %s1281 = sld [smem:[#allocation2 + $0x58]]
    %v1282 = vstv %s1281
    %v1283 = vmul.f32 %v764, %v1282
    %v1284 = vmul.f32 %v765, %v1282
    %v1285 = vmul.f32 %v766, %v1282
    %v1289 = vrot.slane %v1283, 2
    %v1290 = vrot.slane %v1284, 2
    %v1291 = vsel %vm534, %v1289, %v1290
    %v1292 = vrot.slane %v1285, 2
    %v1293 = vsel %vm534, %v1290, %v1292
    %1294 = vrot.lane.b32.xlu0 %v1291, 127
    %v1295 = vpop.permute.xlu0 %1294
    %1296 = vrot.lane.b32.xlu0 %v1293, 127
    %v1297 = vpop.permute.xlu0 %1296
    %v1300 = vadd.f32 %v1220, %v1295
    %v1301 = vadd.f32 %v1221, %v1297
    %s1302 = sld [smem:[#allocation2 + $0x7c]]
    %v1303 = vstv %s1302
    %v1304 = vmul.f32 %v764, %v1303
    %v1305 = vmul.f32 %v765, %v1303
    %v1306 = vmul.f32 %v766, %v1303
    %v1310 = vrot.slane %v1304, 2
    %v1311 = vrot.slane %v1305, 2
    %v1312 = vsel %vm534, %v1310, %v1311
    %v1313 = vrot.slane %v1306, 2
    %v1314 = vsel %vm534, %v1311, %v1313
    %1315 = vrot.lane.b32.xlu0 %v1312, 127
    %v1316 = vpop.permute.xlu0 %1315
    %1317 = vrot.lane.b32.xlu0 %v1314, 127
    %v1318 = vpop.permute.xlu0 %1317
    %v1321 = vadd.f32 %v1237, %v1316
    %v1322 = vadd.f32 %v1238, %v1318
    %s1323 = sld [smem:[#allocation2 + $0x11]]
    %v1324 = vstv %s1323
    %v1325 = vmul.f32 %v764, %v1324
    %v1326 = vmul.f32 %v765, %v1324
    %v1327 = vmul.f32 %v766, %v1324
    %v1331 = vrot.slane %v1325, 2
    %v1332 = vrot.slane %v1326, 2
    %v1333 = vsel %vm534, %v1331, %v1332
    %v1334 = vrot.slane %v1327, 2
    %v1335 = vsel %vm534, %v1332, %v1334
    %1336 = vrot.lane.b32.xlu0 %v1333, 126
    %v1337 = vpop.permute.xlu0 %1336
    %1338 = vrot.lane.b32.xlu0 %v1335, 126
    %v1339 = vpop.permute.xlu0 %1338
    %v1342 = vadd.f32 %v1258, %v1337
    %v1343 = vadd.f32 %v1259, %v1339
    %s1344 = sld [smem:[#allocation2 + $0x35]]
    %v1345 = vstv %s1344
    %v1346 = vmul.f32 %v764, %v1345
    %v1347 = vmul.f32 %v765, %v1345
    %v1348 = vmul.f32 %v766, %v1345
    %v1352 = vrot.slane %v1346, 2
    %v1353 = vrot.slane %v1347, 2
    %v1354 = vsel %vm534, %v1352, %v1353
    %v1355 = vrot.slane %v1348, 2
    %v1356 = vsel %vm534, %v1353, %v1355
    %1357 = vrot.lane.b32.xlu0 %v1354, 126
    %v1358 = vpop.permute.xlu0 %1357
    %1359 = vrot.lane.b32.xlu0 %v1356, 126
    %v1360 = vpop.permute.xlu0 %1359
    %v1363 = vadd.f32 %v1279, %v1358
    %v1364 = vadd.f32 %v1280, %v1360
    %s1365 = sld [smem:[#allocation2 + $0x59]]
    %v1366 = vstv %s1365
    %v1367 = vmul.f32 %v764, %v1366
    %v1368 = vmul.f32 %v765, %v1366
    %v1369 = vmul.f32 %v766, %v1366
    %v1373 = vrot.slane %v1367, 2
    %v1374 = vrot.slane %v1368, 2
    %v1375 = vsel %vm534, %v1373, %v1374
    %v1376 = vrot.slane %v1369, 2
    %v1377 = vsel %vm534, %v1374, %v1376
    %1378 = vrot.lane.b32.xlu0 %v1375, 126
    %v1379 = vpop.permute.xlu0 %1378
    %1380 = vrot.lane.b32.xlu0 %v1377, 126
    %v1381 = vpop.permute.xlu0 %1380
    %v1384 = vadd.f32 %v1300, %v1379
    %v1385 = vadd.f32 %v1301, %v1381
    %s1386 = sld [smem:[#allocation2 + $0x7d]]
    %v1387 = vstv %s1386
    %v1388 = vmul.f32 %v764, %v1387
    %v1389 = vmul.f32 %v765, %v1387
    %v1390 = vmul.f32 %v766, %v1387
    %v1394 = vrot.slane %v1388, 2
    %v1395 = vrot.slane %v1389, 2
    %v1396 = vsel %vm534, %v1394, %v1395
    %v1397 = vrot.slane %v1390, 2
    %v1398 = vsel %vm534, %v1395, %v1397
    %1399 = vrot.lane.b32.xlu0 %v1396, 126
    %v1400 = vpop.permute.xlu0 %1399
    %1401 = vrot.lane.b32.xlu0 %v1398, 126
    %v1402 = vpop.permute.xlu0 %1401
    %v1405 = vadd.f32 %v1321, %v1400
    %v1406 = vadd.f32 %v1322, %v1402
    %s1407 = scalar_lea.vmem %s0, 48
    %v1408 = vld [vmem:[%s1407] sm:$0xff]
    %v1409 = vld [vmem:[%s1407 + $0x8] sm:$0xff]
    %v1410 = vld [vmem:[%s1407 + $0x10] sm:$0x3]
    %s1411 = sld [smem:[#allocation10 + $0x2]]
    %v1412 = vstv %s1411
    %v1413 = vmul.f32 %v1408, %v1412
    %v1414 = vmul.f32 %v1409, %v1412
    %v1415 = vmul.f32 %v1410, %v1412
    %v1416 = vadd.f32 %v772, %v1413
    %v1417 = vadd.f32 %v773, %v1414
    %v1418 = vadd.f32 %v774, %v1415
    %s1419 = sld [smem:[#allocation10 + $0x6]]
    %v1420 = vstv %s1419
    %v1421 = vmul.f32 %v1408, %v1420
    %v1422 = vmul.f32 %v1409, %v1420
    %v1423 = vmul.f32 %v1410, %v1420
    %v1424 = vadd.f32 %v780, %v1421
    %v1425 = vadd.f32 %v781, %v1422
    %v1426 = vadd.f32 %v782, %v1423
    %s1427 = sld [smem:[#allocation10 + $0xa]]
    %v1428 = vstv %s1427
    %v1429 = vmul.f32 %v1408, %v1428
    %v1430 = vmul.f32 %v1409, %v1428
    %v1431 = vmul.f32 %v1410, %v1428
    %v1432 = vadd.f32 %v788, %v1429
    %v1433 = vadd.f32 %v789, %v1430
    %v1434 = vadd.f32 %v790, %v1431
    %s1435 = sld [smem:[#allocation10 + $0xe]]
    %v1436 = vstv %s1435
    %v1437 = vmul.f32 %v1408, %v1436
    %v1438 = vmul.f32 %v1409, %v1436
    %v1439 = vmul.f32 %v1410, %v1436
    %v1440 = vadd.f32 %v796, %v1437
    %v1441 = vadd.f32 %v797, %v1438
    %v1442 = vadd.f32 %v798, %v1439
    %s1443 = sld [smem:[#allocation2 + $0x12]]
    %v1444 = vstv %s1443
    %v1445 = vmul.f32 %v1408, %v1444
    %v1446 = vmul.f32 %v1409, %v1444
    %v1447 = vadd.f32 %v1342, %v1445
    %v1448 = vadd.f32 %v1343, %v1446
    %s1449 = sld [smem:[#allocation2 + $0x36]]
    %v1450 = vstv %s1449
    %v1451 = vmul.f32 %v1408, %v1450
    %v1452 = vmul.f32 %v1409, %v1450
    %v1453 = vadd.f32 %v1363, %v1451
    %v1454 = vadd.f32 %v1364, %v1452
    %s1455 = sld [smem:[#allocation2 + $0x5a]]
    %v1456 = vstv %s1455
    %v1457 = vmul.f32 %v1408, %v1456
    %v1458 = vmul.f32 %v1409, %v1456
    %v1459 = vadd.f32 %v1384, %v1457
    %v1460 = vadd.f32 %v1385, %v1458
    %s1461 = sld [smem:[#allocation2 + $0x7e]]
    %v1462 = vstv %s1461
    %v1463 = vmul.f32 %v1408, %v1462
    %v1464 = vmul.f32 %v1409, %v1462
    %v1465 = vadd.f32 %v1405, %v1463
    %v1466 = vadd.f32 %v1406, %v1464
    %s1467 = sld [smem:[#allocation2 + $0x13]]
    %v1468 = vstv %s1467
    %v1469 = vmul.f32 %v1408, %v1468
    %v1470 = vmul.f32 %v1409, %v1468
    %1473 = vrot.lane.b32.xlu0 %v1469, 127
    %v1474 = vpop.permute.xlu0 %1473
    %1475 = vrot.lane.b32.xlu0 %v1470, 127
    %v1476 = vpop.permute.xlu0 %1475
    %v1479 = vadd.f32 %v1447, %v1474
    %v1480 = vadd.f32 %v1448, %v1476
    %s1481 = sld [smem:[#allocation2 + $0x37]]
    %v1482 = vstv %s1481
    %v1483 = vmul.f32 %v1408, %v1482
    %v1484 = vmul.f32 %v1409, %v1482
    %1487 = vrot.lane.b32.xlu0 %v1483, 127
    %v1488 = vpop.permute.xlu0 %1487
    %1489 = vrot.lane.b32.xlu0 %v1484, 127
    %v1490 = vpop.permute.xlu0 %1489
    %v1493 = vadd.f32 %v1453, %v1488
    %v1494 = vadd.f32 %v1454, %v1490
    %s1495 = sld [smem:[#allocation2 + $0x5b]]
    %v1496 = vstv %s1495
    %v1497 = vmul.f32 %v1408, %v1496
    %v1498 = vmul.f32 %v1409, %v1496
    %1501 = vrot.lane.b32.xlu0 %v1497, 127
    %v1502 = vpop.permute.xlu0 %1501
    %1503 = vrot.lane.b32.xlu0 %v1498, 127
    %v1504 = vpop.permute.xlu0 %1503
    %v1507 = vadd.f32 %v1459, %v1502
    %v1508 = vadd.f32 %v1460, %v1504
    %s1509 = sld [smem:[#allocation2 + $0x7f]]
    %v1510 = vstv %s1509
    %v1511 = vmul.f32 %v1408, %v1510
    %v1512 = vmul.f32 %v1409, %v1510
    %1515 = vrot.lane.b32.xlu0 %v1511, 127
    %v1516 = vpop.permute.xlu0 %1515
    %1517 = vrot.lane.b32.xlu0 %v1512, 127
    %v1518 = vpop.permute.xlu0 %1517
    %v1521 = vadd.f32 %v1465, %v1516
    %v1522 = vadd.f32 %v1466, %v1518
    %s1523 = sld [smem:[#allocation2 + $0x14]]
    %v1524 = vstv %s1523
    %v1525 = vmul.f32 %v1408, %v1524
    %v1526 = vmul.f32 %v1409, %v1524
    %1529 = vrot.lane.b32.xlu0 %v1525, 126
    %v1530 = vpop.permute.xlu0 %1529
    %1531 = vrot.lane.b32.xlu0 %v1526, 126
    %v1532 = vpop.permute.xlu0 %1531
    %v1535 = vadd.f32 %v1479, %v1530
    %v1536 = vadd.f32 %v1480, %v1532
    %s1537 = sld [smem:[#allocation2 + $0x38]]
    %v1538 = vstv %s1537
    %v1539 = vmul.f32 %v1408, %v1538
    %v1540 = vmul.f32 %v1409, %v1538
    %1543 = vrot.lane.b32.xlu0 %v1539, 126
    %v1544 = vpop.permute.xlu0 %1543
    %1545 = vrot.lane.b32.xlu0 %v1540, 126
    %v1546 = vpop.permute.xlu0 %1545
    %v1549 = vadd.f32 %v1493, %v1544
    %v1550 = vadd.f32 %v1494, %v1546
    %s1551 = sld [smem:[#allocation2 + $0x5c]]
    %v1552 = vstv %s1551
    %v1553 = vmul.f32 %v1408, %v1552
    %v1554 = vmul.f32 %v1409, %v1552
    %1557 = vrot.lane.b32.xlu0 %v1553, 126
    %v1558 = vpop.permute.xlu0 %1557
    %1559 = vrot.lane.b32.xlu0 %v1554, 126
    %v1560 = vpop.permute.xlu0 %1559
    %v1563 = vadd.f32 %v1507, %v1558
    %v1564 = vadd.f32 %v1508, %v1560
    %s1565 = sld [smem:[#allocation2 + $0x80]]
    %v1566 = vstv %s1565
    %v1567 = vmul.f32 %v1408, %v1566
    %v1568 = vmul.f32 %v1409, %v1566
    %1571 = vrot.lane.b32.xlu0 %v1567, 126
    %v1572 = vpop.permute.xlu0 %1571
    %1573 = vrot.lane.b32.xlu0 %v1568, 126
    %v1574 = vpop.permute.xlu0 %1573
    %v1577 = vadd.f32 %v1521, %v1572
    %v1578 = vadd.f32 %v1522, %v1574
    %s1579 = sld [smem:[#allocation2 + $0x15]]
    %v1580 = vstv %s1579
    %v1581 = vmul.f32 %v1408, %v1580
    %v1582 = vmul.f32 %v1409, %v1580
    %v1583 = vmul.f32 %v1410, %v1580
    %v1587 = vrot.slane %v1581, 1
    %v1588 = vrot.slane %v1582, 1
    %v1589 = vsel %vm297, %v1587, %v1588
    %v1590 = vrot.slane %v1583, 1
    %v1591 = vsel %vm297, %v1588, %v1590
    %v1594 = vadd.f32 %v1535, %v1589
    %v1595 = vadd.f32 %v1536, %v1591
    %s1596 = sld [smem:[#allocation2 + $0x39]]
    %v1597 = vstv %s1596
    %v1598 = vmul.f32 %v1408, %v1597
    %v1599 = vmul.f32 %v1409, %v1597
    %v1600 = vmul.f32 %v1410, %v1597
    %v1604 = vrot.slane %v1598, 1
    %v1605 = vrot.slane %v1599, 1
    %v1606 = vsel %vm297, %v1604, %v1605
    %v1607 = vrot.slane %v1600, 1
    %v1608 = vsel %vm297, %v1605, %v1607
    %v1611 = vadd.f32 %v1549, %v1606
    %v1612 = vadd.f32 %v1550, %v1608
    %s1613 = sld [smem:[#allocation2 + $0x5d]]
    %v1614 = vstv %s1613
    %v1615 = vmul.f32 %v1408, %v1614
    %v1616 = vmul.f32 %v1409, %v1614
    %v1617 = vmul.f32 %v1410, %v1614
    %v1621 = vrot.slane %v1615, 1
    %v1622 = vrot.slane %v1616, 1
    %v1623 = vsel %vm297, %v1621, %v1622
    %v1624 = vrot.slane %v1617, 1
    %v1625 = vsel %vm297, %v1622, %v1624
    %v1628 = vadd.f32 %v1563, %v1623
    %v1629 = vadd.f32 %v1564, %v1625
    %s1630 = sld [smem:[#allocation2 + $0x81]]
    %v1631 = vstv %s1630
    %v1632 = vmul.f32 %v1408, %v1631
    %v1633 = vmul.f32 %v1409, %v1631
    %v1634 = vmul.f32 %v1410, %v1631
    %v1638 = vrot.slane %v1632, 1
    %v1639 = vrot.slane %v1633, 1
    %v1640 = vsel %vm297, %v1638, %v1639
    %v1641 = vrot.slane %v1634, 1
    %v1642 = vsel %vm297, %v1639, %v1641
    %v1645 = vadd.f32 %v1577, %v1640
    %v1646 = vadd.f32 %v1578, %v1642
    %s1647 = sld [smem:[#allocation2 + $0x16]]
    %v1648 = vstv %s1647
    %v1649 = vmul.f32 %v1408, %v1648
    %v1650 = vmul.f32 %v1409, %v1648
    %v1651 = vmul.f32 %v1410, %v1648
    %v1655 = vrot.slane %v1649, 1
    %v1656 = vrot.slane %v1650, 1
    %v1657 = vsel %vm297, %v1655, %v1656
    %v1658 = vrot.slane %v1651, 1
    %v1659 = vsel %vm297, %v1656, %v1658
    %1660 = vrot.lane.b32.xlu0 %v1657, 127
    %v1661 = vpop.permute.xlu0 %1660
    %1662 = vrot.lane.b32.xlu0 %v1659, 127
    %v1663 = vpop.permute.xlu0 %1662
    %v1666 = vadd.f32 %v1594, %v1661
    %v1667 = vadd.f32 %v1595, %v1663
    %s1668 = sld [smem:[#allocation2 + $0x3a]]
    %v1669 = vstv %s1668
    %v1670 = vmul.f32 %v1408, %v1669
    %v1671 = vmul.f32 %v1409, %v1669
    %v1672 = vmul.f32 %v1410, %v1669
    %v1676 = vrot.slane %v1670, 1
    %v1677 = vrot.slane %v1671, 1
    %v1678 = vsel %vm297, %v1676, %v1677
    %v1679 = vrot.slane %v1672, 1
    %v1680 = vsel %vm297, %v1677, %v1679
    %1681 = vrot.lane.b32.xlu0 %v1678, 127
    %v1682 = vpop.permute.xlu0 %1681
    %1683 = vrot.lane.b32.xlu0 %v1680, 127
    %v1684 = vpop.permute.xlu0 %1683
    %v1687 = vadd.f32 %v1611, %v1682
    %v1688 = vadd.f32 %v1612, %v1684
    %s1689 = sld [smem:[#allocation2 + $0x5e]]
    %v1690 = vstv %s1689
    %v1691 = vmul.f32 %v1408, %v1690
    %v1692 = vmul.f32 %v1409, %v1690
    %v1693 = vmul.f32 %v1410, %v1690
    %v1697 = vrot.slane %v1691, 1
    %v1698 = vrot.slane %v1692, 1
    %v1699 = vsel %vm297, %v1697, %v1698
    %v1700 = vrot.slane %v1693, 1
    %v1701 = vsel %vm297, %v1698, %v1700
    %1702 = vrot.lane.b32.xlu0 %v1699, 127
    %v1703 = vpop.permute.xlu0 %1702
    %1704 = vrot.lane.b32.xlu0 %v1701, 127
    %v1705 = vpop.permute.xlu0 %1704
    %v1708 = vadd.f32 %v1628, %v1703
    %v1709 = vadd.f32 %v1629, %v1705
    %s1710 = sld [smem:[#allocation2 + $0x82]]
    %v1711 = vstv %s1710
    %v1712 = vmul.f32 %v1408, %v1711
    %v1713 = vmul.f32 %v1409, %v1711
    %v1714 = vmul.f32 %v1410, %v1711
    %v1718 = vrot.slane %v1712, 1
    %v1719 = vrot.slane %v1713, 1
    %v1720 = vsel %vm297, %v1718, %v1719
    %v1721 = vrot.slane %v1714, 1
    %v1722 = vsel %vm297, %v1719, %v1721
    %1723 = vrot.lane.b32.xlu0 %v1720, 127
    %v1724 = vpop.permute.xlu0 %1723
    %1725 = vrot.lane.b32.xlu0 %v1722, 127
    %v1726 = vpop.permute.xlu0 %1725
    %v1729 = vadd.f32 %v1645, %v1724
    %v1730 = vadd.f32 %v1646, %v1726
    %s1731 = sld [smem:[#allocation2 + $0x17]]
    %v1732 = vstv %s1731
    %v1733 = vmul.f32 %v1408, %v1732
    %v1734 = vmul.f32 %v1409, %v1732
    %v1735 = vmul.f32 %v1410, %v1732
    %v1739 = vrot.slane %v1733, 1
    %v1740 = vrot.slane %v1734, 1
    %v1741 = vsel %vm297, %v1739, %v1740
    %v1742 = vrot.slane %v1735, 1
    %v1743 = vsel %vm297, %v1740, %v1742
    %1744 = vrot.lane.b32.xlu0 %v1741, 126
    %v1745 = vpop.permute.xlu0 %1744
    %1746 = vrot.lane.b32.xlu0 %v1743, 126
    %v1747 = vpop.permute.xlu0 %1746
    %v1750 = vadd.f32 %v1666, %v1745
    %v1751 = vadd.f32 %v1667, %v1747
    %s1752 = sld [smem:[#allocation2 + $0x3b]]
    %v1753 = vstv %s1752
    %v1754 = vmul.f32 %v1408, %v1753
    %v1755 = vmul.f32 %v1409, %v1753
    %v1756 = vmul.f32 %v1410, %v1753
    %v1760 = vrot.slane %v1754, 1
    %v1761 = vrot.slane %v1755, 1
    %v1762 = vsel %vm297, %v1760, %v1761
    %v1763 = vrot.slane %v1756, 1
    %v1764 = vsel %vm297, %v1761, %v1763
    %1765 = vrot.lane.b32.xlu0 %v1762, 126
    %v1766 = vpop.permute.xlu0 %1765
    %1767 = vrot.lane.b32.xlu0 %v1764, 126
    %v1768 = vpop.permute.xlu0 %1767
    %v1771 = vadd.f32 %v1687, %v1766
    %v1772 = vadd.f32 %v1688, %v1768
    %s1773 = sld [smem:[#allocation2 + $0x5f]]
    %v1774 = vstv %s1773
    %v1775 = vmul.f32 %v1408, %v1774
    %v1776 = vmul.f32 %v1409, %v1774
    %v1777 = vmul.f32 %v1410, %v1774
    %v1781 = vrot.slane %v1775, 1
    %v1782 = vrot.slane %v1776, 1
    %v1783 = vsel %vm297, %v1781, %v1782
    %v1784 = vrot.slane %v1777, 1
    %v1785 = vsel %vm297, %v1782, %v1784
    %1786 = vrot.lane.b32.xlu0 %v1783, 126
    %v1787 = vpop.permute.xlu0 %1786
    %1788 = vrot.lane.b32.xlu0 %v1785, 126
    %v1789 = vpop.permute.xlu0 %1788
    %v1792 = vadd.f32 %v1708, %v1787
    %v1793 = vadd.f32 %v1709, %v1789
    %s1794 = sld [smem:[#allocation2 + $0x83]]
    %v1795 = vstv %s1794
    %v1796 = vmul.f32 %v1408, %v1795
    %v1797 = vmul.f32 %v1409, %v1795
    %v1798 = vmul.f32 %v1410, %v1795
    %v1802 = vrot.slane %v1796, 1
    %v1803 = vrot.slane %v1797, 1
    %v1804 = vsel %vm297, %v1802, %v1803
    %v1805 = vrot.slane %v1798, 1
    %v1806 = vsel %vm297, %v1803, %v1805
    %1807 = vrot.lane.b32.xlu0 %v1804, 126
    %v1808 = vpop.permute.xlu0 %1807
    %1809 = vrot.lane.b32.xlu0 %v1806, 126
    %v1810 = vpop.permute.xlu0 %1809
    %v1813 = vadd.f32 %v1729, %v1808
    %v1814 = vadd.f32 %v1730, %v1810
    %s1815 = sld [smem:[#allocation2 + $0x18]]
    %v1816 = vstv %s1815
    %v1817 = vmul.f32 %v1408, %v1816
    %v1818 = vmul.f32 %v1409, %v1816
    %v1819 = vmul.f32 %v1410, %v1816
    %v1823 = vrot.slane %v1817, 2
    %v1824 = vrot.slane %v1818, 2
    %v1825 = vsel %vm534, %v1823, %v1824
    %v1826 = vrot.slane %v1819, 2
    %v1827 = vsel %vm534, %v1824, %v1826
    %v1830 = vadd.f32 %v1750, %v1825
    %v1831 = vadd.f32 %v1751, %v1827
    %s1832 = sld [smem:[#allocation2 + $0x3c]]
    %v1833 = vstv %s1832
    %v1834 = vmul.f32 %v1408, %v1833
    %v1835 = vmul.f32 %v1409, %v1833
    %v1836 = vmul.f32 %v1410, %v1833
    %v1840 = vrot.slane %v1834, 2
    %v1841 = vrot.slane %v1835, 2
    %v1842 = vsel %vm534, %v1840, %v1841
    %v1843 = vrot.slane %v1836, 2
    %v1844 = vsel %vm534, %v1841, %v1843
    %v1847 = vadd.f32 %v1771, %v1842
    %v1848 = vadd.f32 %v1772, %v1844
    %s1849 = sld [smem:[#allocation2 + $0x60]]
    %v1850 = vstv %s1849
    %v1851 = vmul.f32 %v1408, %v1850
    %v1852 = vmul.f32 %v1409, %v1850
    %v1853 = vmul.f32 %v1410, %v1850
    %v1857 = vrot.slane %v1851, 2
    %v1858 = vrot.slane %v1852, 2
    %v1859 = vsel %vm534, %v1857, %v1858
    %v1860 = vrot.slane %v1853, 2
    %v1861 = vsel %vm534, %v1858, %v1860
    %v1864 = vadd.f32 %v1792, %v1859
    %v1865 = vadd.f32 %v1793, %v1861
    %s1866 = sld [smem:[#allocation2 + $0x84]]
    %v1867 = vstv %s1866
    %v1868 = vmul.f32 %v1408, %v1867
    %v1869 = vmul.f32 %v1409, %v1867
    %v1870 = vmul.f32 %v1410, %v1867
    %v1874 = vrot.slane %v1868, 2
    %v1875 = vrot.slane %v1869, 2
    %v1876 = vsel %vm534, %v1874, %v1875
    %v1877 = vrot.slane %v1870, 2
    %v1878 = vsel %vm534, %v1875, %v1877
    %v1881 = vadd.f32 %v1813, %v1876
    %v1882 = vadd.f32 %v1814, %v1878
    %s1883 = sld [smem:[#allocation2 + $0x19]]
    %v1884 = vstv %s1883
    %v1885 = vmul.f32 %v1408, %v1884
    %v1886 = vmul.f32 %v1409, %v1884
    %v1887 = vmul.f32 %v1410, %v1884
    %v1891 = vrot.slane %v1885, 2
    %v1892 = vrot.slane %v1886, 2
    %v1893 = vsel %vm534, %v1891, %v1892
    %v1894 = vrot.slane %v1887, 2
    %v1895 = vsel %vm534, %v1892, %v1894
    %1896 = vrot.lane.b32.xlu0 %v1893, 127
    %v1897 = vpop.permute.xlu0 %1896
    %1898 = vrot.lane.b32.xlu0 %v1895, 127
    %v1899 = vpop.permute.xlu0 %1898
    %v1902 = vadd.f32 %v1830, %v1897
    %v1903 = vadd.f32 %v1831, %v1899
    %s1904 = sld [smem:[#allocation2 + $0x3d]]
    %v1905 = vstv %s1904
    %v1906 = vmul.f32 %v1408, %v1905
    %v1907 = vmul.f32 %v1409, %v1905
    %v1908 = vmul.f32 %v1410, %v1905
    %v1912 = vrot.slane %v1906, 2
    %v1913 = vrot.slane %v1907, 2
    %v1914 = vsel %vm534, %v1912, %v1913
    %v1915 = vrot.slane %v1908, 2
    %v1916 = vsel %vm534, %v1913, %v1915
    %1917 = vrot.lane.b32.xlu0 %v1914, 127
    %v1918 = vpop.permute.xlu0 %1917
    %1919 = vrot.lane.b32.xlu0 %v1916, 127
    %v1920 = vpop.permute.xlu0 %1919
    %v1923 = vadd.f32 %v1847, %v1918
    %v1924 = vadd.f32 %v1848, %v1920
    %s1925 = sld [smem:[#allocation2 + $0x61]]
    %v1926 = vstv %s1925
    %v1927 = vmul.f32 %v1408, %v1926
    %v1928 = vmul.f32 %v1409, %v1926
    %v1929 = vmul.f32 %v1410, %v1926
    %v1933 = vrot.slane %v1927, 2
    %v1934 = vrot.slane %v1928, 2
    %v1935 = vsel %vm534, %v1933, %v1934
    %v1936 = vrot.slane %v1929, 2
    %v1937 = vsel %vm534, %v1934, %v1936
    %1938 = vrot.lane.b32.xlu0 %v1935, 127
    %v1939 = vpop.permute.xlu0 %1938
    %1940 = vrot.lane.b32.xlu0 %v1937, 127
    %v1941 = vpop.permute.xlu0 %1940
    %v1944 = vadd.f32 %v1864, %v1939
    %v1945 = vadd.f32 %v1865, %v1941
    %s1946 = sld [smem:[#allocation2 + $0x85]]
    %v1947 = vstv %s1946
    %v1948 = vmul.f32 %v1408, %v1947
    %v1949 = vmul.f32 %v1409, %v1947
    %v1950 = vmul.f32 %v1410, %v1947
    %v1954 = vrot.slane %v1948, 2
    %v1955 = vrot.slane %v1949, 2
    %v1956 = vsel %vm534, %v1954, %v1955
    %v1957 = vrot.slane %v1950, 2
    %v1958 = vsel %vm534, %v1955, %v1957
    %1959 = vrot.lane.b32.xlu0 %v1956, 127
    %v1960 = vpop.permute.xlu0 %1959
    %1961 = vrot.lane.b32.xlu0 %v1958, 127
    %v1962 = vpop.permute.xlu0 %1961
    %v1965 = vadd.f32 %v1881, %v1960
    %v1966 = vadd.f32 %v1882, %v1962
    %s1967 = sld [smem:[#allocation2 + $0x1a]]
    %v1968 = vstv %s1967
    %v1969 = vmul.f32 %v1408, %v1968
    %v1970 = vmul.f32 %v1409, %v1968
    %v1971 = vmul.f32 %v1410, %v1968
    %v1975 = vrot.slane %v1969, 2
    %v1976 = vrot.slane %v1970, 2
    %v1977 = vsel %vm534, %v1975, %v1976
    %v1978 = vrot.slane %v1971, 2
    %v1979 = vsel %vm534, %v1976, %v1978
    %1980 = vrot.lane.b32.xlu0 %v1977, 126
    %v1981 = vpop.permute.xlu0 %1980
    %1982 = vrot.lane.b32.xlu0 %v1979, 126
    %v1983 = vpop.permute.xlu0 %1982
    %v1986 = vadd.f32 %v1902, %v1981
    %v1987 = vadd.f32 %v1903, %v1983
    %s1988 = sld [smem:[#allocation2 + $0x3e]]
    %v1989 = vstv %s1988
    %v1990 = vmul.f32 %v1408, %v1989
    %v1991 = vmul.f32 %v1409, %v1989
    %v1992 = vmul.f32 %v1410, %v1989
    %v1996 = vrot.slane %v1990, 2
    %v1997 = vrot.slane %v1991, 2
    %v1998 = vsel %vm534, %v1996, %v1997
    %v1999 = vrot.slane %v1992, 2
    %v2000 = vsel %vm534, %v1997, %v1999
    %2001 = vrot.lane.b32.xlu0 %v1998, 126
    %v2002 = vpop.permute.xlu0 %2001
    %2003 = vrot.lane.b32.xlu0 %v2000, 126
    %v2004 = vpop.permute.xlu0 %2003
    %v2007 = vadd.f32 %v1923, %v2002
    %v2008 = vadd.f32 %v1924, %v2004
    %s2009 = sld [smem:[#allocation2 + $0x62]]
    %v2010 = vstv %s2009
    %v2011 = vmul.f32 %v1408, %v2010
    %v2012 = vmul.f32 %v1409, %v2010
    %v2013 = vmul.f32 %v1410, %v2010
    %v2017 = vrot.slane %v2011, 2
    %v2018 = vrot.slane %v2012, 2
    %v2019 = vsel %vm534, %v2017, %v2018
    %v2020 = vrot.slane %v2013, 2
    %v2021 = vsel %vm534, %v2018, %v2020
    %2022 = vrot.lane.b32.xlu0 %v2019, 126
    %v2023 = vpop.permute.xlu0 %2022
    %2024 = vrot.lane.b32.xlu0 %v2021, 126
    %v2025 = vpop.permute.xlu0 %2024
    %v2028 = vadd.f32 %v1944, %v2023
    %v2029 = vadd.f32 %v1945, %v2025
    %s2030 = sld [smem:[#allocation2 + $0x86]]
    %v2031 = vstv %s2030
    %v2032 = vmul.f32 %v1408, %v2031
    %v2033 = vmul.f32 %v1409, %v2031
    %v2034 = vmul.f32 %v1410, %v2031
    %v2038 = vrot.slane %v2032, 2
    %v2039 = vrot.slane %v2033, 2
    %v2040 = vsel %vm534, %v2038, %v2039
    %v2041 = vrot.slane %v2034, 2
    %v2042 = vsel %vm534, %v2039, %v2041
    %2043 = vrot.lane.b32.xlu0 %v2040, 126
    %v2044 = vpop.permute.xlu0 %2043
    %2045 = vrot.lane.b32.xlu0 %v2042, 126
    %v2046 = vpop.permute.xlu0 %2045
    %v2049 = vadd.f32 %v1965, %v2044
    %v2050 = vadd.f32 %v1966, %v2046
    %s2051 = scalar_lea.vmem %s0, 72
    %v2052 = vld [vmem:[%s2051] sm:$0xff]
    %v2053 = vld [vmem:[%s2051 + $0x8] sm:$0xff]
    %v2054 = vld [vmem:[%s2051 + $0x10] sm:$0x3]
    %s2055 = sld [smem:[#allocation10 + $0x3]]
    %v2056 = vstv %s2055
    %v2057 = vmul.f32 %v2052, %v2056
    %v2058 = vmul.f32 %v2053, %v2056
    %v2059 = vmul.f32 %v2054, %v2056
    %v2060 = vadd.f32 %v1416, %v2057
    %v2061 = vadd.f32 %v1417, %v2058
    %v2062 = vadd.f32 %v1418, %v2059
    %s2063 = sld [smem:[#allocation10 + $0x7]]
    %v2064 = vstv %s2063
    %v2065 = vmul.f32 %v2052, %v2064
    %v2066 = vmul.f32 %v2053, %v2064
    %v2067 = vmul.f32 %v2054, %v2064
    %v2068 = vadd.f32 %v1424, %v2065
    %v2069 = vadd.f32 %v1425, %v2066
    %v2070 = vadd.f32 %v1426, %v2067
    %s2071 = sld [smem:[#allocation10 + $0xb]]
    %v2072 = vstv %s2071
    %v2073 = vmul.f32 %v2052, %v2072
    %v2074 = vmul.f32 %v2053, %v2072
    %v2075 = vmul.f32 %v2054, %v2072
    %v2076 = vadd.f32 %v1432, %v2073
    %v2077 = vadd.f32 %v1433, %v2074
    %v2078 = vadd.f32 %v1434, %v2075
    %s2079 = sld [smem:[#allocation10 + $0xf]]
    %v2080 = vstv %s2079
    %v2081 = vmul.f32 %v2052, %v2080
    %v2082 = vmul.f32 %v2053, %v2080
    %v2083 = vmul.f32 %v2054, %v2080
    %v2084 = vadd.f32 %v1440, %v2081
    %v2085 = vadd.f32 %v1441, %v2082
    %v2086 = vadd.f32 %v1442, %v2083
    %s2087 = sld [smem:[#allocation2 + $0x1b]]
    %v2088 = vstv %s2087
    %v2089 = vmul.f32 %v2052, %v2088
    %v2090 = vmul.f32 %v2053, %v2088
    %v2091 = vadd.f32 %v1986, %v2089
    %v2092 = vadd.f32 %v1987, %v2090
    %s2093 = sld [smem:[#allocation2 + $0x3f]]
    %v2094 = vstv %s2093
    %v2095 = vmul.f32 %v2052, %v2094
    %v2096 = vmul.f32 %v2053, %v2094
    %v2097 = vadd.f32 %v2007, %v2095
    %v2098 = vadd.f32 %v2008, %v2096
    %s2099 = sld [smem:[#allocation2 + $0x63]]
    %v2100 = vstv %s2099
    %v2101 = vmul.f32 %v2052, %v2100
    %v2102 = vmul.f32 %v2053, %v2100
    %v2103 = vadd.f32 %v2028, %v2101
    %v2104 = vadd.f32 %v2029, %v2102
    %s2105 = sld [smem:[#allocation2 + $0x87]]
    %v2106 = vstv %s2105
    %v2107 = vmul.f32 %v2052, %v2106
    %v2108 = vmul.f32 %v2053, %v2106
    %v2109 = vadd.f32 %v2049, %v2107
    %v2110 = vadd.f32 %v2050, %v2108
    %s2111 = sld [smem:[#allocation2 + $0x1c]]
    %v2112 = vstv %s2111
    %v2113 = vmul.f32 %v2052, %v2112
    %v2114 = vmul.f32 %v2053, %v2112
    %2117 = vrot.lane.b32.xlu0 %v2113, 127
    %v2118 = vpop.permute.xlu0 %2117
    %2119 = vrot.lane.b32.xlu0 %v2114, 127
    %v2120 = vpop.permute.xlu0 %2119
    %v2123 = vadd.f32 %v2091, %v2118
    %v2124 = vadd.f32 %v2092, %v2120
    %s2125 = sld [smem:[#allocation2 + $0x40]]
    %v2126 = vstv %s2125
    %v2127 = vmul.f32 %v2052, %v2126
    %v2128 = vmul.f32 %v2053, %v2126
    %2131 = vrot.lane.b32.xlu0 %v2127, 127
    %v2132 = vpop.permute.xlu0 %2131
    %2133 = vrot.lane.b32.xlu0 %v2128, 127
    %v2134 = vpop.permute.xlu0 %2133
    %v2137 = vadd.f32 %v2097, %v2132
    %v2138 = vadd.f32 %v2098, %v2134
    %s2139 = sld [smem:[#allocation2 + $0x64]]
    %v2140 = vstv %s2139
    %v2141 = vmul.f32 %v2052, %v2140
    %v2142 = vmul.f32 %v2053, %v2140
    %2145 = vrot.lane.b32.xlu0 %v2141, 127
    %v2146 = vpop.permute.xlu0 %2145
    %2147 = vrot.lane.b32.xlu0 %v2142, 127
    %v2148 = vpop.permute.xlu0 %2147
    %v2151 = vadd.f32 %v2103, %v2146
    %v2152 = vadd.f32 %v2104, %v2148
    %s2153 = sld [smem:[#allocation2 + $0x88]]
    %v2154 = vstv %s2153
    %v2155 = vmul.f32 %v2052, %v2154
    %v2156 = vmul.f32 %v2053, %v2154
    %2159 = vrot.lane.b32.xlu0 %v2155, 127
    %v2160 = vpop.permute.xlu0 %2159
    %2161 = vrot.lane.b32.xlu0 %v2156, 127
    %v2162 = vpop.permute.xlu0 %2161
    %v2165 = vadd.f32 %v2109, %v2160
    %v2166 = vadd.f32 %v2110, %v2162
    %s2167 = sld [smem:[#allocation2 + $0x1d]]
    %v2168 = vstv %s2167
    %v2169 = vmul.f32 %v2052, %v2168
    %v2170 = vmul.f32 %v2053, %v2168
    %2173 = vrot.lane.b32.xlu0 %v2169, 126
    %v2174 = vpop.permute.xlu0 %2173
    %2175 = vrot.lane.b32.xlu0 %v2170, 126
    %v2176 = vpop.permute.xlu0 %2175
    %v2179 = vadd.f32 %v2123, %v2174
    %v2180 = vadd.f32 %v2124, %v2176
    %s2181 = sld [smem:[#allocation2 + $0x41]]
    %v2182 = vstv %s2181
    %v2183 = vmul.f32 %v2052, %v2182
    %v2184 = vmul.f32 %v2053, %v2182
    %2187 = vrot.lane.b32.xlu0 %v2183, 126
    %v2188 = vpop.permute.xlu0 %2187
    %2189 = vrot.lane.b32.xlu0 %v2184, 126
    %v2190 = vpop.permute.xlu0 %2189
    %v2193 = vadd.f32 %v2137, %v2188
    %v2194 = vadd.f32 %v2138, %v2190
    %s2195 = sld [smem:[#allocation2 + $0x65]]
    %v2196 = vstv %s2195
    %v2197 = vmul.f32 %v2052, %v2196
    %v2198 = vmul.f32 %v2053, %v2196
    %2201 = vrot.lane.b32.xlu0 %v2197, 126
    %v2202 = vpop.permute.xlu0 %2201
    %2203 = vrot.lane.b32.xlu0 %v2198, 126
    %v2204 = vpop.permute.xlu0 %2203
    %v2207 = vadd.f32 %v2151, %v2202
    %v2208 = vadd.f32 %v2152, %v2204
    %s2209 = sld [smem:[#allocation2 + $0x89]]
    %v2210 = vstv %s2209
    %v2211 = vmul.f32 %v2052, %v2210
    %v2212 = vmul.f32 %v2053, %v2210
    %2215 = vrot.lane.b32.xlu0 %v2211, 126
    %v2216 = vpop.permute.xlu0 %2215
    %2217 = vrot.lane.b32.xlu0 %v2212, 126
    %v2218 = vpop.permute.xlu0 %2217
    %v2221 = vadd.f32 %v2165, %v2216
    %v2222 = vadd.f32 %v2166, %v2218
    %s2223 = sld [smem:[#allocation2 + $0x1e]]
    %v2224 = vstv %s2223
    %v2225 = vmul.f32 %v2052, %v2224
    %v2226 = vmul.f32 %v2053, %v2224
    %v2227 = vmul.f32 %v2054, %v2224
    %v2231 = vrot.slane %v2225, 1
    %v2232 = vrot.slane %v2226, 1
    %v2233 = vsel %vm297, %v2231, %v2232
    %v2234 = vrot.slane %v2227, 1
    %v2235 = vsel %vm297, %v2232, %v2234
    %v2238 = vadd.f32 %v2179, %v2233
    %v2239 = vadd.f32 %v2180, %v2235
    %s2240 = sld [smem:[#allocation2 + $0x42]]
    %v2241 = vstv %s2240
    %v2242 = vmul.f32 %v2052, %v2241
    %v2243 = vmul.f32 %v2053, %v2241
    %v2244 = vmul.f32 %v2054, %v2241
    %v2248 = vrot.slane %v2242, 1
    %v2249 = vrot.slane %v2243, 1
    %v2250 = vsel %vm297, %v2248, %v2249
    %v2251 = vrot.slane %v2244, 1
    %v2252 = vsel %vm297, %v2249, %v2251
    %v2255 = vadd.f32 %v2193, %v2250
    %v2256 = vadd.f32 %v2194, %v2252
    %s2257 = sld [smem:[#allocation2 + $0x66]]
    %v2258 = vstv %s2257
    %v2259 = vmul.f32 %v2052, %v2258
    %v2260 = vmul.f32 %v2053, %v2258
    %v2261 = vmul.f32 %v2054, %v2258
    %v2265 = vrot.slane %v2259, 1
    %v2266 = vrot.slane %v2260, 1
    %v2267 = vsel %vm297, %v2265, %v2266
    %v2268 = vrot.slane %v2261, 1
    %v2269 = vsel %vm297, %v2266, %v2268
    %v2272 = vadd.f32 %v2207, %v2267
    %v2273 = vadd.f32 %v2208, %v2269
    %s2274 = sld [smem:[#allocation2 + $0x8a]]
    %v2275 = vstv %s2274
    %v2276 = vmul.f32 %v2052, %v2275
    %v2277 = vmul.f32 %v2053, %v2275
    %v2278 = vmul.f32 %v2054, %v2275
    %v2282 = vrot.slane %v2276, 1
    %v2283 = vrot.slane %v2277, 1
    %v2284 = vsel %vm297, %v2282, %v2283
    %v2285 = vrot.slane %v2278, 1
    %v2286 = vsel %vm297, %v2283, %v2285
    %v2289 = vadd.f32 %v2221, %v2284
    %v2290 = vadd.f32 %v2222, %v2286
    %s2291 = sld [smem:[#allocation2 + $0x1f]]
    %v2292 = vstv %s2291
    %v2293 = vmul.f32 %v2052, %v2292
    %v2294 = vmul.f32 %v2053, %v2292
    %v2295 = vmul.f32 %v2054, %v2292
    %v2299 = vrot.slane %v2293, 1
    %v2300 = vrot.slane %v2294, 1
    %v2301 = vsel %vm297, %v2299, %v2300
    %v2302 = vrot.slane %v2295, 1
    %v2303 = vsel %vm297, %v2300, %v2302
    %2304 = vrot.lane.b32.xlu0 %v2301, 127
    %v2305 = vpop.permute.xlu0 %2304
    %2306 = vrot.lane.b32.xlu0 %v2303, 127
    %v2307 = vpop.permute.xlu0 %2306
    %v2310 = vadd.f32 %v2238, %v2305
    %v2311 = vadd.f32 %v2239, %v2307
    %s2312 = sld [smem:[#allocation2 + $0x43]]
    %v2313 = vstv %s2312
    %v2314 = vmul.f32 %v2052, %v2313
    %v2315 = vmul.f32 %v2053, %v2313
    %v2316 = vmul.f32 %v2054, %v2313
    %v2320 = vrot.slane %v2314, 1
    %v2321 = vrot.slane %v2315, 1
    %v2322 = vsel %vm297, %v2320, %v2321
    %v2323 = vrot.slane %v2316, 1
    %v2324 = vsel %vm297, %v2321, %v2323
    %2325 = vrot.lane.b32.xlu0 %v2322, 127
    %v2326 = vpop.permute.xlu0 %2325
    %2327 = vrot.lane.b32.xlu0 %v2324, 127
    %v2328 = vpop.permute.xlu0 %2327
    %v2331 = vadd.f32 %v2255, %v2326
    %v2332 = vadd.f32 %v2256, %v2328
    %s2333 = sld [smem:[#allocation2 + $0x67]]
    %v2334 = vstv %s2333
    %v2335 = vmul.f32 %v2052, %v2334
    %v2336 = vmul.f32 %v2053, %v2334
    %v2337 = vmul.f32 %v2054, %v2334
    %v2341 = vrot.slane %v2335, 1
    %v2342 = vrot.slane %v2336, 1
    %v2343 = vsel %vm297, %v2341, %v2342
    %v2344 = vrot.slane %v2337, 1
    %v2345 = vsel %vm297, %v2342, %v2344
    %2346 = vrot.lane.b32.xlu0 %v2343, 127
    %v2347 = vpop.permute.xlu0 %2346
    %2348 = vrot.lane.b32.xlu0 %v2345, 127
    %v2349 = vpop.permute.xlu0 %2348
    %v2352 = vadd.f32 %v2272, %v2347
    %v2353 = vadd.f32 %v2273, %v2349
    %s2354 = sld [smem:[#allocation2 + $0x8b]]
    %v2355 = vstv %s2354
    %v2356 = vmul.f32 %v2052, %v2355
    %v2357 = vmul.f32 %v2053, %v2355
    %v2358 = vmul.f32 %v2054, %v2355
    %v2362 = vrot.slane %v2356, 1
    %v2363 = vrot.slane %v2357, 1
    %v2364 = vsel %vm297, %v2362, %v2363
    %v2365 = vrot.slane %v2358, 1
    %v2366 = vsel %vm297, %v2363, %v2365
    %2367 = vrot.lane.b32.xlu0 %v2364, 127
    %v2368 = vpop.permute.xlu0 %2367
    %2369 = vrot.lane.b32.xlu0 %v2366, 127
    %v2370 = vpop.permute.xlu0 %2369
    %v2373 = vadd.f32 %v2289, %v2368
    %v2374 = vadd.f32 %v2290, %v2370
    %s2375 = sld [smem:[#allocation2 + $0x20]]
    %v2376 = vstv %s2375
    %v2377 = vmul.f32 %v2052, %v2376
    %v2378 = vmul.f32 %v2053, %v2376
    %v2379 = vmul.f32 %v2054, %v2376
    %v2383 = vrot.slane %v2377, 1
    %v2384 = vrot.slane %v2378, 1
    %v2385 = vsel %vm297, %v2383, %v2384
    %v2386 = vrot.slane %v2379, 1
    %v2387 = vsel %vm297, %v2384, %v2386
    %2388 = vrot.lane.b32.xlu0 %v2385, 126
    %v2389 = vpop.permute.xlu0 %2388
    %2390 = vrot.lane.b32.xlu0 %v2387, 126
    %v2391 = vpop.permute.xlu0 %2390
    %v2394 = vadd.f32 %v2310, %v2389
    %v2395 = vadd.f32 %v2311, %v2391
    %s2396 = sld [smem:[#allocation2 + $0x44]]
    %v2397 = vstv %s2396
    %v2398 = vmul.f32 %v2052, %v2397
    %v2399 = vmul.f32 %v2053, %v2397
    %v2400 = vmul.f32 %v2054, %v2397
    %v2404 = vrot.slane %v2398, 1
    %v2405 = vrot.slane %v2399, 1
    %v2406 = vsel %vm297, %v2404, %v2405
    %v2407 = vrot.slane %v2400, 1
    %v2408 = vsel %vm297, %v2405, %v2407
    %2409 = vrot.lane.b32.xlu0 %v2406, 126
    %v2410 = vpop.permute.xlu0 %2409
    %2411 = vrot.lane.b32.xlu0 %v2408, 126
    %v2412 = vpop.permute.xlu0 %2411
    %v2415 = vadd.f32 %v2331, %v2410
    %v2416 = vadd.f32 %v2332, %v2412
    %s2417 = sld [smem:[#allocation2 + $0x68]]
    %v2418 = vstv %s2417
    %v2419 = vmul.f32 %v2052, %v2418
    %v2420 = vmul.f32 %v2053, %v2418
    %v2421 = vmul.f32 %v2054, %v2418
    %v2425 = vrot.slane %v2419, 1
    %v2426 = vrot.slane %v2420, 1
    %v2427 = vsel %vm297, %v2425, %v2426
    %v2428 = vrot.slane %v2421, 1
    %v2429 = vsel %vm297, %v2426, %v2428
    %2430 = vrot.lane.b32.xlu0 %v2427, 126
    %v2431 = vpop.permute.xlu0 %2430
    %2432 = vrot.lane.b32.xlu0 %v2429, 126
    %v2433 = vpop.permute.xlu0 %2432
    %v2436 = vadd.f32 %v2352, %v2431
    %v2437 = vadd.f32 %v2353, %v2433
    %s2438 = sld [smem:[#allocation2 + $0x8c]]
    %v2439 = vstv %s2438
    %v2440 = vmul.f32 %v2052, %v2439
    %v2441 = vmul.f32 %v2053, %v2439
    %v2442 = vmul.f32 %v2054, %v2439
    %v2446 = vrot.slane %v2440, 1
    %v2447 = vrot.slane %v2441, 1
    %v2448 = vsel %vm297, %v2446, %v2447
    %v2449 = vrot.slane %v2442, 1
    %v2450 = vsel %vm297, %v2447, %v2449
    %2451 = vrot.lane.b32.xlu0 %v2448, 126
    %v2452 = vpop.permute.xlu0 %2451
    %2453 = vrot.lane.b32.xlu0 %v2450, 126
    %v2454 = vpop.permute.xlu0 %2453
    %v2457 = vadd.f32 %v2373, %v2452
    %v2458 = vadd.f32 %v2374, %v2454
    %s2459 = sld [smem:[#allocation2 + $0x21]]
    %v2460 = vstv %s2459
    %v2461 = vmul.f32 %v2052, %v2460
    %v2462 = vmul.f32 %v2053, %v2460
    %v2463 = vmul.f32 %v2054, %v2460
    %v2467 = vrot.slane %v2461, 2
    %v2468 = vrot.slane %v2462, 2
    %v2469 = vsel %vm534, %v2467, %v2468
    %v2470 = vrot.slane %v2463, 2
    %v2471 = vsel %vm534, %v2468, %v2470
    %v2474 = vadd.f32 %v2394, %v2469
    %v2475 = vadd.f32 %v2395, %v2471
    %s2476 = sld [smem:[#allocation2 + $0x45]]
    %v2477 = vstv %s2476
    %v2478 = vmul.f32 %v2052, %v2477
    %v2479 = vmul.f32 %v2053, %v2477
    %v2480 = vmul.f32 %v2054, %v2477
    %v2484 = vrot.slane %v2478, 2
    %v2485 = vrot.slane %v2479, 2
    %v2486 = vsel %vm534, %v2484, %v2485
    %v2487 = vrot.slane %v2480, 2
    %v2488 = vsel %vm534, %v2485, %v2487
    %v2491 = vadd.f32 %v2415, %v2486
    %v2492 = vadd.f32 %v2416, %v2488
    %s2493 = sld [smem:[#allocation2 + $0x69]]
    %v2494 = vstv %s2493
    %v2495 = vmul.f32 %v2052, %v2494
    %v2496 = vmul.f32 %v2053, %v2494
    %v2497 = vmul.f32 %v2054, %v2494
    %v2501 = vrot.slane %v2495, 2
    %v2502 = vrot.slane %v2496, 2
    %v2503 = vsel %vm534, %v2501, %v2502
    %v2504 = vrot.slane %v2497, 2
    %v2505 = vsel %vm534, %v2502, %v2504
    %v2508 = vadd.f32 %v2436, %v2503
    %v2509 = vadd.f32 %v2437, %v2505
    %s2510 = sld [smem:[#allocation2 + $0x8d]]
    %v2511 = vstv %s2510
    %v2512 = vmul.f32 %v2052, %v2511
    %v2513 = vmul.f32 %v2053, %v2511
    %v2514 = vmul.f32 %v2054, %v2511
    %v2518 = vrot.slane %v2512, 2
    %v2519 = vrot.slane %v2513, 2
    %v2520 = vsel %vm534, %v2518, %v2519
    %v2521 = vrot.slane %v2514, 2
    %v2522 = vsel %vm534, %v2519, %v2521
    %v2525 = vadd.f32 %v2457, %v2520
    %v2526 = vadd.f32 %v2458, %v2522
    %s2527 = sld [smem:[#allocation2 + $0x22]]
    %v2528 = vstv %s2527
    %v2529 = vmul.f32 %v2052, %v2528
    %v2530 = vmul.f32 %v2053, %v2528
    %v2531 = vmul.f32 %v2054, %v2528
    %v2535 = vrot.slane %v2529, 2
    %v2536 = vrot.slane %v2530, 2
    %v2537 = vsel %vm534, %v2535, %v2536
    %v2538 = vrot.slane %v2531, 2
    %v2539 = vsel %vm534, %v2536, %v2538
    %2540 = vrot.lane.b32.xlu0 %v2537, 127
    %v2541 = vpop.permute.xlu0 %2540
    %2542 = vrot.lane.b32.xlu0 %v2539, 127
    %v2543 = vpop.permute.xlu0 %2542
    %v2546 = vadd.f32 %v2474, %v2541
    %v2547 = vadd.f32 %v2475, %v2543
    %s2548 = sld [smem:[#allocation2 + $0x46]]
    %v2549 = vstv %s2548
    %v2550 = vmul.f32 %v2052, %v2549
    %v2551 = vmul.f32 %v2053, %v2549
    %v2552 = vmul.f32 %v2054, %v2549
    %v2556 = vrot.slane %v2550, 2
    %v2557 = vrot.slane %v2551, 2
    %v2558 = vsel %vm534, %v2556, %v2557
    %v2559 = vrot.slane %v2552, 2
    %v2560 = vsel %vm534, %v2557, %v2559
    %2561 = vrot.lane.b32.xlu0 %v2558, 127
    %v2562 = vpop.permute.xlu0 %2561
    %2563 = vrot.lane.b32.xlu0 %v2560, 127
    %v2564 = vpop.permute.xlu0 %2563
    %v2567 = vadd.f32 %v2491, %v2562
    %v2568 = vadd.f32 %v2492, %v2564
    %s2569 = sld [smem:[#allocation2 + $0x6a]]
    %v2570 = vstv %s2569
    %v2571 = vmul.f32 %v2052, %v2570
    %v2572 = vmul.f32 %v2053, %v2570
    %v2573 = vmul.f32 %v2054, %v2570
    %v2577 = vrot.slane %v2571, 2
    %v2578 = vrot.slane %v2572, 2
    %v2579 = vsel %vm534, %v2577, %v2578
    %v2580 = vrot.slane %v2573, 2
    %v2581 = vsel %vm534, %v2578, %v2580
    %2582 = vrot.lane.b32.xlu0 %v2579, 127
    %v2583 = vpop.permute.xlu0 %2582
    %2584 = vrot.lane.b32.xlu0 %v2581, 127
    %v2585 = vpop.permute.xlu0 %2584
    %v2588 = vadd.f32 %v2508, %v2583
    %v2589 = vadd.f32 %v2509, %v2585
    %s2590 = sld [smem:[#allocation2 + $0x8e]]
    %v2591 = vstv %s2590
    %v2592 = vmul.f32 %v2052, %v2591
    %v2593 = vmul.f32 %v2053, %v2591
    %v2594 = vmul.f32 %v2054, %v2591
    %v2598 = vrot.slane %v2592, 2
    %v2599 = vrot.slane %v2593, 2
    %v2600 = vsel %vm534, %v2598, %v2599
    %v2601 = vrot.slane %v2594, 2
    %v2602 = vsel %vm534, %v2599, %v2601
    %2603 = vrot.lane.b32.xlu0 %v2600, 127
    %v2604 = vpop.permute.xlu0 %2603
    %2605 = vrot.lane.b32.xlu0 %v2602, 127
    %v2606 = vpop.permute.xlu0 %2605
    %v2609 = vadd.f32 %v2525, %v2604
    %v2610 = vadd.f32 %v2526, %v2606
    %s2611 = sld [smem:[#allocation2 + $0x23]]
    %v2612 = vstv %s2611
    %v2613 = vmul.f32 %v2052, %v2612
    %v2614 = vmul.f32 %v2053, %v2612
    %v2615 = vmul.f32 %v2054, %v2612
    %v2619 = vrot.slane %v2613, 2
    %v2620 = vrot.slane %v2614, 2
    %v2621 = vsel %vm534, %v2619, %v2620
    %v2622 = vrot.slane %v2615, 2
    %v2623 = vsel %vm534, %v2620, %v2622
    %2624 = vrot.lane.b32.xlu0 %v2621, 126
    %v2625 = vpop.permute.xlu0 %2624
    %2626 = vrot.lane.b32.xlu0 %v2623, 126
    %v2627 = vpop.permute.xlu0 %2626
    %v2630 = vadd.f32 %v2546, %v2625
    %v2631 = vadd.f32 %v2547, %v2627
    %s2632 = sld [smem:[#allocation2 + $0x47]]
    %v2633 = vstv %s2632
    %v2634 = vmul.f32 %v2052, %v2633
    %v2635 = vmul.f32 %v2053, %v2633
    %v2636 = vmul.f32 %v2054, %v2633
    %v2640 = vrot.slane %v2634, 2
    %v2641 = vrot.slane %v2635, 2
    %v2642 = vsel %vm534, %v2640, %v2641
    %v2643 = vrot.slane %v2636, 2
    %v2644 = vsel %vm534, %v2641, %v2643
    %2645 = vrot.lane.b32.xlu0 %v2642, 126
    %v2646 = vpop.permute.xlu0 %2645
    %2647 = vrot.lane.b32.xlu0 %v2644, 126
    %v2648 = vpop.permute.xlu0 %2647
    %v2651 = vadd.f32 %v2567, %v2646
    %v2652 = vadd.f32 %v2568, %v2648
    %s2653 = sld [smem:[#allocation2 + $0x6b]]
    %v2654 = vstv %s2653
    %v2655 = vmul.f32 %v2052, %v2654
    %v2656 = vmul.f32 %v2053, %v2654
    %v2657 = vmul.f32 %v2054, %v2654
    %v2661 = vrot.slane %v2655, 2
    %v2662 = vrot.slane %v2656, 2
    %v2663 = vsel %vm534, %v2661, %v2662
    %v2664 = vrot.slane %v2657, 2
    %v2665 = vsel %vm534, %v2662, %v2664
    %2666 = vrot.lane.b32.xlu0 %v2663, 126
    %v2667 = vpop.permute.xlu0 %2666
    %2668 = vrot.lane.b32.xlu0 %v2665, 126
    %v2669 = vpop.permute.xlu0 %2668
    %v2672 = vadd.f32 %v2588, %v2667
    %v2673 = vadd.f32 %v2589, %v2669
    %s2674 = sld [smem:[#allocation2 + $0x8f]]
    %v2675 = vstv %s2674
    %v2676 = vmul.f32 %v2052, %v2675
    %v2677 = vmul.f32 %v2053, %v2675
    %v2678 = vmul.f32 %v2054, %v2675
    %v2682 = vrot.slane %v2676, 2
    %v2683 = vrot.slane %v2677, 2
    %v2684 = vsel %vm534, %v2682, %v2683
    %v2685 = vrot.slane %v2678, 2
    %v2686 = vsel %vm534, %v2683, %v2685
    %2687 = vrot.lane.b32.xlu0 %v2684, 126
    %v2688 = vpop.permute.xlu0 %2687
    %2689 = vrot.lane.b32.xlu0 %v2686, 126
    %v2690 = vpop.permute.xlu0 %2689
    %v2693 = vadd.f32 %v2609, %v2688
    %v2694 = vadd.f32 %v2610, %v2690
    %v2695 = vmax.f32 %v2630, 0.0
    %v2696 = vmax.f32 %v2631, 0.0
    %v2697 = vsel %vm101, %v2695, 0.0
    %v2698 = vsel %vm101, %v2696, 0.0
    %2701 = vrot.lane.b32.xlu0 %v2697, 1
    %v2702 = vpop.permute.xlu0 %2701
    %2703 = vrot.lane.b32.xlu0 %v2698, 1
    %v2704 = vpop.permute.xlu0 %2703
    %vm2707 = vcmask 7168
    %v2708 = vsel %vm2707, 0.0, %v2702
    %v2709 = vsel %vm2707, 0.0, %v2704
    %vm2710 = vcmask 285696
    %v2711 = vsel %vm2710, %v2708, 0.0
    %v2712 = vsel %vm2710, %v2709, 0.0
    %vm2715 = vcmask 1040384
    %v2716 = vrot.slane %v2711, 7
    %v2717 = vrot.slane %v2712, 7
    %v2718 = vsel %vm2715, %v2716, %v2717
    %v2722 = vsel %vm2715, 0.0, %v2716
    %v2723 = vsel %vm2715, %v2717, 0.0
    %v2724 = vmax.f32 %v2651, 0.0
    %v2725 = vmax.f32 %v2652, 0.0
    %v2726 = vsel %vm101, %v2724, 0.0
    %v2727 = vsel %vm101, %v2725, 0.0
    %2730 = vrot.lane.b32.xlu0 %v2726, 1
    %v2731 = vpop.permute.xlu0 %2730
    %2732 = vrot.lane.b32.xlu0 %v2727, 1
    %v2733 = vpop.permute.xlu0 %2732
    %v2736 = vsel %vm2707, 0.0, %v2731
    %v2737 = vsel %vm2707, 0.0, %v2733
    %v2738 = vsel %vm2710, %v2736, 0.0
    %v2739 = vsel %vm2710, %v2737, 0.0
    %v2742 = vrot.slane %v2738, 7
    %v2743 = vrot.slane %v2739, 7
    %v2744 = vsel %vm2715, %v2742, %v2743
    %v2748 = vsel %vm2715, 0.0, %v2742
    %v2749 = vsel %vm2715, %v2743, 0.0
    %v2750 = vmax.f32 %v2672, 0.0
    %v2751 = vmax.f32 %v2673, 0.0
    %v2752 = vsel %vm101, %v2750, 0.0
    %v2753 = vsel %vm101, %v2751, 0.0
    %2756 = vrot.lane.b32.xlu0 %v2752, 1
    %v2757 = vpop.permute.xlu0 %2756
    %2758 = vrot.lane.b32.xlu0 %v2753, 1
    %v2759 = vpop.permute.xlu0 %2758
    %v2762 = vsel %vm2707, 0.0, %v2757
    %v2763 = vsel %vm2707, 0.0, %v2759
    %v2764 = vsel %vm2710, %v2762, 0.0
    %v2765 = vsel %vm2710, %v2763, 0.0
    %v2768 = vrot.slane %v2764, 7
    %v2769 = vrot.slane %v2765, 7
    %v2770 = vsel %vm2715, %v2768, %v2769
    %v2774 = vsel %vm2715, 0.0, %v2768
    %v2775 = vsel %vm2715, %v2769, 0.0
    %v2776 = vmax.f32 %v2693, 0.0
    %v2777 = vmax.f32 %v2694, 0.0
    %v2778 = vsel %vm101, %v2776, 0.0
    %v2779 = vsel %vm101, %v2777, 0.0
    %2782 = vrot.lane.b32.xlu0 %v2778, 1
    %v2783 = vpop.permute.xlu0 %2782
    %2784 = vrot.lane.b32.xlu0 %v2779, 1
    %v2785 = vpop.permute.xlu0 %2784
    %v2788 = vsel %vm2707, 0.0, %v2783
    %v2789 = vsel %vm2707, 0.0, %v2785
    %v2790 = vsel %vm2710, %v2788, 0.0
    %v2791 = vsel %vm2710, %v2789, 0.0
    %v2794 = vrot.slane %v2790, 7
    %v2795 = vrot.slane %v2791, 7
    %v2796 = vsel %vm2715, %v2794, %v2795
    %v2800 = vsel %vm2715, 0.0, %v2794
    %v2801 = vsel %vm2715, %v2795, 0.0
    %s2802 = sld [smem:[#allocation7]]
    %v2803 = vstv %s2802
    %v2804 = vmul.f32 %v2722, %v2803
    %v2805 = vmul.f32 %v2718, %v2803
    %v2808 = vrot.slane %v2804, 7
    %v2809 = vrot.slane %v2805, 7
    %v2810 = vsel %vm2715, %v2808, %v2809
    %2811 = vrot.lane.b32.xlu0 %v2808, 1
    %v2812 = vpop.permute.xlu0 %2811
    %2813 = vrot.lane.b32.xlu0 %v2810, 1
    %v2814 = vpop.permute.xlu0 %2813
    %2815 = vrot.lane.b32.xlu0 %v2809, 1
    %v2816 = vpop.permute.xlu0 %2815
    %v2820 = vadd.f32 %v2060, %v2812
    %v2821 = vadd.f32 %v2061, %v2814
    %v2822 = vadd.f32 %v2062, %v2816
    %s2823 = sld [smem:[#allocation7 + $0x24]]
    %v2824 = vstv %s2823
    %v2825 = vmul.f32 %v2722, %v2824
    %v2826 = vmul.f32 %v2718, %v2824
    %v2829 = vrot.slane %v2825, 7
    %v2830 = vrot.slane %v2826, 7
    %v2831 = vsel %vm2715, %v2829, %v2830
    %2832 = vrot.lane.b32.xlu0 %v2829, 1
    %v2833 = vpop.permute.xlu0 %2832
    %2834 = vrot.lane.b32.xlu0 %v2831, 1
    %v2835 = vpop.permute.xlu0 %2834
    %2836 = vrot.lane.b32.xlu0 %v2830, 1
    %v2837 = vpop.permute.xlu0 %2836
    %v2841 = vadd.f32 %v2068, %v2833
    %v2842 = vadd.f32 %v2069, %v2835
    %v2843 = vadd.f32 %v2070, %v2837
    %s2844 = sld [smem:[#allocation7 + $0x48]]
    %v2845 = vstv %s2844
    %v2846 = vmul.f32 %v2722, %v2845
    %v2847 = vmul.f32 %v2718, %v2845
    %v2850 = vrot.slane %v2846, 7
    %v2851 = vrot.slane %v2847, 7
    %v2852 = vsel %vm2715, %v2850, %v2851
    %2853 = vrot.lane.b32.xlu0 %v2850, 1
    %v2854 = vpop.permute.xlu0 %2853
    %2855 = vrot.lane.b32.xlu0 %v2852, 1
    %v2856 = vpop.permute.xlu0 %2855
    %2857 = vrot.lane.b32.xlu0 %v2851, 1
    %v2858 = vpop.permute.xlu0 %2857
    %v2862 = vadd.f32 %v2076, %v2854
    %v2863 = vadd.f32 %v2077, %v2856
    %v2864 = vadd.f32 %v2078, %v2858
    %s2865 = sld [smem:[#allocation7 + $0x6c]]
    %v2866 = vstv %s2865
    %v2867 = vmul.f32 %v2722, %v2866
    %v2868 = vmul.f32 %v2718, %v2866
    %v2871 = vrot.slane %v2867, 7
    %v2872 = vrot.slane %v2868, 7
    %v2873 = vsel %vm2715, %v2871, %v2872
    %2874 = vrot.lane.b32.xlu0 %v2871, 1
    %v2875 = vpop.permute.xlu0 %2874
    %2876 = vrot.lane.b32.xlu0 %v2873, 1
    %v2877 = vpop.permute.xlu0 %2876
    %2878 = vrot.lane.b32.xlu0 %v2872, 1
    %v2879 = vpop.permute.xlu0 %2878
    %v2883 = vadd.f32 %v2084, %v2875
    %v2884 = vadd.f32 %v2085, %v2877
    %v2885 = vadd.f32 %v2086, %v2879
    %s2886 = sld [smem:[#allocation7 + $0x1]]
    %v2887 = vstv %s2886
    %v2888 = vmul.f32 %v2722, %v2887
    %v2889 = vmul.f32 %v2718, %v2887
    %v2892 = vrot.slane %v2888, 7
    %v2893 = vrot.slane %v2889, 7
    %v2894 = vsel %vm2715, %v2892, %v2893
    %v2898 = vadd.f32 %v2820, %v2892
    %v2899 = vadd.f32 %v2821, %v2894
    %v2900 = vadd.f32 %v2822, %v2893
    %s2901 = sld [smem:[#allocation7 + $0x25]]
    %v2902 = vstv %s2901
    %v2903 = vmul.f32 %v2722, %v2902
    %v2904 = vmul.f32 %v2718, %v2902
    %v2907 = vrot.slane %v2903, 7
    %v2908 = vrot.slane %v2904, 7
    %v2909 = vsel %vm2715, %v2907, %v2908
    %v2913 = vadd.f32 %v2841, %v2907
    %v2914 = vadd.f32 %v2842, %v2909
    %v2915 = vadd.f32 %v2843, %v2908
    %s2916 = sld [smem:[#allocation7 + $0x49]]
    %v2917 = vstv %s2916
    %v2918 = vmul.f32 %v2722, %v2917
    %v2919 = vmul.f32 %v2718, %v2917
    %v2922 = vrot.slane %v2918, 7
    %v2923 = vrot.slane %v2919, 7
    %v2924 = vsel %vm2715, %v2922, %v2923
    %v2928 = vadd.f32 %v2862, %v2922
    %v2929 = vadd.f32 %v2863, %v2924
    %v2930 = vadd.f32 %v2864, %v2923
    %s2931 = sld [smem:[#allocation7 + $0x6d]]
    %v2932 = vstv %s2931
    %v2933 = vmul.f32 %v2722, %v2932
    %v2934 = vmul.f32 %v2718, %v2932
    %v2937 = vrot.slane %v2933, 7
    %v2938 = vrot.slane %v2934, 7
    %v2939 = vsel %vm2715, %v2937, %v2938
    %v2943 = vadd.f32 %v2883, %v2937
    %v2944 = vadd.f32 %v2884, %v2939
    %v2945 = vadd.f32 %v2885, %v2938
    %s2946 = sld [smem:[#allocation7 + $0x2]]
    %v2947 = vstv %s2946
    %v2948 = vmul.f32 %v2722, %v2947
    %v2949 = vmul.f32 %v2718, %v2947
    %v2952 = vrot.slane %v2948, 7
    %v2953 = vrot.slane %v2949, 7
    %v2954 = vsel %vm2715, %v2952, %v2953
    %2955 = vrot.lane.b32.xlu0 %v2952, 127
    %v2956 = vpop.permute.xlu0 %2955
    %2957 = vrot.lane.b32.xlu0 %v2954, 127
    %v2958 = vpop.permute.xlu0 %2957
    %2959 = vrot.lane.b32.xlu0 %v2953, 127
    %v2960 = vpop.permute.xlu0 %2959
    %v2964 = vadd.f32 %v2898, %v2956
    %v2965 = vadd.f32 %v2899, %v2958
    %v2966 = vadd.f32 %v2900, %v2960
    %s2967 = sld [smem:[#allocation7 + $0x26]]
    %v2968 = vstv %s2967
    %v2969 = vmul.f32 %v2722, %v2968
    %v2970 = vmul.f32 %v2718, %v2968
    %v2973 = vrot.slane %v2969, 7
    %v2974 = vrot.slane %v2970, 7
    %v2975 = vsel %vm2715, %v2973, %v2974
    %2976 = vrot.lane.b32.xlu0 %v2973, 127
    %v2977 = vpop.permute.xlu0 %2976
    %2978 = vrot.lane.b32.xlu0 %v2975, 127
    %v2979 = vpop.permute.xlu0 %2978
    %2980 = vrot.lane.b32.xlu0 %v2974, 127
    %v2981 = vpop.permute.xlu0 %2980
    %v2985 = vadd.f32 %v2913, %v2977
    %v2986 = vadd.f32 %v2914, %v2979
    %v2987 = vadd.f32 %v2915, %v2981
    %s2988 = sld [smem:[#allocation7 + $0x4a]]
    %v2989 = vstv %s2988
    %v2990 = vmul.f32 %v2722, %v2989
    %v2991 = vmul.f32 %v2718, %v2989
    %v2994 = vrot.slane %v2990, 7
    %v2995 = vrot.slane %v2991, 7
    %v2996 = vsel %vm2715, %v2994, %v2995
    %2997 = vrot.lane.b32.xlu0 %v2994, 127
    %v2998 = vpop.permute.xlu0 %2997
    %2999 = vrot.lane.b32.xlu0 %v2996, 127
    %v3000 = vpop.permute.xlu0 %2999
    %3001 = vrot.lane.b32.xlu0 %v2995, 127
    %v3002 = vpop.permute.xlu0 %3001
    %v3006 = vadd.f32 %v2928, %v2998
    %v3007 = vadd.f32 %v2929, %v3000
    %v3008 = vadd.f32 %v2930, %v3002
    %s3009 = sld [smem:[#allocation7 + $0x6e]]
    %v3010 = vstv %s3009
    %v3011 = vmul.f32 %v2722, %v3010
    %v3012 = vmul.f32 %v2718, %v3010
    %v3015 = vrot.slane %v3011, 7
    %v3016 = vrot.slane %v3012, 7
    %v3017 = vsel %vm2715, %v3015, %v3016
    %3018 = vrot.lane.b32.xlu0 %v3015, 127
    %v3019 = vpop.permute.xlu0 %3018
    %3020 = vrot.lane.b32.xlu0 %v3017, 127
    %v3021 = vpop.permute.xlu0 %3020
    %3022 = vrot.lane.b32.xlu0 %v3016, 127
    %v3023 = vpop.permute.xlu0 %3022
    %v3027 = vadd.f32 %v2943, %v3019
    %v3028 = vadd.f32 %v2944, %v3021
    %v3029 = vadd.f32 %v2945, %v3023
    %s3030 = sld [smem:[#allocation7 + $0x3]]
    %v3031 = vstv %s3030
    %v3032 = vmul.f32 %v2722, %v3031
    %v3033 = vmul.f32 %v2718, %v3031
    %v3034 = vmul.f32 %v2723, %v3031
    %3038 = vrot.lane.b32.xlu0 %v3032, 1
    %v3039 = vpop.permute.xlu0 %3038
    %3040 = vrot.lane.b32.xlu0 %v3033, 1
    %v3041 = vpop.permute.xlu0 %3040
    %3042 = vrot.lane.b32.xlu0 %v3034, 1
    %v3043 = vpop.permute.xlu0 %3042
    %v3047 = vadd.f32 %v2964, %v3039
    %v3048 = vadd.f32 %v2965, %v3041
    %v3049 = vadd.f32 %v2966, %v3043
    %s3050 = sld [smem:[#allocation7 + $0x27]]
    %v3051 = vstv %s3050
    %v3052 = vmul.f32 %v2722, %v3051
    %v3053 = vmul.f32 %v2718, %v3051
    %v3054 = vmul.f32 %v2723, %v3051
    %3058 = vrot.lane.b32.xlu0 %v3052, 1
    %v3059 = vpop.permute.xlu0 %3058
    %3060 = vrot.lane.b32.xlu0 %v3053, 1
    %v3061 = vpop.permute.xlu0 %3060
    %3062 = vrot.lane.b32.xlu0 %v3054, 1
    %v3063 = vpop.permute.xlu0 %3062
    %v3067 = vadd.f32 %v2985, %v3059
    %v3068 = vadd.f32 %v2986, %v3061
    %v3069 = vadd.f32 %v2987, %v3063
    %s3070 = sld [smem:[#allocation7 + $0x4b]]
    %v3071 = vstv %s3070
    %v3072 = vmul.f32 %v2722, %v3071
    %v3073 = vmul.f32 %v2718, %v3071
    %v3074 = vmul.f32 %v2723, %v3071
    %3078 = vrot.lane.b32.xlu0 %v3072, 1
    %v3079 = vpop.permute.xlu0 %3078
    %3080 = vrot.lane.b32.xlu0 %v3073, 1
    %v3081 = vpop.permute.xlu0 %3080
    %3082 = vrot.lane.b32.xlu0 %v3074, 1
    %v3083 = vpop.permute.xlu0 %3082
    %v3087 = vadd.f32 %v3006, %v3079
    %v3088 = vadd.f32 %v3007, %v3081
    %v3089 = vadd.f32 %v3008, %v3083
    %s3090 = sld [smem:[#allocation7 + $0x6f]]
    %v3091 = vstv %s3090
    %v3092 = vmul.f32 %v2722, %v3091
    %v3093 = vmul.f32 %v2718, %v3091
    %v3094 = vmul.f32 %v2723, %v3091
    %3098 = vrot.lane.b32.xlu0 %v3092, 1
    %v3099 = vpop.permute.xlu0 %3098
    %3100 = vrot.lane.b32.xlu0 %v3093, 1
    %v3101 = vpop.permute.xlu0 %3100
    %3102 = vrot.lane.b32.xlu0 %v3094, 1
    %v3103 = vpop.permute.xlu0 %3102
    %v3107 = vadd.f32 %v3027, %v3099
    %v3108 = vadd.f32 %v3028, %v3101
    %v3109 = vadd.f32 %v3029, %v3103
    %s3110 = sld [smem:[#allocation7 + $0x4]]
    %v3111 = vstv %s3110
    %v3112 = vmul.f32 %v2722, %v3111
    %v3113 = vmul.f32 %v2718, %v3111
    %v3114 = vmul.f32 %v2723, %v3111
    %v3115 = vadd.f32 %v3047, %v3112
    %v3116 = vadd.f32 %v3048, %v3113
    %v3117 = vadd.f32 %v3049, %v3114
    %s3118 = sld [smem:[#allocation7 + $0x28]]
    %v3119 = vstv %s3118
    %v3120 = vmul.f32 %v2722, %v3119
    %v3121 = vmul.f32 %v2718, %v3119
    %v3122 = vmul.f32 %v2723, %v3119
    %v3123 = vadd.f32 %v3067, %v3120
    %v3124 = vadd.f32 %v3068, %v3121
    %v3125 = vadd.f32 %v3069, %v3122
    %s3126 = sld [smem:[#allocation7 + $0x4c]]
    %v3127 = vstv %s3126
    %v3128 = vmul.f32 %v2722, %v3127
    %v3129 = vmul.f32 %v2718, %v3127
    %v3130 = vmul.f32 %v2723, %v3127
    %v3131 = vadd.f32 %v3087, %v3128
    %v3132 = vadd.f32 %v3088, %v3129
    %v3133 = vadd.f32 %v3089, %v3130
    %s3134 = sld [smem:[#allocation7 + $0x70]]
    %v3135 = vstv %s3134
    %v3136 = vmul.f32 %v2722, %v3135
    %v3137 = vmul.f32 %v2718, %v3135
    %v3138 = vmul.f32 %v2723, %v3135
    %v3139 = vadd.f32 %v3107, %v3136
    %v3140 = vadd.f32 %v3108, %v3137
    %v3141 = vadd.f32 %v3109, %v3138
    %s3142 = sld [smem:[#allocation7 + $0x5]]
    %v3143 = vstv %s3142
    %v3144 = vmul.f32 %v2722, %v3143
    %v3145 = vmul.f32 %v2718, %v3143
    %v3146 = vmul.f32 %v2723, %v3143
    %3150 = vrot.lane.b32.xlu0 %v3144, 127
    %v3151 = vpop.permute.xlu0 %3150
    %3152 = vrot.lane.b32.xlu0 %v3145, 127
    %v3153 = vpop.permute.xlu0 %3152
    %3154 = vrot.lane.b32.xlu0 %v3146, 127
    %v3155 = vpop.permute.xlu0 %3154
    %v3159 = vadd.f32 %v3115, %v3151
    %v3160 = vadd.f32 %v3116, %v3153
    %v3161 = vadd.f32 %v3117, %v3155
    %s3162 = sld [smem:[#allocation7 + $0x29]]
    %v3163 = vstv %s3162
    %v3164 = vmul.f32 %v2722, %v3163
    %v3165 = vmul.f32 %v2718, %v3163
    %v3166 = vmul.f32 %v2723, %v3163
    %3170 = vrot.lane.b32.xlu0 %v3164, 127
    %v3171 = vpop.permute.xlu0 %3170
    %3172 = vrot.lane.b32.xlu0 %v3165, 127
    %v3173 = vpop.permute.xlu0 %3172
    %3174 = vrot.lane.b32.xlu0 %v3166, 127
    %v3175 = vpop.permute.xlu0 %3174
    %v3179 = vadd.f32 %v3123, %v3171
    %v3180 = vadd.f32 %v3124, %v3173
    %v3181 = vadd.f32 %v3125, %v3175
    %s3182 = sld [smem:[#allocation7 + $0x4d]]
    %v3183 = vstv %s3182
    %v3184 = vmul.f32 %v2722, %v3183
    %v3185 = vmul.f32 %v2718, %v3183
    %v3186 = vmul.f32 %v2723, %v3183
    %3190 = vrot.lane.b32.xlu0 %v3184, 127
    %v3191 = vpop.permute.xlu0 %3190
    %3192 = vrot.lane.b32.xlu0 %v3185, 127
    %v3193 = vpop.permute.xlu0 %3192
    %3194 = vrot.lane.b32.xlu0 %v3186, 127
    %v3195 = vpop.permute.xlu0 %3194
    %v3199 = vadd.f32 %v3131, %v3191
    %v3200 = vadd.f32 %v3132, %v3193
    %v3201 = vadd.f32 %v3133, %v3195
    %s3202 = sld [smem:[#allocation7 + $0x71]]
    %v3203 = vstv %s3202
    %v3204 = vmul.f32 %v2722, %v3203
    %v3205 = vmul.f32 %v2718, %v3203
    %v3206 = vmul.f32 %v2723, %v3203
    %3210 = vrot.lane.b32.xlu0 %v3204, 127
    %v3211 = vpop.permute.xlu0 %3210
    %3212 = vrot.lane.b32.xlu0 %v3205, 127
    %v3213 = vpop.permute.xlu0 %3212
    %3214 = vrot.lane.b32.xlu0 %v3206, 127
    %v3215 = vpop.permute.xlu0 %3214
    %v3219 = vadd.f32 %v3139, %v3211
    %v3220 = vadd.f32 %v3140, %v3213
    %v3221 = vadd.f32 %v3141, %v3215
    %s3222 = sld [smem:[#allocation7 + $0x6]]
    %v3223 = vstv %s3222
    %v3224 = vmul.f32 %v2722, %v3223
    %v3225 = vmul.f32 %v2718, %v3223
    %v3226 = vmul.f32 %v2723, %v3223
    %v3230 = vrot.slane %v3224, 1
    %v3231 = vrot.slane %v3225, 1
    %v3232 = vsel %vm297, %v3230, %v3231
    %v3233 = vrot.slane %v3226, 1
    %v3234 = vsel %vm297, %v3231, %v3233
    %3235 = vrot.lane.b32.xlu0 %v3232, 1
    %v3236 = vpop.permute.xlu0 %3235
    %3237 = vrot.lane.b32.xlu0 %v3234, 1
    %v3238 = vpop.permute.xlu0 %3237
    %3239 = vrot.lane.b32.xlu0 %v3233, 1
    %v3240 = vpop.permute.xlu0 %3239
    %v3244 = vadd.f32 %v3159, %v3236
    %v3245 = vadd.f32 %v3160, %v3238
    %v3246 = vadd.f32 %v3161, %v3240
    %s3247 = sld [smem:[#allocation7 + $0x2a]]
    %v3248 = vstv %s3247
    %v3249 = vmul.f32 %v2722, %v3248
    %v3250 = vmul.f32 %v2718, %v3248
    %v3251 = vmul.f32 %v2723, %v3248
    %v3255 = vrot.slane %v3249, 1
    %v3256 = vrot.slane %v3250, 1
    %v3257 = vsel %vm297, %v3255, %v3256
    %v3258 = vrot.slane %v3251, 1
    %v3259 = vsel %vm297, %v3256, %v3258
    %3260 = vrot.lane.b32.xlu0 %v3257, 1
    %v3261 = vpop.permute.xlu0 %3260
    %3262 = vrot.lane.b32.xlu0 %v3259, 1
    %v3263 = vpop.permute.xlu0 %3262
    %3264 = vrot.lane.b32.xlu0 %v3258, 1
    %v3265 = vpop.permute.xlu0 %3264
    %v3269 = vadd.f32 %v3179, %v3261
    %v3270 = vadd.f32 %v3180, %v3263
    %v3271 = vadd.f32 %v3181, %v3265
    %s3272 = sld [smem:[#allocation7 + $0x4e]]
    %v3273 = vstv %s3272
    %v3274 = vmul.f32 %v2722, %v3273
    %v3275 = vmul.f32 %v2718, %v3273
    %v3276 = vmul.f32 %v2723, %v3273
    %v3280 = vrot.slane %v3274, 1
    %v3281 = vrot.slane %v3275, 1
    %v3282 = vsel %vm297, %v3280, %v3281
    %v3283 = vrot.slane %v3276, 1
    %v3284 = vsel %vm297, %v3281, %v3283
    %3285 = vrot.lane.b32.xlu0 %v3282, 1
    %v3286 = vpop.permute.xlu0 %3285
    %3287 = vrot.lane.b32.xlu0 %v3284, 1
    %v3288 = vpop.permute.xlu0 %3287
    %3289 = vrot.lane.b32.xlu0 %v3283, 1
    %v3290 = vpop.permute.xlu0 %3289
    %v3294 = vadd.f32 %v3199, %v3286
    %v3295 = vadd.f32 %v3200, %v3288
    %v3296 = vadd.f32 %v3201, %v3290
    %s3297 = sld [smem:[#allocation7 + $0x72]]
    %v3298 = vstv %s3297
    %v3299 = vmul.f32 %v2722, %v3298
    %v3300 = vmul.f32 %v2718, %v3298
    %v3301 = vmul.f32 %v2723, %v3298
    %v3305 = vrot.slane %v3299, 1
    %v3306 = vrot.slane %v3300, 1
    %v3307 = vsel %vm297, %v3305, %v3306
    %v3308 = vrot.slane %v3301, 1
    %v3309 = vsel %vm297, %v3306, %v3308
    %3310 = vrot.lane.b32.xlu0 %v3307, 1
    %v3311 = vpop.permute.xlu0 %3310
    %3312 = vrot.lane.b32.xlu0 %v3309, 1
    %v3313 = vpop.permute.xlu0 %3312
    %3314 = vrot.lane.b32.xlu0 %v3308, 1
    %v3315 = vpop.permute.xlu0 %3314
    %v3319 = vadd.f32 %v3219, %v3311
    %v3320 = vadd.f32 %v3220, %v3313
    %v3321 = vadd.f32 %v3221, %v3315
    %s3322 = sld [smem:[#allocation7 + $0x7]]
    %v3323 = vstv %s3322
    %v3324 = vmul.f32 %v2722, %v3323
    %v3325 = vmul.f32 %v2718, %v3323
    %v3326 = vmul.f32 %v2723, %v3323
    %v3330 = vrot.slane %v3324, 1
    %v3331 = vrot.slane %v3325, 1
    %v3332 = vsel %vm297, %v3330, %v3331
    %v3333 = vrot.slane %v3326, 1
    %v3334 = vsel %vm297, %v3331, %v3333
    %v3338 = vadd.f32 %v3244, %v3332
    %v3339 = vadd.f32 %v3245, %v3334
    %v3340 = vadd.f32 %v3246, %v3333
    %s3341 = sld [smem:[#allocation7 + $0x2b]]
    %v3342 = vstv %s3341
    %v3343 = vmul.f32 %v2722, %v3342
    %v3344 = vmul.f32 %v2718, %v3342
    %v3345 = vmul.f32 %v2723, %v3342
    %v3349 = vrot.slane %v3343, 1
    %v3350 = vrot.slane %v3344, 1
    %v3351 = vsel %vm297, %v3349, %v3350
    %v3352 = vrot.slane %v3345, 1
    %v3353 = vsel %vm297, %v3350, %v3352
    %v3357 = vadd.f32 %v3269, %v3351
    %v3358 = vadd.f32 %v3270, %v3353
    %v3359 = vadd.f32 %v3271, %v3352
    %s3360 = sld [smem:[#allocation7 + $0x4f]]
    %v3361 = vstv %s3360
    %v3362 = vmul.f32 %v2722, %v3361
    %v3363 = vmul.f32 %v2718, %v3361
    %v3364 = vmul.f32 %v2723, %v3361
    %v3368 = vrot.slane %v3362, 1
    %v3369 = vrot.slane %v3363, 1
    %v3370 = vsel %vm297, %v3368, %v3369
    %v3371 = vrot.slane %v3364, 1
    %v3372 = vsel %vm297, %v3369, %v3371
    %v3376 = vadd.f32 %v3294, %v3370
    %v3377 = vadd.f32 %v3295, %v3372
    %v3378 = vadd.f32 %v3296, %v3371
    %s3379 = sld [smem:[#allocation7 + $0x73]]
    %v3380 = vstv %s3379
    %v3381 = vmul.f32 %v2722, %v3380
    %v3382 = vmul.f32 %v2718, %v3380
    %v3383 = vmul.f32 %v2723, %v3380
    %v3387 = vrot.slane %v3381, 1
    %v3388 = vrot.slane %v3382, 1
    %v3389 = vsel %vm297, %v3387, %v3388
    %v3390 = vrot.slane %v3383, 1
    %v3391 = vsel %vm297, %v3388, %v3390
    %v3395 = vadd.f32 %v3319, %v3389
    %v3396 = vadd.f32 %v3320, %v3391
    %v3397 = vadd.f32 %v3321, %v3390
    %s3398 = sld [smem:[#allocation7 + $0x8]]
    %v3399 = vstv %s3398
    %v3400 = vmul.f32 %v2722, %v3399
    %v3401 = vmul.f32 %v2718, %v3399
    %v3402 = vmul.f32 %v2723, %v3399
    %v3406 = vrot.slane %v3400, 1
    %v3407 = vrot.slane %v3401, 1
    %v3408 = vsel %vm297, %v3406, %v3407
    %v3409 = vrot.slane %v3402, 1
    %v3410 = vsel %vm297, %v3407, %v3409
    %3411 = vrot.lane.b32.xlu0 %v3408, 127
    %v3412 = vpop.permute.xlu0 %3411
    %3413 = vrot.lane.b32.xlu0 %v3410, 127
    %v3414 = vpop.permute.xlu0 %3413
    %3415 = vrot.lane.b32.xlu0 %v3409, 127
    %v3416 = vpop.permute.xlu0 %3415
    %v3420 = vadd.f32 %v3338, %v3412
    %v3421 = vadd.f32 %v3339, %v3414
    %v3422 = vadd.f32 %v3340, %v3416
    %s3423 = sld [smem:[#allocation7 + $0x2c]]
    %v3424 = vstv %s3423
    %v3425 = vmul.f32 %v2722, %v3424
    %v3426 = vmul.f32 %v2718, %v3424
    %v3427 = vmul.f32 %v2723, %v3424
    %v3431 = vrot.slane %v3425, 1
    %v3432 = vrot.slane %v3426, 1
    %v3433 = vsel %vm297, %v3431, %v3432
    %v3434 = vrot.slane %v3427, 1
    %v3435 = vsel %vm297, %v3432, %v3434
    %3436 = vrot.lane.b32.xlu0 %v3433, 127
    %v3437 = vpop.permute.xlu0 %3436
    %3438 = vrot.lane.b32.xlu0 %v3435, 127
    %v3439 = vpop.permute.xlu0 %3438
    %3440 = vrot.lane.b32.xlu0 %v3434, 127
    %v3441 = vpop.permute.xlu0 %3440
    %v3445 = vadd.f32 %v3357, %v3437
    %v3446 = vadd.f32 %v3358, %v3439
    %v3447 = vadd.f32 %v3359, %v3441
    %s3448 = sld [smem:[#allocation7 + $0x50]]
    %v3449 = vstv %s3448
    %v3450 = vmul.f32 %v2722, %v3449
    %v3451 = vmul.f32 %v2718, %v3449
    %v3452 = vmul.f32 %v2723, %v3449
    %v3456 = vrot.slane %v3450, 1
    %v3457 = vrot.slane %v3451, 1
    %v3458 = vsel %vm297, %v3456, %v3457
    %v3459 = vrot.slane %v3452, 1
    %v3460 = vsel %vm297, %v3457, %v3459
    %3461 = vrot.lane.b32.xlu0 %v3458, 127
    %v3462 = vpop.permute.xlu0 %3461
    %3463 = vrot.lane.b32.xlu0 %v3460, 127
    %v3464 = vpop.permute.xlu0 %3463
    %3465 = vrot.lane.b32.xlu0 %v3459, 127
    %v3466 = vpop.permute.xlu0 %3465
    %v3470 = vadd.f32 %v3376, %v3462
    %v3471 = vadd.f32 %v3377, %v3464
    %v3472 = vadd.f32 %v3378, %v3466
    %s3473 = sld [smem:[#allocation7 + $0x74]]
    %v3474 = vstv %s3473
    %v3475 = vmul.f32 %v2722, %v3474
    %v3476 = vmul.f32 %v2718, %v3474
    %v3477 = vmul.f32 %v2723, %v3474
    %v3481 = vrot.slane %v3475, 1
    %v3482 = vrot.slane %v3476, 1
    %v3483 = vsel %vm297, %v3481, %v3482
    %v3484 = vrot.slane %v3477, 1
    %v3485 = vsel %vm297, %v3482, %v3484
    %3486 = vrot.lane.b32.xlu0 %v3483, 127
    %v3487 = vpop.permute.xlu0 %3486
    %3488 = vrot.lane.b32.xlu0 %v3485, 127
    %v3489 = vpop.permute.xlu0 %3488
    %3490 = vrot.lane.b32.xlu0 %v3484, 127
    %v3491 = vpop.permute.xlu0 %3490
    %v3495 = vadd.f32 %v3395, %v3487
    %v3496 = vadd.f32 %v3396, %v3489
    %v3497 = vadd.f32 %v3397, %v3491
    %s3498 = sld [smem:[#allocation7 + $0x9]]
    %v3499 = vstv %s3498
    %v3500 = vmul.f32 %v2748, %v3499
    %v3501 = vmul.f32 %v2744, %v3499
    %v3504 = vrot.slane %v3500, 7
    %v3505 = vrot.slane %v3501, 7
    %v3506 = vsel %vm2715, %v3504, %v3505
    %3507 = vrot.lane.b32.xlu0 %v3504, 1
    %v3508 = vpop.permute.xlu0 %3507
    %3509 = vrot.lane.b32.xlu0 %v3506, 1
    %v3510 = vpop.permute.xlu0 %3509
    %3511 = vrot.lane.b32.xlu0 %v3505, 1
    %v3512 = vpop.permute.xlu0 %3511
    %v3516 = vadd.f32 %v3420, %v3508
    %v3517 = vadd.f32 %v3421, %v3510
    %v3518 = vadd.f32 %v3422, %v3512
    %s3519 = sld [smem:[#allocation7 + $0x2d]]
    %v3520 = vstv %s3519
    %v3521 = vmul.f32 %v2748, %v3520
    %v3522 = vmul.f32 %v2744, %v3520
    %v3525 = vrot.slane %v3521, 7
    %v3526 = vrot.slane %v3522, 7
    %v3527 = vsel %vm2715, %v3525, %v3526
    %3528 = vrot.lane.b32.xlu0 %v3525, 1
    %v3529 = vpop.permute.xlu0 %3528
    %3530 = vrot.lane.b32.xlu0 %v3527, 1
    %v3531 = vpop.permute.xlu0 %3530
    %3532 = vrot.lane.b32.xlu0 %v3526, 1
    %v3533 = vpop.permute.xlu0 %3532
    %v3537 = vadd.f32 %v3445, %v3529
    %v3538 = vadd.f32 %v3446, %v3531
    %v3539 = vadd.f32 %v3447, %v3533
    %s3540 = sld [smem:[#allocation7 + $0x51]]
    %v3541 = vstv %s3540
    %v3542 = vmul.f32 %v2748, %v3541
    %v3543 = vmul.f32 %v2744, %v3541
    %v3546 = vrot.slane %v3542, 7
    %v3547 = vrot.slane %v3543, 7
    %v3548 = vsel %vm2715, %v3546, %v3547
    %3549 = vrot.lane.b32.xlu0 %v3546, 1
    %v3550 = vpop.permute.xlu0 %3549
    %3551 = vrot.lane.b32.xlu0 %v3548, 1
    %v3552 = vpop.permute.xlu0 %3551
    %3553 = vrot.lane.b32.xlu0 %v3547, 1
    %v3554 = vpop.permute.xlu0 %3553
    %v3558 = vadd.f32 %v3470, %v3550
    %v3559 = vadd.f32 %v3471, %v3552
    %v3560 = vadd.f32 %v3472, %v3554
    %s3561 = sld [smem:[#allocation7 + $0x75]]
    %v3562 = vstv %s3561
    %v3563 = vmul.f32 %v2748, %v3562
    %v3564 = vmul.f32 %v2744, %v3562
    %v3567 = vrot.slane %v3563, 7
    %v3568 = vrot.slane %v3564, 7
    %v3569 = vsel %vm2715, %v3567, %v3568
    %3570 = vrot.lane.b32.xlu0 %v3567, 1
    %v3571 = vpop.permute.xlu0 %3570
    %3572 = vrot.lane.b32.xlu0 %v3569, 1
    %v3573 = vpop.permute.xlu0 %3572
    %3574 = vrot.lane.b32.xlu0 %v3568, 1
    %v3575 = vpop.permute.xlu0 %3574
    %v3579 = vadd.f32 %v3495, %v3571
    %v3580 = vadd.f32 %v3496, %v3573
    %v3581 = vadd.f32 %v3497, %v3575
    %s3582 = sld [smem:[#allocation7 + $0xa]]
    %v3583 = vstv %s3582
    %v3584 = vmul.f32 %v2748, %v3583
    %v3585 = vmul.f32 %v2744, %v3583
    %v3588 = vrot.slane %v3584, 7
    %v3589 = vrot.slane %v3585, 7
    %v3590 = vsel %vm2715, %v3588, %v3589
    %v3594 = vadd.f32 %v3516, %v3588
    %v3595 = vadd.f32 %v3517, %v3590
    %v3596 = vadd.f32 %v3518, %v3589
    %s3597 = sld [smem:[#allocation7 + $0x2e]]
    %v3598 = vstv %s3597
    %v3599 = vmul.f32 %v2748, %v3598
    %v3600 = vmul.f32 %v2744, %v3598
    %v3603 = vrot.slane %v3599, 7
    %v3604 = vrot.slane %v3600, 7
    %v3605 = vsel %vm2715, %v3603, %v3604
    %v3609 = vadd.f32 %v3537, %v3603
    %v3610 = vadd.f32 %v3538, %v3605
    %v3611 = vadd.f32 %v3539, %v3604
    %s3612 = sld [smem:[#allocation7 + $0x52]]
    %v3613 = vstv %s3612
    %v3614 = vmul.f32 %v2748, %v3613
    %v3615 = vmul.f32 %v2744, %v3613
    %v3618 = vrot.slane %v3614, 7
    %v3619 = vrot.slane %v3615, 7
    %v3620 = vsel %vm2715, %v3618, %v3619
    %v3624 = vadd.f32 %v3558, %v3618
    %v3625 = vadd.f32 %v3559, %v3620
    %v3626 = vadd.f32 %v3560, %v3619
    %s3627 = sld [smem:[#allocation7 + $0x76]]
    %v3628 = vstv %s3627
    %v3629 = vmul.f32 %v2748, %v3628
    %v3630 = vmul.f32 %v2744, %v3628
    %v3633 = vrot.slane %v3629, 7
    %v3634 = vrot.slane %v3630, 7
    %v3635 = vsel %vm2715, %v3633, %v3634
    %v3639 = vadd.f32 %v3579, %v3633
    %v3640 = vadd.f32 %v3580, %v3635
    %v3641 = vadd.f32 %v3581, %v3634
    %s3642 = sld [smem:[#allocation7 + $0xb]]
    %v3643 = vstv %s3642
    %v3644 = vmul.f32 %v2748, %v3643
    %v3645 = vmul.f32 %v2744, %v3643
    %v3648 = vrot.slane %v3644, 7
    %v3649 = vrot.slane %v3645, 7
    %v3650 = vsel %vm2715, %v3648, %v3649
    %3651 = vrot.lane.b32.xlu0 %v3648, 127
    %v3652 = vpop.permute.xlu0 %3651
    %3653 = vrot.lane.b32.xlu0 %v3650, 127
    %v3654 = vpop.permute.xlu0 %3653
    %3655 = vrot.lane.b32.xlu0 %v3649, 127
    %v3656 = vpop.permute.xlu0 %3655
    %v3660 = vadd.f32 %v3594, %v3652
    %v3661 = vadd.f32 %v3595, %v3654
    %v3662 = vadd.f32 %v3596, %v3656
    %s3663 = sld [smem:[#allocation7 + $0x2f]]
    %v3664 = vstv %s3663
    %v3665 = vmul.f32 %v2748, %v3664
    %v3666 = vmul.f32 %v2744, %v3664
    %v3669 = vrot.slane %v3665, 7
    %v3670 = vrot.slane %v3666, 7
    %v3671 = vsel %vm2715, %v3669, %v3670
    %3672 = vrot.lane.b32.xlu0 %v3669, 127
    %v3673 = vpop.permute.xlu0 %3672
    %3674 = vrot.lane.b32.xlu0 %v3671, 127
    %v3675 = vpop.permute.xlu0 %3674
    %3676 = vrot.lane.b32.xlu0 %v3670, 127
    %v3677 = vpop.permute.xlu0 %3676
    %v3681 = vadd.f32 %v3609, %v3673
    %v3682 = vadd.f32 %v3610, %v3675
    %v3683 = vadd.f32 %v3611, %v3677
    %s3684 = sld [smem:[#allocation7 + $0x53]]
    %v3685 = vstv %s3684
    %v3686 = vmul.f32 %v2748, %v3685
    %v3687 = vmul.f32 %v2744, %v3685
    %v3690 = vrot.slane %v3686, 7
    %v3691 = vrot.slane %v3687, 7
    %v3692 = vsel %vm2715, %v3690, %v3691
    %3693 = vrot.lane.b32.xlu0 %v3690, 127
    %v3694 = vpop.permute.xlu0 %3693
    %3695 = vrot.lane.b32.xlu0 %v3692, 127
    %v3696 = vpop.permute.xlu0 %3695
    %3697 = vrot.lane.b32.xlu0 %v3691, 127
    %v3698 = vpop.permute.xlu0 %3697
    %v3702 = vadd.f32 %v3624, %v3694
    %v3703 = vadd.f32 %v3625, %v3696
    %v3704 = vadd.f32 %v3626, %v3698
    %s3705 = sld [smem:[#allocation7 + $0x77]]
    %v3706 = vstv %s3705
    %v3707 = vmul.f32 %v2748, %v3706
    %v3708 = vmul.f32 %v2744, %v3706
    %v3711 = vrot.slane %v3707, 7
    %v3712 = vrot.slane %v3708, 7
    %v3713 = vsel %vm2715, %v3711, %v3712
    %3714 = vrot.lane.b32.xlu0 %v3711, 127
    %v3715 = vpop.permute.xlu0 %3714
    %3716 = vrot.lane.b32.xlu0 %v3713, 127
    %v3717 = vpop.permute.xlu0 %3716
    %3718 = vrot.lane.b32.xlu0 %v3712, 127
    %v3719 = vpop.permute.xlu0 %3718
    %v3723 = vadd.f32 %v3639, %v3715
    %v3724 = vadd.f32 %v3640, %v3717
    %v3725 = vadd.f32 %v3641, %v3719
    %s3726 = sld [smem:[#allocation7 + $0xc]]
    %v3727 = vstv %s3726
    %v3728 = vmul.f32 %v2748, %v3727
    %v3729 = vmul.f32 %v2744, %v3727
    %v3730 = vmul.f32 %v2749, %v3727
    %3734 = vrot.lane.b32.xlu0 %v3728, 1
    %v3735 = vpop.permute.xlu0 %3734
    %3736 = vrot.lane.b32.xlu0 %v3729, 1
    %v3737 = vpop.permute.xlu0 %3736
    %3738 = vrot.lane.b32.xlu0 %v3730, 1
    %v3739 = vpop.permute.xlu0 %3738
    %v3743 = vadd.f32 %v3660, %v3735
    %v3744 = vadd.f32 %v3661, %v3737
    %v3745 = vadd.f32 %v3662, %v3739
    %s3746 = sld [smem:[#allocation7 + $0x30]]
    %v3747 = vstv %s3746
    %v3748 = vmul.f32 %v2748, %v3747
    %v3749 = vmul.f32 %v2744, %v3747
    %v3750 = vmul.f32 %v2749, %v3747
    %3754 = vrot.lane.b32.xlu0 %v3748, 1
    %v3755 = vpop.permute.xlu0 %3754
    %3756 = vrot.lane.b32.xlu0 %v3749, 1
    %v3757 = vpop.permute.xlu0 %3756
    %3758 = vrot.lane.b32.xlu0 %v3750, 1
    %v3759 = vpop.permute.xlu0 %3758
    %v3763 = vadd.f32 %v3681, %v3755
    %v3764 = vadd.f32 %v3682, %v3757
    %v3765 = vadd.f32 %v3683, %v3759
    %s3766 = sld [smem:[#allocation7 + $0x54]]
    %v3767 = vstv %s3766
    %v3768 = vmul.f32 %v2748, %v3767
    %v3769 = vmul.f32 %v2744, %v3767
    %v3770 = vmul.f32 %v2749, %v3767
    %3774 = vrot.lane.b32.xlu0 %v3768, 1
    %v3775 = vpop.permute.xlu0 %3774
    %3776 = vrot.lane.b32.xlu0 %v3769, 1
    %v3777 = vpop.permute.xlu0 %3776
    %3778 = vrot.lane.b32.xlu0 %v3770, 1
    %v3779 = vpop.permute.xlu0 %3778
    %v3783 = vadd.f32 %v3702, %v3775
    %v3784 = vadd.f32 %v3703, %v3777
    %v3785 = vadd.f32 %v3704, %v3779
    %s3786 = sld [smem:[#allocation7 + $0x78]]
    %v3787 = vstv %s3786
    %v3788 = vmul.f32 %v2748, %v3787
    %v3789 = vmul.f32 %v2744, %v3787
    %v3790 = vmul.f32 %v2749, %v3787
    %3794 = vrot.lane.b32.xlu0 %v3788, 1
    %v3795 = vpop.permute.xlu0 %3794
    %3796 = vrot.lane.b32.xlu0 %v3789, 1
    %v3797 = vpop.permute.xlu0 %3796
    %3798 = vrot.lane.b32.xlu0 %v3790, 1
    %v3799 = vpop.permute.xlu0 %3798
    %v3803 = vadd.f32 %v3723, %v3795
    %v3804 = vadd.f32 %v3724, %v3797
    %v3805 = vadd.f32 %v3725, %v3799
    %s3806 = sld [smem:[#allocation7 + $0xd]]
    %v3807 = vstv %s3806
    %v3808 = vmul.f32 %v2748, %v3807
    %v3809 = vmul.f32 %v2744, %v3807
    %v3810 = vmul.f32 %v2749, %v3807
    %v3811 = vadd.f32 %v3743, %v3808
    %v3812 = vadd.f32 %v3744, %v3809
    %v3813 = vadd.f32 %v3745, %v3810
    %s3814 = sld [smem:[#allocation7 + $0x31]]
    %v3815 = vstv %s3814
    %v3816 = vmul.f32 %v2748, %v3815
    %v3817 = vmul.f32 %v2744, %v3815
    %v3818 = vmul.f32 %v2749, %v3815
    %v3819 = vadd.f32 %v3763, %v3816
    %v3820 = vadd.f32 %v3764, %v3817
    %v3821 = vadd.f32 %v3765, %v3818
    %s3822 = sld [smem:[#allocation7 + $0x55]]
    %v3823 = vstv %s3822
    %v3824 = vmul.f32 %v2748, %v3823
    %v3825 = vmul.f32 %v2744, %v3823
    %v3826 = vmul.f32 %v2749, %v3823
    %v3827 = vadd.f32 %v3783, %v3824
    %v3828 = vadd.f32 %v3784, %v3825
    %v3829 = vadd.f32 %v3785, %v3826
    %s3830 = sld [smem:[#allocation7 + $0x79]]
    %v3831 = vstv %s3830
    %v3832 = vmul.f32 %v2748, %v3831
    %v3833 = vmul.f32 %v2744, %v3831
    %v3834 = vmul.f32 %v2749, %v3831
    %v3835 = vadd.f32 %v3803, %v3832
    %v3836 = vadd.f32 %v3804, %v3833
    %v3837 = vadd.f32 %v3805, %v3834
    %s3838 = sld [smem:[#allocation7 + $0xe]]
    %v3839 = vstv %s3838
    %v3840 = vmul.f32 %v2748, %v3839
    %v3841 = vmul.f32 %v2744, %v3839
    %v3842 = vmul.f32 %v2749, %v3839
    %3846 = vrot.lane.b32.xlu0 %v3840, 127
    %v3847 = vpop.permute.xlu0 %3846
    %3848 = vrot.lane.b32.xlu0 %v3841, 127
    %v3849 = vpop.permute.xlu0 %3848
    %3850 = vrot.lane.b32.xlu0 %v3842, 127
    %v3851 = vpop.permute.xlu0 %3850
    %v3855 = vadd.f32 %v3811, %v3847
    %v3856 = vadd.f32 %v3812, %v3849
    %v3857 = vadd.f32 %v3813, %v3851
    %s3858 = sld [smem:[#allocation7 + $0x32]]
    %v3859 = vstv %s3858
    %v3860 = vmul.f32 %v2748, %v3859
    %v3861 = vmul.f32 %v2744, %v3859
    %v3862 = vmul.f32 %v2749, %v3859
    %3866 = vrot.lane.b32.xlu0 %v3860, 127
    %v3867 = vpop.permute.xlu0 %3866
    %3868 = vrot.lane.b32.xlu0 %v3861, 127
    %v3869 = vpop.permute.xlu0 %3868
    %3870 = vrot.lane.b32.xlu0 %v3862, 127
    %v3871 = vpop.permute.xlu0 %3870
    %v3875 = vadd.f32 %v3819, %v3867
    %v3876 = vadd.f32 %v3820, %v3869
    %v3877 = vadd.f32 %v3821, %v3871
    %s3878 = sld [smem:[#allocation7 + $0x56]]
    %v3879 = vstv %s3878
    %v3880 = vmul.f32 %v2748, %v3879
    %v3881 = vmul.f32 %v2744, %v3879
    %v3882 = vmul.f32 %v2749, %v3879
    %3886 = vrot.lane.b32.xlu0 %v3880, 127
    %v3887 = vpop.permute.xlu0 %3886
    %3888 = vrot.lane.b32.xlu0 %v3881, 127
    %v3889 = vpop.permute.xlu0 %3888
    %3890 = vrot.lane.b32.xlu0 %v3882, 127
    %v3891 = vpop.permute.xlu0 %3890
    %v3895 = vadd.f32 %v3827, %v3887
    %v3896 = vadd.f32 %v3828, %v3889
    %v3897 = vadd.f32 %v3829, %v3891
    %s3898 = sld [smem:[#allocation7 + $0x7a]]
    %v3899 = vstv %s3898
    %v3900 = vmul.f32 %v2748, %v3899
    %v3901 = vmul.f32 %v2744, %v3899
    %v3902 = vmul.f32 %v2749, %v3899
    %3906 = vrot.lane.b32.xlu0 %v3900, 127
    %v3907 = vpop.permute.xlu0 %3906
    %3908 = vrot.lane.b32.xlu0 %v3901, 127
    %v3909 = vpop.permute.xlu0 %3908
    %3910 = vrot.lane.b32.xlu0 %v3902, 127
    %v3911 = vpop.permute.xlu0 %3910
    %v3915 = vadd.f32 %v3835, %v3907
    %v3916 = vadd.f32 %v3836, %v3909
    %v3917 = vadd.f32 %v3837, %v3911
    %s3918 = sld [smem:[#allocation7 + $0xf]]
    %v3919 = vstv %s3918
    %v3920 = vmul.f32 %v2748, %v3919
    %v3921 = vmul.f32 %v2744, %v3919
    %v3922 = vmul.f32 %v2749, %v3919
    %v3926 = vrot.slane %v3920, 1
    %v3927 = vrot.slane %v3921, 1
    %v3928 = vsel %vm297, %v3926, %v3927
    %v3929 = vrot.slane %v3922, 1
    %v3930 = vsel %vm297, %v3927, %v3929
    %3931 = vrot.lane.b32.xlu0 %v3928, 1
    %v3932 = vpop.permute.xlu0 %3931
    %3933 = vrot.lane.b32.xlu0 %v3930, 1
    %v3934 = vpop.permute.xlu0 %3933
    %3935 = vrot.lane.b32.xlu0 %v3929, 1
    %v3936 = vpop.permute.xlu0 %3935
    %v3940 = vadd.f32 %v3855, %v3932
    %v3941 = vadd.f32 %v3856, %v3934
    %v3942 = vadd.f32 %v3857, %v3936
    %s3943 = sld [smem:[#allocation7 + $0x33]]
    %v3944 = vstv %s3943
    %v3945 = vmul.f32 %v2748, %v3944
    %v3946 = vmul.f32 %v2744, %v3944
    %v3947 = vmul.f32 %v2749, %v3944
    %v3951 = vrot.slane %v3945, 1
    %v3952 = vrot.slane %v3946, 1
    %v3953 = vsel %vm297, %v3951, %v3952
    %v3954 = vrot.slane %v3947, 1
    %v3955 = vsel %vm297, %v3952, %v3954
    %3956 = vrot.lane.b32.xlu0 %v3953, 1
    %v3957 = vpop.permute.xlu0 %3956
    %3958 = vrot.lane.b32.xlu0 %v3955, 1
    %v3959 = vpop.permute.xlu0 %3958
    %3960 = vrot.lane.b32.xlu0 %v3954, 1
    %v3961 = vpop.permute.xlu0 %3960
    %v3965 = vadd.f32 %v3875, %v3957
    %v3966 = vadd.f32 %v3876, %v3959
    %v3967 = vadd.f32 %v3877, %v3961
    %s3968 = sld [smem:[#allocation7 + $0x57]]
    %v3969 = vstv %s3968
    %v3970 = vmul.f32 %v2748, %v3969
    %v3971 = vmul.f32 %v2744, %v3969
    %v3972 = vmul.f32 %v2749, %v3969
    %v3976 = vrot.slane %v3970, 1
    %v3977 = vrot.slane %v3971, 1
    %v3978 = vsel %vm297, %v3976, %v3977
    %v3979 = vrot.slane %v3972, 1
    %v3980 = vsel %vm297, %v3977, %v3979
    %3981 = vrot.lane.b32.xlu0 %v3978, 1
    %v3982 = vpop.permute.xlu0 %3981
    %3983 = vrot.lane.b32.xlu0 %v3980, 1
    %v3984 = vpop.permute.xlu0 %3983
    %3985 = vrot.lane.b32.xlu0 %v3979, 1
    %v3986 = vpop.permute.xlu0 %3985
    %v3990 = vadd.f32 %v3895, %v3982
    %v3991 = vadd.f32 %v3896, %v3984
    %v3992 = vadd.f32 %v3897, %v3986
    %s3993 = sld [smem:[#allocation7 + $0x7b]]
    %v3994 = vstv %s3993
    %v3995 = vmul.f32 %v2748, %v3994
    %v3996 = vmul.f32 %v2744, %v3994
    %v3997 = vmul.f32 %v2749, %v3994
    %v4001 = vrot.slane %v3995, 1
    %v4002 = vrot.slane %v3996, 1
    %v4003 = vsel %vm297, %v4001, %v4002
    %v4004 = vrot.slane %v3997, 1
    %v4005 = vsel %vm297, %v4002, %v4004
    %4006 = vrot.lane.b32.xlu0 %v4003, 1
    %v4007 = vpop.permute.xlu0 %4006
    %4008 = vrot.lane.b32.xlu0 %v4005, 1
    %v4009 = vpop.permute.xlu0 %4008
    %4010 = vrot.lane.b32.xlu0 %v4004, 1
    %v4011 = vpop.permute.xlu0 %4010
    %v4015 = vadd.f32 %v3915, %v4007
    %v4016 = vadd.f32 %v3916, %v4009
    %v4017 = vadd.f32 %v3917, %v4011
    %s4018 = sld [smem:[#allocation7 + $0x10]]
    %v4019 = vstv %s4018
    %v4020 = vmul.f32 %v2748, %v4019
    %v4021 = vmul.f32 %v2744, %v4019
    %v4022 = vmul.f32 %v2749, %v4019
    %v4026 = vrot.slane %v4020, 1
    %v4027 = vrot.slane %v4021, 1
    %v4028 = vsel %vm297, %v4026, %v4027
    %v4029 = vrot.slane %v4022, 1
    %v4030 = vsel %vm297, %v4027, %v4029
    %v4034 = vadd.f32 %v3940, %v4028
    %v4035 = vadd.f32 %v3941, %v4030
    %v4036 = vadd.f32 %v3942, %v4029
    %s4037 = sld [smem:[#allocation7 + $0x34]]
    %v4038 = vstv %s4037
    %v4039 = vmul.f32 %v2748, %v4038
    %v4040 = vmul.f32 %v2744, %v4038
    %v4041 = vmul.f32 %v2749, %v4038
    %v4045 = vrot.slane %v4039, 1
    %v4046 = vrot.slane %v4040, 1
    %v4047 = vsel %vm297, %v4045, %v4046
    %v4048 = vrot.slane %v4041, 1
    %v4049 = vsel %vm297, %v4046, %v4048
    %v4053 = vadd.f32 %v3965, %v4047
    %v4054 = vadd.f32 %v3966, %v4049
    %v4055 = vadd.f32 %v3967, %v4048
    %s4056 = sld [smem:[#allocation7 + $0x58]]
    %v4057 = vstv %s4056
    %v4058 = vmul.f32 %v2748, %v4057
    %v4059 = vmul.f32 %v2744, %v4057
    %v4060 = vmul.f32 %v2749, %v4057
    %v4064 = vrot.slane %v4058, 1
    %v4065 = vrot.slane %v4059, 1
    %v4066 = vsel %vm297, %v4064, %v4065
    %v4067 = vrot.slane %v4060, 1
    %v4068 = vsel %vm297, %v4065, %v4067
    %v4072 = vadd.f32 %v3990, %v4066
    %v4073 = vadd.f32 %v3991, %v4068
    %v4074 = vadd.f32 %v3992, %v4067
    %s4075 = sld [smem:[#allocation7 + $0x7c]]
    %v4076 = vstv %s4075
    %v4077 = vmul.f32 %v2748, %v4076
    %v4078 = vmul.f32 %v2744, %v4076
    %v4079 = vmul.f32 %v2749, %v4076
    %v4083 = vrot.slane %v4077, 1
    %v4084 = vrot.slane %v4078, 1
    %v4085 = vsel %vm297, %v4083, %v4084
    %v4086 = vrot.slane %v4079, 1
    %v4087 = vsel %vm297, %v4084, %v4086
    %v4091 = vadd.f32 %v4015, %v4085
    %v4092 = vadd.f32 %v4016, %v4087
    %v4093 = vadd.f32 %v4017, %v4086
    %s4094 = sld [smem:[#allocation7 + $0x11]]
    %v4095 = vstv %s4094
    %v4096 = vmul.f32 %v2748, %v4095
    %v4097 = vmul.f32 %v2744, %v4095
    %v4098 = vmul.f32 %v2749, %v4095
    %v4102 = vrot.slane %v4096, 1
    %v4103 = vrot.slane %v4097, 1
    %v4104 = vsel %vm297, %v4102, %v4103
    %v4105 = vrot.slane %v4098, 1
    %v4106 = vsel %vm297, %v4103, %v4105
    %4107 = vrot.lane.b32.xlu0 %v4104, 127
    %v4108 = vpop.permute.xlu0 %4107
    %4109 = vrot.lane.b32.xlu0 %v4106, 127
    %v4110 = vpop.permute.xlu0 %4109
    %4111 = vrot.lane.b32.xlu0 %v4105, 127
    %v4112 = vpop.permute.xlu0 %4111
    %v4116 = vadd.f32 %v4034, %v4108
    %v4117 = vadd.f32 %v4035, %v4110
    %v4118 = vadd.f32 %v4036, %v4112
    %s4119 = sld [smem:[#allocation7 + $0x35]]
    %v4120 = vstv %s4119
    %v4121 = vmul.f32 %v2748, %v4120
    %v4122 = vmul.f32 %v2744, %v4120
    %v4123 = vmul.f32 %v2749, %v4120
    %v4127 = vrot.slane %v4121, 1
    %v4128 = vrot.slane %v4122, 1
    %v4129 = vsel %vm297, %v4127, %v4128
    %v4130 = vrot.slane %v4123, 1
    %v4131 = vsel %vm297, %v4128, %v4130
    %4132 = vrot.lane.b32.xlu0 %v4129, 127
    %v4133 = vpop.permute.xlu0 %4132
    %4134 = vrot.lane.b32.xlu0 %v4131, 127
    %v4135 = vpop.permute.xlu0 %4134
    %4136 = vrot.lane.b32.xlu0 %v4130, 127
    %v4137 = vpop.permute.xlu0 %4136
    %v4141 = vadd.f32 %v4053, %v4133
    %v4142 = vadd.f32 %v4054, %v4135
    %v4143 = vadd.f32 %v4055, %v4137
    %s4144 = sld [smem:[#allocation7 + $0x59]]
    %v4145 = vstv %s4144
    %v4146 = vmul.f32 %v2748, %v4145
    %v4147 = vmul.f32 %v2744, %v4145
    %v4148 = vmul.f32 %v2749, %v4145
    %v4152 = vrot.slane %v4146, 1
    %v4153 = vrot.slane %v4147, 1
    %v4154 = vsel %vm297, %v4152, %v4153
    %v4155 = vrot.slane %v4148, 1
    %v4156 = vsel %vm297, %v4153, %v4155
    %4157 = vrot.lane.b32.xlu0 %v4154, 127
    %v4158 = vpop.permute.xlu0 %4157
    %4159 = vrot.lane.b32.xlu0 %v4156, 127
    %v4160 = vpop.permute.xlu0 %4159
    %4161 = vrot.lane.b32.xlu0 %v4155, 127
    %v4162 = vpop.permute.xlu0 %4161
    %v4166 = vadd.f32 %v4072, %v4158
    %v4167 = vadd.f32 %v4073, %v4160
    %v4168 = vadd.f32 %v4074, %v4162
    %s4169 = sld [smem:[#allocation7 + $0x7d]]
    %v4170 = vstv %s4169
    %v4171 = vmul.f32 %v2748, %v4170
    %v4172 = vmul.f32 %v2744, %v4170
    %v4173 = vmul.f32 %v2749, %v4170
    %v4177 = vrot.slane %v4171, 1
    %v4178 = vrot.slane %v4172, 1
    %v4179 = vsel %vm297, %v4177, %v4178
    %v4180 = vrot.slane %v4173, 1
    %v4181 = vsel %vm297, %v4178, %v4180
    %4182 = vrot.lane.b32.xlu0 %v4179, 127
    %v4183 = vpop.permute.xlu0 %4182
    %4184 = vrot.lane.b32.xlu0 %v4181, 127
    %v4185 = vpop.permute.xlu0 %4184
    %4186 = vrot.lane.b32.xlu0 %v4180, 127
    %v4187 = vpop.permute.xlu0 %4186
    %v4191 = vadd.f32 %v4091, %v4183
    %v4192 = vadd.f32 %v4092, %v4185
    %v4193 = vadd.f32 %v4093, %v4187
    %s4194 = sld [smem:[#allocation7 + $0x12]]
    %v4195 = vstv %s4194
    %v4196 = vmul.f32 %v2774, %v4195
    %v4197 = vmul.f32 %v2770, %v4195
    %v4200 = vrot.slane %v4196, 7
    %v4201 = vrot.slane %v4197, 7
    %v4202 = vsel %vm2715, %v4200, %v4201
    %4203 = vrot.lane.b32.xlu0 %v4200, 1
    %v4204 = vpop.permute.xlu0 %4203
    %4205 = vrot.lane.b32.xlu0 %v4202, 1
    %v4206 = vpop.permute.xlu0 %4205
    %4207 = vrot.lane.b32.xlu0 %v4201, 1
    %v4208 = vpop.permute.xlu0 %4207
    %v4212 = vadd.f32 %v4116, %v4204
    %v4213 = vadd.f32 %v4117, %v4206
    %v4214 = vadd.f32 %v4118, %v4208
    %s4215 = sld [smem:[#allocation7 + $0x36]]
    %v4216 = vstv %s4215
    %v4217 = vmul.f32 %v2774, %v4216
    %v4218 = vmul.f32 %v2770, %v4216
    %v4221 = vrot.slane %v4217, 7
    %v4222 = vrot.slane %v4218, 7
    %v4223 = vsel %vm2715, %v4221, %v4222
    %4224 = vrot.lane.b32.xlu0 %v4221, 1
    %v4225 = vpop.permute.xlu0 %4224
    %4226 = vrot.lane.b32.xlu0 %v4223, 1
    %v4227 = vpop.permute.xlu0 %4226
    %4228 = vrot.lane.b32.xlu0 %v4222, 1
    %v4229 = vpop.permute.xlu0 %4228
    %v4233 = vadd.f32 %v4141, %v4225
    %v4234 = vadd.f32 %v4142, %v4227
    %v4235 = vadd.f32 %v4143, %v4229
    %s4236 = sld [smem:[#allocation7 + $0x5a]]
    %v4237 = vstv %s4236
    %v4238 = vmul.f32 %v2774, %v4237
    %v4239 = vmul.f32 %v2770, %v4237
    %v4242 = vrot.slane %v4238, 7
    %v4243 = vrot.slane %v4239, 7
    %v4244 = vsel %vm2715, %v4242, %v4243
    %4245 = vrot.lane.b32.xlu0 %v4242, 1
    %v4246 = vpop.permute.xlu0 %4245
    %4247 = vrot.lane.b32.xlu0 %v4244, 1
    %v4248 = vpop.permute.xlu0 %4247
    %4249 = vrot.lane.b32.xlu0 %v4243, 1
    %v4250 = vpop.permute.xlu0 %4249
    %v4254 = vadd.f32 %v4166, %v4246
    %v4255 = vadd.f32 %v4167, %v4248
    %v4256 = vadd.f32 %v4168, %v4250
    %s4257 = sld [smem:[#allocation7 + $0x7e]]
    %v4258 = vstv %s4257
    %v4259 = vmul.f32 %v2774, %v4258
    %v4260 = vmul.f32 %v2770, %v4258
    %v4263 = vrot.slane %v4259, 7
    %v4264 = vrot.slane %v4260, 7
    %v4265 = vsel %vm2715, %v4263, %v4264
    %4266 = vrot.lane.b32.xlu0 %v4263, 1
    %v4267 = vpop.permute.xlu0 %4266
    %4268 = vrot.lane.b32.xlu0 %v4265, 1
    %v4269 = vpop.permute.xlu0 %4268
    %4270 = vrot.lane.b32.xlu0 %v4264, 1
    %v4271 = vpop.permute.xlu0 %4270
    %v4275 = vadd.f32 %v4191, %v4267
    %v4276 = vadd.f32 %v4192, %v4269
    %v4277 = vadd.f32 %v4193, %v4271
    %s4278 = sld [smem:[#allocation7 + $0x13]]
    %v4279 = vstv %s4278
    %v4280 = vmul.f32 %v2774, %v4279
    %v4281 = vmul.f32 %v2770, %v4279
    %v4284 = vrot.slane %v4280, 7
    %v4285 = vrot.slane %v4281, 7
    %v4286 = vsel %vm2715, %v4284, %v4285
    %v4290 = vadd.f32 %v4212, %v4284
    %v4291 = vadd.f32 %v4213, %v4286
    %v4292 = vadd.f32 %v4214, %v4285
    %s4293 = sld [smem:[#allocation7 + $0x37]]
    %v4294 = vstv %s4293
    %v4295 = vmul.f32 %v2774, %v4294
    %v4296 = vmul.f32 %v2770, %v4294
    %v4299 = vrot.slane %v4295, 7
    %v4300 = vrot.slane %v4296, 7
    %v4301 = vsel %vm2715, %v4299, %v4300
    %v4305 = vadd.f32 %v4233, %v4299
    %v4306 = vadd.f32 %v4234, %v4301
    %v4307 = vadd.f32 %v4235, %v4300
    %s4308 = sld [smem:[#allocation7 + $0x5b]]
    %v4309 = vstv %s4308
    %v4310 = vmul.f32 %v2774, %v4309
    %v4311 = vmul.f32 %v2770, %v4309
    %v4314 = vrot.slane %v4310, 7
    %v4315 = vrot.slane %v4311, 7
    %v4316 = vsel %vm2715, %v4314, %v4315
    %v4320 = vadd.f32 %v4254, %v4314
    %v4321 = vadd.f32 %v4255, %v4316
    %v4322 = vadd.f32 %v4256, %v4315
    %s4323 = sld [smem:[#allocation7 + $0x7f]]
    %v4324 = vstv %s4323
    %v4325 = vmul.f32 %v2774, %v4324
    %v4326 = vmul.f32 %v2770, %v4324
    %v4329 = vrot.slane %v4325, 7
    %v4330 = vrot.slane %v4326, 7
    %v4331 = vsel %vm2715, %v4329, %v4330
    %v4335 = vadd.f32 %v4275, %v4329
    %v4336 = vadd.f32 %v4276, %v4331
    %v4337 = vadd.f32 %v4277, %v4330
    %s4338 = sld [smem:[#allocation7 + $0x14]]
    %v4339 = vstv %s4338
    %v4340 = vmul.f32 %v2774, %v4339
    %v4341 = vmul.f32 %v2770, %v4339
    %v4344 = vrot.slane %v4340, 7
    %v4345 = vrot.slane %v4341, 7
    %v4346 = vsel %vm2715, %v4344, %v4345
    %4347 = vrot.lane.b32.xlu0 %v4344, 127
    %v4348 = vpop.permute.xlu0 %4347
    %4349 = vrot.lane.b32.xlu0 %v4346, 127
    %v4350 = vpop.permute.xlu0 %4349
    %4351 = vrot.lane.b32.xlu0 %v4345, 127
    %v4352 = vpop.permute.xlu0 %4351
    %v4356 = vadd.f32 %v4290, %v4348
    %v4357 = vadd.f32 %v4291, %v4350
    %v4358 = vadd.f32 %v4292, %v4352
    %s4359 = sld [smem:[#allocation7 + $0x38]]
    %v4360 = vstv %s4359
    %v4361 = vmul.f32 %v2774, %v4360
    %v4362 = vmul.f32 %v2770, %v4360
    %v4365 = vrot.slane %v4361, 7
    %v4366 = vrot.slane %v4362, 7
    %v4367 = vsel %vm2715, %v4365, %v4366
    %4368 = vrot.lane.b32.xlu0 %v4365, 127
    %v4369 = vpop.permute.xlu0 %4368
    %4370 = vrot.lane.b32.xlu0 %v4367, 127
    %v4371 = vpop.permute.xlu0 %4370
    %4372 = vrot.lane.b32.xlu0 %v4366, 127
    %v4373 = vpop.permute.xlu0 %4372
    %v4377 = vadd.f32 %v4305, %v4369
    %v4378 = vadd.f32 %v4306, %v4371
    %v4379 = vadd.f32 %v4307, %v4373
    %s4380 = sld [smem:[#allocation7 + $0x5c]]
    %v4381 = vstv %s4380
    %v4382 = vmul.f32 %v2774, %v4381
    %v4383 = vmul.f32 %v2770, %v4381
    %v4386 = vrot.slane %v4382, 7
    %v4387 = vrot.slane %v4383, 7
    %v4388 = vsel %vm2715, %v4386, %v4387
    %4389 = vrot.lane.b32.xlu0 %v4386, 127
    %v4390 = vpop.permute.xlu0 %4389
    %4391 = vrot.lane.b32.xlu0 %v4388, 127
    %v4392 = vpop.permute.xlu0 %4391
    %4393 = vrot.lane.b32.xlu0 %v4387, 127
    %v4394 = vpop.permute.xlu0 %4393
    %v4398 = vadd.f32 %v4320, %v4390
    %v4399 = vadd.f32 %v4321, %v4392
    %v4400 = vadd.f32 %v4322, %v4394
    %s4401 = sld [smem:[#allocation7 + $0x80]]
    %v4402 = vstv %s4401
    %v4403 = vmul.f32 %v2774, %v4402
    %v4404 = vmul.f32 %v2770, %v4402
    %v4407 = vrot.slane %v4403, 7
    %v4408 = vrot.slane %v4404, 7
    %v4409 = vsel %vm2715, %v4407, %v4408
    %4410 = vrot.lane.b32.xlu0 %v4407, 127
    %v4411 = vpop.permute.xlu0 %4410
    %4412 = vrot.lane.b32.xlu0 %v4409, 127
    %v4413 = vpop.permute.xlu0 %4412
    %4414 = vrot.lane.b32.xlu0 %v4408, 127
    %v4415 = vpop.permute.xlu0 %4414
    %v4419 = vadd.f32 %v4335, %v4411
    %v4420 = vadd.f32 %v4336, %v4413
    %v4421 = vadd.f32 %v4337, %v4415
    %s4422 = sld [smem:[#allocation7 + $0x15]]
    %v4423 = vstv %s4422
    %v4424 = vmul.f32 %v2774, %v4423
    %v4425 = vmul.f32 %v2770, %v4423
    %v4426 = vmul.f32 %v2775, %v4423
    %4430 = vrot.lane.b32.xlu0 %v4424, 1
    %v4431 = vpop.permute.xlu0 %4430
    %4432 = vrot.lane.b32.xlu0 %v4425, 1
    %v4433 = vpop.permute.xlu0 %4432
    %4434 = vrot.lane.b32.xlu0 %v4426, 1
    %v4435 = vpop.permute.xlu0 %4434
    %v4439 = vadd.f32 %v4356, %v4431
    %v4440 = vadd.f32 %v4357, %v4433
    %v4441 = vadd.f32 %v4358, %v4435
    %s4442 = sld [smem:[#allocation7 + $0x39]]
    %v4443 = vstv %s4442
    %v4444 = vmul.f32 %v2774, %v4443
    %v4445 = vmul.f32 %v2770, %v4443
    %v4446 = vmul.f32 %v2775, %v4443
    %4450 = vrot.lane.b32.xlu0 %v4444, 1
    %v4451 = vpop.permute.xlu0 %4450
    %4452 = vrot.lane.b32.xlu0 %v4445, 1
    %v4453 = vpop.permute.xlu0 %4452
    %4454 = vrot.lane.b32.xlu0 %v4446, 1
    %v4455 = vpop.permute.xlu0 %4454
    %v4459 = vadd.f32 %v4377, %v4451
    %v4460 = vadd.f32 %v4378, %v4453
    %v4461 = vadd.f32 %v4379, %v4455
    %s4462 = sld [smem:[#allocation7 + $0x5d]]
    %v4463 = vstv %s4462
    %v4464 = vmul.f32 %v2774, %v4463
    %v4465 = vmul.f32 %v2770, %v4463
    %v4466 = vmul.f32 %v2775, %v4463
    %4470 = vrot.lane.b32.xlu0 %v4464, 1
    %v4471 = vpop.permute.xlu0 %4470
    %4472 = vrot.lane.b32.xlu0 %v4465, 1
    %v4473 = vpop.permute.xlu0 %4472
    %4474 = vrot.lane.b32.xlu0 %v4466, 1
    %v4475 = vpop.permute.xlu0 %4474
    %v4479 = vadd.f32 %v4398, %v4471
    %v4480 = vadd.f32 %v4399, %v4473
    %v4481 = vadd.f32 %v4400, %v4475
    %s4482 = sld [smem:[#allocation7 + $0x81]]
    %v4483 = vstv %s4482
    %v4484 = vmul.f32 %v2774, %v4483
    %v4485 = vmul.f32 %v2770, %v4483
    %v4486 = vmul.f32 %v2775, %v4483
    %4490 = vrot.lane.b32.xlu0 %v4484, 1
    %v4491 = vpop.permute.xlu0 %4490
    %4492 = vrot.lane.b32.xlu0 %v4485, 1
    %v4493 = vpop.permute.xlu0 %4492
    %4494 = vrot.lane.b32.xlu0 %v4486, 1
    %v4495 = vpop.permute.xlu0 %4494
    %v4499 = vadd.f32 %v4419, %v4491
    %v4500 = vadd.f32 %v4420, %v4493
    %v4501 = vadd.f32 %v4421, %v4495
    %s4502 = sld [smem:[#allocation7 + $0x16]]
    %v4503 = vstv %s4502
    %v4504 = vmul.f32 %v2774, %v4503
    %v4505 = vmul.f32 %v2770, %v4503
    %v4506 = vmul.f32 %v2775, %v4503
    %v4507 = vadd.f32 %v4439, %v4504
    %v4508 = vadd.f32 %v4440, %v4505
    %v4509 = vadd.f32 %v4441, %v4506
    %s4510 = sld [smem:[#allocation7 + $0x3a]]
    %v4511 = vstv %s4510
    %v4512 = vmul.f32 %v2774, %v4511
    %v4513 = vmul.f32 %v2770, %v4511
    %v4514 = vmul.f32 %v2775, %v4511
    %v4515 = vadd.f32 %v4459, %v4512
    %v4516 = vadd.f32 %v4460, %v4513
    %v4517 = vadd.f32 %v4461, %v4514
    %s4518 = sld [smem:[#allocation7 + $0x5e]]
    %v4519 = vstv %s4518
    %v4520 = vmul.f32 %v2774, %v4519
    %v4521 = vmul.f32 %v2770, %v4519
    %v4522 = vmul.f32 %v2775, %v4519
    %v4523 = vadd.f32 %v4479, %v4520
    %v4524 = vadd.f32 %v4480, %v4521
    %v4525 = vadd.f32 %v4481, %v4522
    %s4526 = sld [smem:[#allocation7 + $0x82]]
    %v4527 = vstv %s4526
    %v4528 = vmul.f32 %v2774, %v4527
    %v4529 = vmul.f32 %v2770, %v4527
    %v4530 = vmul.f32 %v2775, %v4527
    %v4531 = vadd.f32 %v4499, %v4528
    %v4532 = vadd.f32 %v4500, %v4529
    %v4533 = vadd.f32 %v4501, %v4530
    %s4534 = sld [smem:[#allocation7 + $0x17]]
    %v4535 = vstv %s4534
    %v4536 = vmul.f32 %v2774, %v4535
    %v4537 = vmul.f32 %v2770, %v4535
    %v4538 = vmul.f32 %v2775, %v4535
    %4542 = vrot.lane.b32.xlu0 %v4536, 127
    %v4543 = vpop.permute.xlu0 %4542
    %4544 = vrot.lane.b32.xlu0 %v4537, 127
    %v4545 = vpop.permute.xlu0 %4544
    %4546 = vrot.lane.b32.xlu0 %v4538, 127
    %v4547 = vpop.permute.xlu0 %4546
    %v4551 = vadd.f32 %v4507, %v4543
    %v4552 = vadd.f32 %v4508, %v4545
    %v4553 = vadd.f32 %v4509, %v4547
    %s4554 = sld [smem:[#allocation7 + $0x3b]]
    %v4555 = vstv %s4554
    %v4556 = vmul.f32 %v2774, %v4555
    %v4557 = vmul.f32 %v2770, %v4555
    %v4558 = vmul.f32 %v2775, %v4555
    %4562 = vrot.lane.b32.xlu0 %v4556, 127
    %v4563 = vpop.permute.xlu0 %4562
    %4564 = vrot.lane.b32.xlu0 %v4557, 127
    %v4565 = vpop.permute.xlu0 %4564
    %4566 = vrot.lane.b32.xlu0 %v4558, 127
    %v4567 = vpop.permute.xlu0 %4566
    %v4571 = vadd.f32 %v4515, %v4563
    %v4572 = vadd.f32 %v4516, %v4565
    %v4573 = vadd.f32 %v4517, %v4567
    %s4574 = sld [smem:[#allocation7 + $0x5f]]
    %v4575 = vstv %s4574
    %v4576 = vmul.f32 %v2774, %v4575
    %v4577 = vmul.f32 %v2770, %v4575
    %v4578 = vmul.f32 %v2775, %v4575
    %4582 = vrot.lane.b32.xlu0 %v4576, 127
    %v4583 = vpop.permute.xlu0 %4582
    %4584 = vrot.lane.b32.xlu0 %v4577, 127
    %v4585 = vpop.permute.xlu0 %4584
    %4586 = vrot.lane.b32.xlu0 %v4578, 127
    %v4587 = vpop.permute.xlu0 %4586
    %v4591 = vadd.f32 %v4523, %v4583
    %v4592 = vadd.f32 %v4524, %v4585
    %v4593 = vadd.f32 %v4525, %v4587
    %s4594 = sld [smem:[#allocation7 + $0x83]]
    %v4595 = vstv %s4594
    %v4596 = vmul.f32 %v2774, %v4595
    %v4597 = vmul.f32 %v2770, %v4595
    %v4598 = vmul.f32 %v2775, %v4595
    %4602 = vrot.lane.b32.xlu0 %v4596, 127
    %v4603 = vpop.permute.xlu0 %4602
    %4604 = vrot.lane.b32.xlu0 %v4597, 127
    %v4605 = vpop.permute.xlu0 %4604
    %4606 = vrot.lane.b32.xlu0 %v4598, 127
    %v4607 = vpop.permute.xlu0 %4606
    %v4611 = vadd.f32 %v4531, %v4603
    %v4612 = vadd.f32 %v4532, %v4605
    %v4613 = vadd.f32 %v4533, %v4607
    %s4614 = sld [smem:[#allocation7 + $0x18]]
    %v4615 = vstv %s4614
    %v4616 = vmul.f32 %v2774, %v4615
    %v4617 = vmul.f32 %v2770, %v4615
    %v4618 = vmul.f32 %v2775, %v4615
    %v4622 = vrot.slane %v4616, 1
    %v4623 = vrot.slane %v4617, 1
    %v4624 = vsel %vm297, %v4622, %v4623
    %v4625 = vrot.slane %v4618, 1
    %v4626 = vsel %vm297, %v4623, %v4625
    %4627 = vrot.lane.b32.xlu0 %v4624, 1
    %v4628 = vpop.permute.xlu0 %4627
    %4629 = vrot.lane.b32.xlu0 %v4626, 1
    %v4630 = vpop.permute.xlu0 %4629
    %4631 = vrot.lane.b32.xlu0 %v4625, 1
    %v4632 = vpop.permute.xlu0 %4631
    %v4636 = vadd.f32 %v4551, %v4628
    %v4637 = vadd.f32 %v4552, %v4630
    %v4638 = vadd.f32 %v4553, %v4632
    %s4639 = sld [smem:[#allocation7 + $0x3c]]
    %v4640 = vstv %s4639
    %v4641 = vmul.f32 %v2774, %v4640
    %v4642 = vmul.f32 %v2770, %v4640
    %v4643 = vmul.f32 %v2775, %v4640
    %v4647 = vrot.slane %v4641, 1
    %v4648 = vrot.slane %v4642, 1
    %v4649 = vsel %vm297, %v4647, %v4648
    %v4650 = vrot.slane %v4643, 1
    %v4651 = vsel %vm297, %v4648, %v4650
    %4652 = vrot.lane.b32.xlu0 %v4649, 1
    %v4653 = vpop.permute.xlu0 %4652
    %4654 = vrot.lane.b32.xlu0 %v4651, 1
    %v4655 = vpop.permute.xlu0 %4654
    %4656 = vrot.lane.b32.xlu0 %v4650, 1
    %v4657 = vpop.permute.xlu0 %4656
    %v4661 = vadd.f32 %v4571, %v4653
    %v4662 = vadd.f32 %v4572, %v4655
    %v4663 = vadd.f32 %v4573, %v4657
    %s4664 = sld [smem:[#allocation7 + $0x60]]
    %v4665 = vstv %s4664
    %v4666 = vmul.f32 %v2774, %v4665
    %v4667 = vmul.f32 %v2770, %v4665
    %v4668 = vmul.f32 %v2775, %v4665
    %v4672 = vrot.slane %v4666, 1
    %v4673 = vrot.slane %v4667, 1
    %v4674 = vsel %vm297, %v4672, %v4673
    %v4675 = vrot.slane %v4668, 1
    %v4676 = vsel %vm297, %v4673, %v4675
    %4677 = vrot.lane.b32.xlu0 %v4674, 1
    %v4678 = vpop.permute.xlu0 %4677
    %4679 = vrot.lane.b32.xlu0 %v4676, 1
    %v4680 = vpop.permute.xlu0 %4679
    %4681 = vrot.lane.b32.xlu0 %v4675, 1
    %v4682 = vpop.permute.xlu0 %4681
    %v4686 = vadd.f32 %v4591, %v4678
    %v4687 = vadd.f32 %v4592, %v4680
    %v4688 = vadd.f32 %v4593, %v4682
    %s4689 = sld [smem:[#allocation7 + $0x84]]
    %v4690 = vstv %s4689
    %v4691 = vmul.f32 %v2774, %v4690
    %v4692 = vmul.f32 %v2770, %v4690
    %v4693 = vmul.f32 %v2775, %v4690
    %v4697 = vrot.slane %v4691, 1
    %v4698 = vrot.slane %v4692, 1
    %v4699 = vsel %vm297, %v4697, %v4698
    %v4700 = vrot.slane %v4693, 1
    %v4701 = vsel %vm297, %v4698, %v4700
    %4702 = vrot.lane.b32.xlu0 %v4699, 1
    %v4703 = vpop.permute.xlu0 %4702
    %4704 = vrot.lane.b32.xlu0 %v4701, 1
    %v4705 = vpop.permute.xlu0 %4704
    %4706 = vrot.lane.b32.xlu0 %v4700, 1
    %v4707 = vpop.permute.xlu0 %4706
    %v4711 = vadd.f32 %v4611, %v4703
    %v4712 = vadd.f32 %v4612, %v4705
    %v4713 = vadd.f32 %v4613, %v4707
    %s4714 = sld [smem:[#allocation7 + $0x19]]
    %v4715 = vstv %s4714
    %v4716 = vmul.f32 %v2774, %v4715
    %v4717 = vmul.f32 %v2770, %v4715
    %v4718 = vmul.f32 %v2775, %v4715
    %v4722 = vrot.slane %v4716, 1
    %v4723 = vrot.slane %v4717, 1
    %v4724 = vsel %vm297, %v4722, %v4723
    %v4725 = vrot.slane %v4718, 1
    %v4726 = vsel %vm297, %v4723, %v4725
    %v4730 = vadd.f32 %v4636, %v4724
    %v4731 = vadd.f32 %v4637, %v4726
    %v4732 = vadd.f32 %v4638, %v4725
    %s4733 = sld [smem:[#allocation7 + $0x3d]]
    %v4734 = vstv %s4733
    %v4735 = vmul.f32 %v2774, %v4734
    %v4736 = vmul.f32 %v2770, %v4734
    %v4737 = vmul.f32 %v2775, %v4734
    %v4741 = vrot.slane %v4735, 1
    %v4742 = vrot.slane %v4736, 1
    %v4743 = vsel %vm297, %v4741, %v4742
    %v4744 = vrot.slane %v4737, 1
    %v4745 = vsel %vm297, %v4742, %v4744
    %v4749 = vadd.f32 %v4661, %v4743
    %v4750 = vadd.f32 %v4662, %v4745
    %v4751 = vadd.f32 %v4663, %v4744
    %s4752 = sld [smem:[#allocation7 + $0x61]]
    %v4753 = vstv %s4752
    %v4754 = vmul.f32 %v2774, %v4753
    %v4755 = vmul.f32 %v2770, %v4753
    %v4756 = vmul.f32 %v2775, %v4753
    %v4760 = vrot.slane %v4754, 1
    %v4761 = vrot.slane %v4755, 1
    %v4762 = vsel %vm297, %v4760, %v4761
    %v4763 = vrot.slane %v4756, 1
    %v4764 = vsel %vm297, %v4761, %v4763
    %v4768 = vadd.f32 %v4686, %v4762
    %v4769 = vadd.f32 %v4687, %v4764
    %v4770 = vadd.f32 %v4688, %v4763
    %s4771 = sld [smem:[#allocation7 + $0x85]]
    %v4772 = vstv %s4771
    %v4773 = vmul.f32 %v2774, %v4772
    %v4774 = vmul.f32 %v2770, %v4772
    %v4775 = vmul.f32 %v2775, %v4772
    %v4779 = vrot.slane %v4773, 1
    %v4780 = vrot.slane %v4774, 1
    %v4781 = vsel %vm297, %v4779, %v4780
    %v4782 = vrot.slane %v4775, 1
    %v4783 = vsel %vm297, %v4780, %v4782
    %v4787 = vadd.f32 %v4711, %v4781
    %v4788 = vadd.f32 %v4712, %v4783
    %v4789 = vadd.f32 %v4713, %v4782
    %s4790 = sld [smem:[#allocation7 + $0x1a]]
    %v4791 = vstv %s4790
    %v4792 = vmul.f32 %v2774, %v4791
    %v4793 = vmul.f32 %v2770, %v4791
    %v4794 = vmul.f32 %v2775, %v4791
    %v4798 = vrot.slane %v4792, 1
    %v4799 = vrot.slane %v4793, 1
    %v4800 = vsel %vm297, %v4798, %v4799
    %v4801 = vrot.slane %v4794, 1
    %v4802 = vsel %vm297, %v4799, %v4801
    %4803 = vrot.lane.b32.xlu0 %v4800, 127
    %v4804 = vpop.permute.xlu0 %4803
    %4805 = vrot.lane.b32.xlu0 %v4802, 127
    %v4806 = vpop.permute.xlu0 %4805
    %4807 = vrot.lane.b32.xlu0 %v4801, 127
    %v4808 = vpop.permute.xlu0 %4807
    %v4812 = vadd.f32 %v4730, %v4804
    %v4813 = vadd.f32 %v4731, %v4806
    %v4814 = vadd.f32 %v4732, %v4808
    %s4815 = sld [smem:[#allocation7 + $0x3e]]
    %v4816 = vstv %s4815
    %v4817 = vmul.f32 %v2774, %v4816
    %v4818 = vmul.f32 %v2770, %v4816
    %v4819 = vmul.f32 %v2775, %v4816
    %v4823 = vrot.slane %v4817, 1
    %v4824 = vrot.slane %v4818, 1
    %v4825 = vsel %vm297, %v4823, %v4824
    %v4826 = vrot.slane %v4819, 1
    %v4827 = vsel %vm297, %v4824, %v4826
    %4828 = vrot.lane.b32.xlu0 %v4825, 127
    %v4829 = vpop.permute.xlu0 %4828
    %4830 = vrot.lane.b32.xlu0 %v4827, 127
    %v4831 = vpop.permute.xlu0 %4830
    %4832 = vrot.lane.b32.xlu0 %v4826, 127
    %v4833 = vpop.permute.xlu0 %4832
    %v4837 = vadd.f32 %v4749, %v4829
    %v4838 = vadd.f32 %v4750, %v4831
    %v4839 = vadd.f32 %v4751, %v4833
    %s4840 = sld [smem:[#allocation7 + $0x62]]
    %v4841 = vstv %s4840
    %v4842 = vmul.f32 %v2774, %v4841
    %v4843 = vmul.f32 %v2770, %v4841
    %v4844 = vmul.f32 %v2775, %v4841
    %v4848 = vrot.slane %v4842, 1
    %v4849 = vrot.slane %v4843, 1
    %v4850 = vsel %vm297, %v4848, %v4849
    %v4851 = vrot.slane %v4844, 1
    %v4852 = vsel %vm297, %v4849, %v4851
    %4853 = vrot.lane.b32.xlu0 %v4850, 127
    %v4854 = vpop.permute.xlu0 %4853
    %4855 = vrot.lane.b32.xlu0 %v4852, 127
    %v4856 = vpop.permute.xlu0 %4855
    %4857 = vrot.lane.b32.xlu0 %v4851, 127
    %v4858 = vpop.permute.xlu0 %4857
    %v4862 = vadd.f32 %v4768, %v4854
    %v4863 = vadd.f32 %v4769, %v4856
    %v4864 = vadd.f32 %v4770, %v4858
    %s4865 = sld [smem:[#allocation7 + $0x86]]
    %v4866 = vstv %s4865
    %v4867 = vmul.f32 %v2774, %v4866
    %v4868 = vmul.f32 %v2770, %v4866
    %v4869 = vmul.f32 %v2775, %v4866
    %v4873 = vrot.slane %v4867, 1
    %v4874 = vrot.slane %v4868, 1
    %v4875 = vsel %vm297, %v4873, %v4874
    %v4876 = vrot.slane %v4869, 1
    %v4877 = vsel %vm297, %v4874, %v4876
    %4878 = vrot.lane.b32.xlu0 %v4875, 127
    %v4879 = vpop.permute.xlu0 %4878
    %4880 = vrot.lane.b32.xlu0 %v4877, 127
    %v4881 = vpop.permute.xlu0 %4880
    %4882 = vrot.lane.b32.xlu0 %v4876, 127
    %v4883 = vpop.permute.xlu0 %4882
    %v4887 = vadd.f32 %v4787, %v4879
    %v4888 = vadd.f32 %v4788, %v4881
    %v4889 = vadd.f32 %v4789, %v4883
    %s4890 = sld [smem:[#allocation7 + $0x1b]]
    %v4891 = vstv %s4890
    %v4892 = vmul.f32 %v2800, %v4891
    %v4893 = vmul.f32 %v2796, %v4891
    %v4896 = vrot.slane %v4892, 7
    %v4897 = vrot.slane %v4893, 7
    %v4898 = vsel %vm2715, %v4896, %v4897
    %4899 = vrot.lane.b32.xlu0 %v4896, 1
    %v4900 = vpop.permute.xlu0 %4899
    %4901 = vrot.lane.b32.xlu0 %v4898, 1
    %v4902 = vpop.permute.xlu0 %4901
    %4903 = vrot.lane.b32.xlu0 %v4897, 1
    %v4904 = vpop.permute.xlu0 %4903
    %v4908 = vadd.f32 %v4812, %v4900
    %v4909 = vadd.f32 %v4813, %v4902
    %v4910 = vadd.f32 %v4814, %v4904
    %s4911 = sld [smem:[#allocation7 + $0x3f]]
    %v4912 = vstv %s4911
    %v4913 = vmul.f32 %v2800, %v4912
    %v4914 = vmul.f32 %v2796, %v4912
    %v4917 = vrot.slane %v4913, 7
    %v4918 = vrot.slane %v4914, 7
    %v4919 = vsel %vm2715, %v4917, %v4918
    %4920 = vrot.lane.b32.xlu0 %v4917, 1
    %v4921 = vpop.permute.xlu0 %4920
    %4922 = vrot.lane.b32.xlu0 %v4919, 1
    %v4923 = vpop.permute.xlu0 %4922
    %4924 = vrot.lane.b32.xlu0 %v4918, 1
    %v4925 = vpop.permute.xlu0 %4924
    %v4929 = vadd.f32 %v4837, %v4921
    %v4930 = vadd.f32 %v4838, %v4923
    %v4931 = vadd.f32 %v4839, %v4925
    %s4932 = sld [smem:[#allocation7 + $0x63]]
    %v4933 = vstv %s4932
    %v4934 = vmul.f32 %v2800, %v4933
    %v4935 = vmul.f32 %v2796, %v4933
    %v4938 = vrot.slane %v4934, 7
    %v4939 = vrot.slane %v4935, 7
    %v4940 = vsel %vm2715, %v4938, %v4939
    %4941 = vrot.lane.b32.xlu0 %v4938, 1
    %v4942 = vpop.permute.xlu0 %4941
    %4943 = vrot.lane.b32.xlu0 %v4940, 1
    %v4944 = vpop.permute.xlu0 %4943
    %4945 = vrot.lane.b32.xlu0 %v4939, 1
    %v4946 = vpop.permute.xlu0 %4945
    %v4950 = vadd.f32 %v4862, %v4942
    %v4951 = vadd.f32 %v4863, %v4944
    %v4952 = vadd.f32 %v4864, %v4946
    %s4953 = sld [smem:[#allocation7 + $0x87]]
    %v4954 = vstv %s4953
    %v4955 = vmul.f32 %v2800, %v4954
    %v4956 = vmul.f32 %v2796, %v4954
    %v4959 = vrot.slane %v4955, 7
    %v4960 = vrot.slane %v4956, 7
    %v4961 = vsel %vm2715, %v4959, %v4960
    %4962 = vrot.lane.b32.xlu0 %v4959, 1
    %v4963 = vpop.permute.xlu0 %4962
    %4964 = vrot.lane.b32.xlu0 %v4961, 1
    %v4965 = vpop.permute.xlu0 %4964
    %4966 = vrot.lane.b32.xlu0 %v4960, 1
    %v4967 = vpop.permute.xlu0 %4966
    %v4971 = vadd.f32 %v4887, %v4963
    %v4972 = vadd.f32 %v4888, %v4965
    %v4973 = vadd.f32 %v4889, %v4967
    %s4974 = sld [smem:[#allocation7 + $0x1c]]
    %v4975 = vstv %s4974
    %v4976 = vmul.f32 %v2800, %v4975
    %v4977 = vmul.f32 %v2796, %v4975
    %v4980 = vrot.slane %v4976, 7
    %v4981 = vrot.slane %v4977, 7
    %v4982 = vsel %vm2715, %v4980, %v4981
    %v4986 = vadd.f32 %v4908, %v4980
    %v4987 = vadd.f32 %v4909, %v4982
    %v4988 = vadd.f32 %v4910, %v4981
    %s4989 = sld [smem:[#allocation7 + $0x40]]
    %v4990 = vstv %s4989
    %v4991 = vmul.f32 %v2800, %v4990
    %v4992 = vmul.f32 %v2796, %v4990
    %v4995 = vrot.slane %v4991, 7
    %v4996 = vrot.slane %v4992, 7
    %v4997 = vsel %vm2715, %v4995, %v4996
    %v5001 = vadd.f32 %v4929, %v4995
    %v5002 = vadd.f32 %v4930, %v4997
    %v5003 = vadd.f32 %v4931, %v4996
    %s5004 = sld [smem:[#allocation7 + $0x64]]
    %v5005 = vstv %s5004
    %v5006 = vmul.f32 %v2800, %v5005
    %v5007 = vmul.f32 %v2796, %v5005
    %v5010 = vrot.slane %v5006, 7
    %v5011 = vrot.slane %v5007, 7
    %v5012 = vsel %vm2715, %v5010, %v5011
    %v5016 = vadd.f32 %v4950, %v5010
    %v5017 = vadd.f32 %v4951, %v5012
    %v5018 = vadd.f32 %v4952, %v5011
    %s5019 = sld [smem:[#allocation7 + $0x88]]
    %v5020 = vstv %s5019
    %v5021 = vmul.f32 %v2800, %v5020
    %v5022 = vmul.f32 %v2796, %v5020
    %v5025 = vrot.slane %v5021, 7
    %v5026 = vrot.slane %v5022, 7
    %v5027 = vsel %vm2715, %v5025, %v5026
    %v5031 = vadd.f32 %v4971, %v5025
    %v5032 = vadd.f32 %v4972, %v5027
    %v5033 = vadd.f32 %v4973, %v5026
    %s5034 = sld [smem:[#allocation7 + $0x1d]]
    %v5035 = vstv %s5034
    %v5036 = vmul.f32 %v2800, %v5035
    %v5037 = vmul.f32 %v2796, %v5035
    %v5040 = vrot.slane %v5036, 7
    %v5041 = vrot.slane %v5037, 7
    %v5042 = vsel %vm2715, %v5040, %v5041
    %5043 = vrot.lane.b32.xlu0 %v5040, 127
    %v5044 = vpop.permute.xlu0 %5043
    %5045 = vrot.lane.b32.xlu0 %v5042, 127
    %v5046 = vpop.permute.xlu0 %5045
    %5047 = vrot.lane.b32.xlu0 %v5041, 127
    %v5048 = vpop.permute.xlu0 %5047
    %v5052 = vadd.f32 %v4986, %v5044
    %v5053 = vadd.f32 %v4987, %v5046
    %v5054 = vadd.f32 %v4988, %v5048
    %s5055 = sld [smem:[#allocation7 + $0x41]]
    %v5056 = vstv %s5055
    %v5057 = vmul.f32 %v2800, %v5056
    %v5058 = vmul.f32 %v2796, %v5056
    %v5061 = vrot.slane %v5057, 7
    %v5062 = vrot.slane %v5058, 7
    %v5063 = vsel %vm2715, %v5061, %v5062
    %5064 = vrot.lane.b32.xlu0 %v5061, 127
    %v5065 = vpop.permute.xlu0 %5064
    %5066 = vrot.lane.b32.xlu0 %v5063, 127
    %v5067 = vpop.permute.xlu0 %5066
    %5068 = vrot.lane.b32.xlu0 %v5062, 127
    %v5069 = vpop.permute.xlu0 %5068
    %v5073 = vadd.f32 %v5001, %v5065
    %v5074 = vadd.f32 %v5002, %v5067
    %v5075 = vadd.f32 %v5003, %v5069
    %s5076 = sld [smem:[#allocation7 + $0x65]]
    %v5077 = vstv %s5076
    %v5078 = vmul.f32 %v2800, %v5077
    %v5079 = vmul.f32 %v2796, %v5077
    %v5082 = vrot.slane %v5078, 7
    %v5083 = vrot.slane %v5079, 7
    %v5084 = vsel %vm2715, %v5082, %v5083
    %5085 = vrot.lane.b32.xlu0 %v5082, 127
    %v5086 = vpop.permute.xlu0 %5085
    %5087 = vrot.lane.b32.xlu0 %v5084, 127
    %v5088 = vpop.permute.xlu0 %5087
    %5089 = vrot.lane.b32.xlu0 %v5083, 127
    %v5090 = vpop.permute.xlu0 %5089
    %v5094 = vadd.f32 %v5016, %v5086
    %v5095 = vadd.f32 %v5017, %v5088
    %v5096 = vadd.f32 %v5018, %v5090
    %s5097 = sld [smem:[#allocation7 + $0x89]]
    %v5098 = vstv %s5097
    %v5099 = vmul.f32 %v2800, %v5098
    %v5100 = vmul.f32 %v2796, %v5098
    %v5103 = vrot.slane %v5099, 7
    %v5104 = vrot.slane %v5100, 7
    %v5105 = vsel %vm2715, %v5103, %v5104
    %5106 = vrot.lane.b32.xlu0 %v5103, 127
    %v5107 = vpop.permute.xlu0 %5106
    %5108 = vrot.lane.b32.xlu0 %v5105, 127
    %v5109 = vpop.permute.xlu0 %5108
    %5110 = vrot.lane.b32.xlu0 %v5104, 127
    %v5111 = vpop.permute.xlu0 %5110
    %v5115 = vadd.f32 %v5031, %v5107
    %v5116 = vadd.f32 %v5032, %v5109
    %v5117 = vadd.f32 %v5033, %v5111
    %s5118 = sld [smem:[#allocation7 + $0x1e]]
    %v5119 = vstv %s5118
    %v5120 = vmul.f32 %v2800, %v5119
    %v5121 = vmul.f32 %v2796, %v5119
    %v5122 = vmul.f32 %v2801, %v5119
    %5126 = vrot.lane.b32.xlu0 %v5120, 1
    %v5127 = vpop.permute.xlu0 %5126
    %5128 = vrot.lane.b32.xlu0 %v5121, 1
    %v5129 = vpop.permute.xlu0 %5128
    %5130 = vrot.lane.b32.xlu0 %v5122, 1
    %v5131 = vpop.permute.xlu0 %5130
    %v5135 = vadd.f32 %v5052, %v5127
    %v5136 = vadd.f32 %v5053, %v5129
    %v5137 = vadd.f32 %v5054, %v5131
    %s5138 = sld [smem:[#allocation7 + $0x42]]
    %v5139 = vstv %s5138
    %v5140 = vmul.f32 %v2800, %v5139
    %v5141 = vmul.f32 %v2796, %v5139
    %v5142 = vmul.f32 %v2801, %v5139
    %5146 = vrot.lane.b32.xlu0 %v5140, 1
    %v5147 = vpop.permute.xlu0 %5146
    %5148 = vrot.lane.b32.xlu0 %v5141, 1
    %v5149 = vpop.permute.xlu0 %5148
    %5150 = vrot.lane.b32.xlu0 %v5142, 1
    %v5151 = vpop.permute.xlu0 %5150
    %v5155 = vadd.f32 %v5073, %v5147
    %v5156 = vadd.f32 %v5074, %v5149
    %v5157 = vadd.f32 %v5075, %v5151
    %s5158 = sld [smem:[#allocation7 + $0x66]]
    %v5159 = vstv %s5158
    %v5160 = vmul.f32 %v2800, %v5159
    %v5161 = vmul.f32 %v2796, %v5159
    %v5162 = vmul.f32 %v2801, %v5159
    %5166 = vrot.lane.b32.xlu0 %v5160, 1
    %v5167 = vpop.permute.xlu0 %5166
    %5168 = vrot.lane.b32.xlu0 %v5161, 1
    %v5169 = vpop.permute.xlu0 %5168
    %5170 = vrot.lane.b32.xlu0 %v5162, 1
    %v5171 = vpop.permute.xlu0 %5170
    %v5175 = vadd.f32 %v5094, %v5167
    %v5176 = vadd.f32 %v5095, %v5169
    %v5177 = vadd.f32 %v5096, %v5171
    %s5178 = sld [smem:[#allocation7 + $0x8a]]
    %v5179 = vstv %s5178
    %v5180 = vmul.f32 %v2800, %v5179
    %v5181 = vmul.f32 %v2796, %v5179
    %v5182 = vmul.f32 %v2801, %v5179
    %5186 = vrot.lane.b32.xlu0 %v5180, 1
    %v5187 = vpop.permute.xlu0 %5186
    %5188 = vrot.lane.b32.xlu0 %v5181, 1
    %v5189 = vpop.permute.xlu0 %5188
    %5190 = vrot.lane.b32.xlu0 %v5182, 1
    %v5191 = vpop.permute.xlu0 %5190
    %v5195 = vadd.f32 %v5115, %v5187
    %v5196 = vadd.f32 %v5116, %v5189
    %v5197 = vadd.f32 %v5117, %v5191
    %s5198 = sld [smem:[#allocation7 + $0x1f]]
    %v5199 = vstv %s5198
    %v5200 = vmul.f32 %v2800, %v5199
    %v5201 = vmul.f32 %v2796, %v5199
    %v5202 = vmul.f32 %v2801, %v5199
    %v5203 = vadd.f32 %v5135, %v5200
    %v5204 = vadd.f32 %v5136, %v5201
    %v5205 = vadd.f32 %v5137, %v5202
    %s5206 = sld [smem:[#allocation7 + $0x43]]
    %v5207 = vstv %s5206
    %v5208 = vmul.f32 %v2800, %v5207
    %v5209 = vmul.f32 %v2796, %v5207
    %v5210 = vmul.f32 %v2801, %v5207
    %v5211 = vadd.f32 %v5155, %v5208
    %v5212 = vadd.f32 %v5156, %v5209
    %v5213 = vadd.f32 %v5157, %v5210
    %s5214 = sld [smem:[#allocation7 + $0x67]]
    %v5215 = vstv %s5214
    %v5216 = vmul.f32 %v2800, %v5215
    %v5217 = vmul.f32 %v2796, %v5215
    %v5218 = vmul.f32 %v2801, %v5215
    %v5219 = vadd.f32 %v5175, %v5216
    %v5220 = vadd.f32 %v5176, %v5217
    %v5221 = vadd.f32 %v5177, %v5218
    %s5222 = sld [smem:[#allocation7 + $0x8b]]
    %v5223 = vstv %s5222
    %v5224 = vmul.f32 %v2800, %v5223
    %v5225 = vmul.f32 %v2796, %v5223
    %v5226 = vmul.f32 %v2801, %v5223
    %v5227 = vadd.f32 %v5195, %v5224
    %v5228 = vadd.f32 %v5196, %v5225
    %v5229 = vadd.f32 %v5197, %v5226
    %s5230 = sld [smem:[#allocation7 + $0x20]]
    %v5231 = vstv %s5230
    %v5232 = vmul.f32 %v2800, %v5231
    %v5233 = vmul.f32 %v2796, %v5231
    %v5234 = vmul.f32 %v2801, %v5231
    %5238 = vrot.lane.b32.xlu0 %v5232, 127
    %v5239 = vpop.permute.xlu0 %5238
    %5240 = vrot.lane.b32.xlu0 %v5233, 127
    %v5241 = vpop.permute.xlu0 %5240
    %5242 = vrot.lane.b32.xlu0 %v5234, 127
    %v5243 = vpop.permute.xlu0 %5242
    %v5247 = vadd.f32 %v5203, %v5239
    %v5248 = vadd.f32 %v5204, %v5241
    %v5249 = vadd.f32 %v5205, %v5243
    %s5250 = sld [smem:[#allocation7 + $0x44]]
    %v5251 = vstv %s5250
    %v5252 = vmul.f32 %v2800, %v5251
    %v5253 = vmul.f32 %v2796, %v5251
    %v5254 = vmul.f32 %v2801, %v5251
    %5258 = vrot.lane.b32.xlu0 %v5252, 127
    %v5259 = vpop.permute.xlu0 %5258
    %5260 = vrot.lane.b32.xlu0 %v5253, 127
    %v5261 = vpop.permute.xlu0 %5260
    %5262 = vrot.lane.b32.xlu0 %v5254, 127
    %v5263 = vpop.permute.xlu0 %5262
    %v5267 = vadd.f32 %v5211, %v5259
    %v5268 = vadd.f32 %v5212, %v5261
    %v5269 = vadd.f32 %v5213, %v5263
    %s5270 = sld [smem:[#allocation7 + $0x68]]
    %v5271 = vstv %s5270
    %v5272 = vmul.f32 %v2800, %v5271
    %v5273 = vmul.f32 %v2796, %v5271
    %v5274 = vmul.f32 %v2801, %v5271
    %5278 = vrot.lane.b32.xlu0 %v5272, 127
    %v5279 = vpop.permute.xlu0 %5278
    %5280 = vrot.lane.b32.xlu0 %v5273, 127
    %v5281 = vpop.permute.xlu0 %5280
    %5282 = vrot.lane.b32.xlu0 %v5274, 127
    %v5283 = vpop.permute.xlu0 %5282
    %v5287 = vadd.f32 %v5219, %v5279
    %v5288 = vadd.f32 %v5220, %v5281
    %v5289 = vadd.f32 %v5221, %v5283
    %s5290 = sld [smem:[#allocation7 + $0x8c]]
    %v5291 = vstv %s5290
    %v5292 = vmul.f32 %v2800, %v5291
    %v5293 = vmul.f32 %v2796, %v5291
    %v5294 = vmul.f32 %v2801, %v5291
    %5298 = vrot.lane.b32.xlu0 %v5292, 127
    %v5299 = vpop.permute.xlu0 %5298
    %5300 = vrot.lane.b32.xlu0 %v5293, 127
    %v5301 = vpop.permute.xlu0 %5300
    %5302 = vrot.lane.b32.xlu0 %v5294, 127
    %v5303 = vpop.permute.xlu0 %5302
    %v5307 = vadd.f32 %v5227, %v5299
    %v5308 = vadd.f32 %v5228, %v5301
    %v5309 = vadd.f32 %v5229, %v5303
    %s5310 = sld [smem:[#allocation7 + $0x21]]
    %v5311 = vstv %s5310
    %v5312 = vmul.f32 %v2800, %v5311
    %v5313 = vmul.f32 %v2796, %v5311
    %v5314 = vmul.f32 %v2801, %v5311
    %v5318 = vrot.slane %v5312, 1
    %v5319 = vrot.slane %v5313, 1
    %v5320 = vsel %vm297, %v5318, %v5319
    %v5321 = vrot.slane %v5314, 1
    %v5322 = vsel %vm297, %v5319, %v5321
    %5323 = vrot.lane.b32.xlu0 %v5320, 1
    %v5324 = vpop.permute.xlu0 %5323
    %5325 = vrot.lane.b32.xlu0 %v5322, 1
    %v5326 = vpop.permute.xlu0 %5325
    %5327 = vrot.lane.b32.xlu0 %v5321, 1
    %v5328 = vpop.permute.xlu0 %5327
    %v5332 = vadd.f32 %v5247, %v5324
    %v5333 = vadd.f32 %v5248, %v5326
    %v5334 = vadd.f32 %v5249, %v5328
    %s5335 = sld [smem:[#allocation7 + $0x45]]
    %v5336 = vstv %s5335
    %v5337 = vmul.f32 %v2800, %v5336
    %v5338 = vmul.f32 %v2796, %v5336
    %v5339 = vmul.f32 %v2801, %v5336
    %v5343 = vrot.slane %v5337, 1
    %v5344 = vrot.slane %v5338, 1
    %v5345 = vsel %vm297, %v5343, %v5344
    %v5346 = vrot.slane %v5339, 1
    %v5347 = vsel %vm297, %v5344, %v5346
    %5348 = vrot.lane.b32.xlu0 %v5345, 1
    %v5349 = vpop.permute.xlu0 %5348
    %5350 = vrot.lane.b32.xlu0 %v5347, 1
    %v5351 = vpop.permute.xlu0 %5350
    %5352 = vrot.lane.b32.xlu0 %v5346, 1
    %v5353 = vpop.permute.xlu0 %5352
    %v5357 = vadd.f32 %v5267, %v5349
    %v5358 = vadd.f32 %v5268, %v5351
    %v5359 = vadd.f32 %v5269, %v5353
    %s5360 = sld [smem:[#allocation7 + $0x69]]
    %v5361 = vstv %s5360
    %v5362 = vmul.f32 %v2800, %v5361
    %v5363 = vmul.f32 %v2796, %v5361
    %v5364 = vmul.f32 %v2801, %v5361
    %v5368 = vrot.slane %v5362, 1
    %v5369 = vrot.slane %v5363, 1
    %v5370 = vsel %vm297, %v5368, %v5369
    %v5371 = vrot.slane %v5364, 1
    %v5372 = vsel %vm297, %v5369, %v5371
    %5373 = vrot.lane.b32.xlu0 %v5370, 1
    %v5374 = vpop.permute.xlu0 %5373
    %5375 = vrot.lane.b32.xlu0 %v5372, 1
    %v5376 = vpop.permute.xlu0 %5375
    %5377 = vrot.lane.b32.xlu0 %v5371, 1
    %v5378 = vpop.permute.xlu0 %5377
    %v5382 = vadd.f32 %v5287, %v5374
    %v5383 = vadd.f32 %v5288, %v5376
    %v5384 = vadd.f32 %v5289, %v5378
    %s5385 = sld [smem:[#allocation7 + $0x8d]]
    %v5386 = vstv %s5385
    %v5387 = vmul.f32 %v2800, %v5386
    %v5388 = vmul.f32 %v2796, %v5386
    %v5389 = vmul.f32 %v2801, %v5386
    %v5393 = vrot.slane %v5387, 1
    %v5394 = vrot.slane %v5388, 1
    %v5395 = vsel %vm297, %v5393, %v5394
    %v5396 = vrot.slane %v5389, 1
    %v5397 = vsel %vm297, %v5394, %v5396
    %5398 = vrot.lane.b32.xlu0 %v5395, 1
    %v5399 = vpop.permute.xlu0 %5398
    %5400 = vrot.lane.b32.xlu0 %v5397, 1
    %v5401 = vpop.permute.xlu0 %5400
    %5402 = vrot.lane.b32.xlu0 %v5396, 1
    %v5403 = vpop.permute.xlu0 %5402
    %v5407 = vadd.f32 %v5307, %v5399
    %v5408 = vadd.f32 %v5308, %v5401
    %v5409 = vadd.f32 %v5309, %v5403
    %s5410 = sld [smem:[#allocation7 + $0x22]]
    %v5411 = vstv %s5410
    %v5412 = vmul.f32 %v2800, %v5411
    %v5413 = vmul.f32 %v2796, %v5411
    %v5414 = vmul.f32 %v2801, %v5411
    %v5418 = vrot.slane %v5412, 1
    %v5419 = vrot.slane %v5413, 1
    %v5420 = vsel %vm297, %v5418, %v5419
    %v5421 = vrot.slane %v5414, 1
    %v5422 = vsel %vm297, %v5419, %v5421
    %v5426 = vadd.f32 %v5332, %v5420
    %v5427 = vadd.f32 %v5333, %v5422
    %v5428 = vadd.f32 %v5334, %v5421
    %s5429 = sld [smem:[#allocation7 + $0x46]]
    %v5430 = vstv %s5429
    %v5431 = vmul.f32 %v2800, %v5430
    %v5432 = vmul.f32 %v2796, %v5430
    %v5433 = vmul.f32 %v2801, %v5430
    %v5437 = vrot.slane %v5431, 1
    %v5438 = vrot.slane %v5432, 1
    %v5439 = vsel %vm297, %v5437, %v5438
    %v5440 = vrot.slane %v5433, 1
    %v5441 = vsel %vm297, %v5438, %v5440
    %v5445 = vadd.f32 %v5357, %v5439
    %v5446 = vadd.f32 %v5358, %v5441
    %v5447 = vadd.f32 %v5359, %v5440
    %s5448 = sld [smem:[#allocation7 + $0x6a]]
    %v5449 = vstv %s5448
    %v5450 = vmul.f32 %v2800, %v5449
    %v5451 = vmul.f32 %v2796, %v5449
    %v5452 = vmul.f32 %v2801, %v5449
    %v5456 = vrot.slane %v5450, 1
    %v5457 = vrot.slane %v5451, 1
    %v5458 = vsel %vm297, %v5456, %v5457
    %v5459 = vrot.slane %v5452, 1
    %v5460 = vsel %vm297, %v5457, %v5459
    %v5464 = vadd.f32 %v5382, %v5458
    %v5465 = vadd.f32 %v5383, %v5460
    %v5466 = vadd.f32 %v5384, %v5459
    %s5467 = sld [smem:[#allocation7 + $0x8e]]
    %v5468 = vstv %s5467
    %v5469 = vmul.f32 %v2800, %v5468
    %v5470 = vmul.f32 %v2796, %v5468
    %v5471 = vmul.f32 %v2801, %v5468
    %v5475 = vrot.slane %v5469, 1
    %v5476 = vrot.slane %v5470, 1
    %v5477 = vsel %vm297, %v5475, %v5476
    %v5478 = vrot.slane %v5471, 1
    %v5479 = vsel %vm297, %v5476, %v5478
    %v5483 = vadd.f32 %v5407, %v5477
    %v5484 = vadd.f32 %v5408, %v5479
    %v5485 = vadd.f32 %v5409, %v5478
    %s5486 = sld [smem:[#allocation7 + $0x23]]
    %v5487 = vstv %s5486
    %v5488 = vmul.f32 %v2800, %v5487
    %v5489 = vmul.f32 %v2796, %v5487
    %v5490 = vmul.f32 %v2801, %v5487
    %v5494 = vrot.slane %v5488, 1
    %v5495 = vrot.slane %v5489, 1
    %v5496 = vsel %vm297, %v5494, %v5495
    %v5497 = vrot.slane %v5490, 1
    %v5498 = vsel %vm297, %v5495, %v5497
    %5499 = vrot.lane.b32.xlu0 %v5496, 127
    %v5500 = vpop.permute.xlu0 %5499
    %5501 = vrot.lane.b32.xlu0 %v5498, 127
    %v5502 = vpop.permute.xlu0 %5501
    %5503 = vrot.lane.b32.xlu0 %v5497, 127
    %v5504 = vpop.permute.xlu0 %5503
    %v5508 = vadd.f32 %v5426, %v5500
    %v5509 = vadd.f32 %v5427, %v5502
    %v5510 = vadd.f32 %v5428, %v5504
    %s5511 = sld [smem:[#allocation7 + $0x47]]
    %v5512 = vstv %s5511
    %v5513 = vmul.f32 %v2800, %v5512
    %v5514 = vmul.f32 %v2796, %v5512
    %v5515 = vmul.f32 %v2801, %v5512
    %v5519 = vrot.slane %v5513, 1
    %v5520 = vrot.slane %v5514, 1
    %v5521 = vsel %vm297, %v5519, %v5520
    %v5522 = vrot.slane %v5515, 1
    %v5523 = vsel %vm297, %v5520, %v5522
    %5524 = vrot.lane.b32.xlu0 %v5521, 127
    %v5525 = vpop.permute.xlu0 %5524
    %5526 = vrot.lane.b32.xlu0 %v5523, 127
    %v5527 = vpop.permute.xlu0 %5526
    %5528 = vrot.lane.b32.xlu0 %v5522, 127
    %v5529 = vpop.permute.xlu0 %5528
    %v5533 = vadd.f32 %v5445, %v5525
    %v5534 = vadd.f32 %v5446, %v5527
    %v5535 = vadd.f32 %v5447, %v5529
    %s5536 = sld [smem:[#allocation7 + $0x6b]]
    %v5537 = vstv %s5536
    %v5538 = vmul.f32 %v2800, %v5537
    %v5539 = vmul.f32 %v2796, %v5537
    %v5540 = vmul.f32 %v2801, %v5537
    %v5544 = vrot.slane %v5538, 1
    %v5545 = vrot.slane %v5539, 1
    %v5546 = vsel %vm297, %v5544, %v5545
    %v5547 = vrot.slane %v5540, 1
    %v5548 = vsel %vm297, %v5545, %v5547
    %5549 = vrot.lane.b32.xlu0 %v5546, 127
    %v5550 = vpop.permute.xlu0 %5549
    %5551 = vrot.lane.b32.xlu0 %v5548, 127
    %v5552 = vpop.permute.xlu0 %5551
    %5553 = vrot.lane.b32.xlu0 %v5547, 127
    %v5554 = vpop.permute.xlu0 %5553
    %v5558 = vadd.f32 %v5464, %v5550
    %v5559 = vadd.f32 %v5465, %v5552
    %v5560 = vadd.f32 %v5466, %v5554
    %s5561 = sld [smem:[#allocation7 + $0x8f]]
    %v5562 = vstv %s5561
    %v5563 = vmul.f32 %v2800, %v5562
    %v5564 = vmul.f32 %v2796, %v5562
    %v5565 = vmul.f32 %v2801, %v5562
    %v5569 = vrot.slane %v5563, 1
    %v5570 = vrot.slane %v5564, 1
    %v5571 = vsel %vm297, %v5569, %v5570
    %v5572 = vrot.slane %v5565, 1
    %v5573 = vsel %vm297, %v5570, %v5572
    %5574 = vrot.lane.b32.xlu0 %v5571, 127
    %v5575 = vpop.permute.xlu0 %5574
    %5576 = vrot.lane.b32.xlu0 %v5573, 127
    %v5577 = vpop.permute.xlu0 %5576
    %5578 = vrot.lane.b32.xlu0 %v5572, 127
    %v5579 = vpop.permute.xlu0 %5578
    %v5583 = vadd.f32 %v5483, %v5575
    %v5584 = vadd.f32 %v5484, %v5577
    %v5585 = vadd.f32 %v5485, %v5579
    %5589 = vrot.lane.b32.xlu0 %v5508, 127
    %v5590 = vpop.permute.xlu0 %5589
    %5591 = vrot.lane.b32.xlu0 %v5509, 127
    %v5592 = vpop.permute.xlu0 %5591
    %5593 = vrot.lane.b32.xlu0 %v5510, 127
    %v5594 = vpop.permute.xlu0 %5593
    %5598 = vrot.lane.b32.xlu0 %v5508, 125
    %v5599 = vpop.permute.xlu0 %5598
    %5600 = vrot.lane.b32.xlu0 %v5509, 125
    %v5601 = vpop.permute.xlu0 %5600
    %5602 = vrot.lane.b32.xlu0 %v5510, 125
    %v5603 = vpop.permute.xlu0 %5602
    %5610 = vrot.lane.b32.xlu0 %v5533, 31
    %v5611 = vpop.permute.xlu0 %5610
    %5612 = vrot.lane.b32.xlu0 %v5534, 31
    %v5613 = vpop.permute.xlu0 %5612
    %5614 = vrot.lane.b32.xlu0 %v5535, 31
    %v5615 = vpop.permute.xlu0 %5614
    %5619 = vrot.lane.b32.xlu0 %v5533, 29
    %v5620 = vpop.permute.xlu0 %5619
    %5621 = vrot.lane.b32.xlu0 %v5534, 29
    %v5622 = vpop.permute.xlu0 %5621
    %5623 = vrot.lane.b32.xlu0 %v5535, 29
    %v5624 = vpop.permute.xlu0 %5623
    %5631 = vrot.lane.b32.xlu0 %v5558, 63
    %v5632 = vpop.permute.xlu0 %5631
    %5633 = vrot.lane.b32.xlu0 %v5559, 63
    %v5634 = vpop.permute.xlu0 %5633
    %5635 = vrot.lane.b32.xlu0 %v5560, 63
    %v5636 = vpop.permute.xlu0 %5635
    %5640 = vrot.lane.b32.xlu0 %v5558, 61
    %v5641 = vpop.permute.xlu0 %5640
    %5642 = vrot.lane.b32.xlu0 %v5559, 61
    %v5643 = vpop.permute.xlu0 %5642
    %5644 = vrot.lane.b32.xlu0 %v5560, 61
    %v5645 = vpop.permute.xlu0 %5644
    %5652 = vrot.lane.b32.xlu0 %v5583, 95
    %v5653 = vpop.permute.xlu0 %5652
    %5654 = vrot.lane.b32.xlu0 %v5584, 95
    %v5655 = vpop.permute.xlu0 %5654
    %5656 = vrot.lane.b32.xlu0 %v5585, 95
    %v5657 = vpop.permute.xlu0 %5656
    %5661 = vrot.lane.b32.xlu0 %v5583, 93
    %v5662 = vpop.permute.xlu0 %5661
    %5663 = vrot.lane.b32.xlu0 %v5584, 93
    %v5664 = vpop.permute.xlu0 %5663
    %5665 = vrot.lane.b32.xlu0 %v5585, 93
    %v5666 = vpop.permute.xlu0 %5665
    %vm5670 = vcmask 130048
    %v5671 = vsel %vm5670, %v5590, %v5599
    %v5672 = vsel %vm5670, %v5592, %v5601
    %v5673 = vsel %vm5670, %v5594, %v5603
    %vm5674 = vcmask 261120
    %v5675 = vsel %vm5674, %v5671, %v5611
    %v5676 = vsel %vm5674, %v5672, %v5613
    %v5677 = vsel %vm5674, %v5673, %v5615
    %vm5678 = vcmask 392192
    %v5679 = vsel %vm5678, %v5675, %v5620
    %v5680 = vsel %vm5678, %v5676, %v5622
    %v5681 = vsel %vm5678, %v5677, %v5624
    %vm5682 = vcmask 523264
    %v5683 = vsel %vm5682, %v5679, %v5632
    %v5684 = vsel %vm5682, %v5680, %v5634
    %v5685 = vsel %vm5682, %v5681, %v5636
    %vm5686 = vcmask 654336
    %v5687 = vsel %vm5686, %v5683, %v5641
    %v5688 = vsel %vm5686, %v5684, %v5643
    %v5689 = vsel %vm5686, %v5685, %v5645
    %vm5690 = vcmask 785408
    %v5691 = vsel %vm5690, %v5687, %v5653
    %v5692 = vsel %vm5690, %v5688, %v5655
    %v5693 = vsel %vm5690, %v5689, %v5657
    %vm5694 = vcmask 916480
    %v5695 = vsel %vm5694, %v5691, %v5662
    %v5696 = vsel %vm5694, %v5692, %v5664
    %v5697 = vsel %vm5694, %v5693, %v5666
    %5698 = vst [vmem:[#allocation11 - $0x1] sm:$0xfe] %v5695
    %5699 = vst [vmem:[#allocation11 + $0x7] sm:$0xff] %v5696
    %5700 = vst [vmem:[#allocation11 + $0xf] sm:$0x1] %v5697
    // Predicated region
    $region46: #{tpu_custom_call.1} parent=1 // pred_check
      _
    $region47: #{tpu_custom_call.1} parent=1 // pred_check_branch
      %5702 = sbr.rel (0) target = $region49
    $region48: #{tpu_custom_call.1} parent=1 // pred_region
      %s5704 = ssub.s32 256, 256
      %5705 = vsyncadd [#allocation3], %s5704
      %s5706 = sshll.u32 [#allocation11], 4
      %s5707 = int_to_ptr.vmem [resolvable:$true] %s5706
      %5712 = dma.vmem_to_hbm [thread:$0]  %s5707, 256, %s6, [#allocation3], 128, 128, 8
    $region49: #{tpu_custom_call.1} parent=1 // pred_fallthru
      _
    // Predicated region
    $region50: #{tpu_custom_call.1} parent=1 // pred_check
      _
    $region51: #{tpu_custom_call.1} parent=1 // pred_check_branch
      %5714 = sbr.rel (0) target = $region53
    $region52: #{tpu_custom_call.1} parent=1 // pred_region
      %5715 = dma.done [#allocation3], 256
    $region53: #{tpu_custom_call.1} parent=1 // pred_fallthru
      _
    %5716 = vsyncpa [#allocation3], 1
    %5717 = vsyncpa [#allocation4], 1
    %5718 = vsyncpa [#allocation6], 1
    %5719 = vsyncpa [#allocation9], 1

</llo_original>
